<compile_context>
chip_gen: v6e
topology: v6e:2x2x1
jax: 0.10.0
libtpu: 0.0.40
codegen_flags: <defaults>
</compile_context>

<pallas_src>
import jax
import jax.numpy as jnp
from jax.experimental import pallas as pl
from jax.experimental.pallas import tpu as pltpu


def _round_up(x, m):
    return ((x + m - 1) // m) * m


# ----------------------------- fused GRU(bi) + BatchNorm kernel -----------------------------
def _make_gru_bn_kernel(T, Bp, Hp, n_rows, eps=1e-5):
    H3 = 3 * Hp

    def kernel(x_ref, len_ref, wih_ref, bih_ref, whh_ref, bhh_ref,
               gamma_ref, beta_ref, out_ref, xg_scr):
        Dp = x_ref.shape[-1]

        # ---- hoisted input projection: one big MXU matmul for both directions ----
        x2d = x_ref[...].reshape(T * Bp, Dp)                      # layout-free (Bp % 8 == 0)
        xg = jnp.dot(x2d, wih_ref[...],
                     preferred_element_type=jnp.float32) + bih_ref[...]      # (T*Bp, 6Hp)
        xg_scr[...] = xg.reshape(T, Bp, 2 * H3)

        lens = len_ref[...]          # (Bp, 1) int32
        whh = whh_ref[...]           # (2Hp, 6Hp) block-diagonal [Whh_f 0; 0 Whh_r]
        bhh = bhh_ref[...]           # (1, 6Hp)

        def gru_gates(xg_d, hg_d, h_d, m):
            # gate order [r, z, n], PyTorch GRU update equations; m freezes h past the length.
            r = jax.nn.sigmoid(xg_d[:, :Hp] + hg_d[:, :Hp])
            z = jax.nn.sigmoid(xg_d[:, Hp:2 * Hp] + hg_d[:, Hp:2 * Hp])
            n = jnp.tanh(xg_d[:, 2 * Hp:] + r * hg_d[:, 2 * Hp:])
            h_new = (1.0 - z) * n + z * h_d
            out = m * h_new                            # zero past the valid length
            h_keep = out + (1.0 - m) * h_d             # frozen hidden state past the length
            return out, h_keep

        def step(t, h_cat):
            tr = T - 1 - t
            # one recurrent MXU call for both directions
            hg = jnp.dot(h_cat, whh, preferred_element_type=jnp.float32) + bhh   # (Bp, 6Hp)
            m_f = (t < lens).astype(jnp.float32)       # (Bp, 1)
            m_r = (tr < lens).astype(jnp.float32)
            o_f, h_f = gru_gates(xg_scr[t, :, :H3], hg[:, :H3], h_cat[:, :Hp], m_f)
            o_r, h_r = gru_gates(xg_scr[tr, :, H3:], hg[:, H3:], h_cat[:, Hp:], m_r)
            out_ref[t, :, :Hp] = o_f                   # forward half, zero past length
            out_ref[tr, :, Hp:] = o_r                  # reverse half, zero past length
            return jnp.concatenate([h_f, h_r], axis=-1)

        h0 = jnp.zeros((Bp, 2 * Hp), jnp.float32)
        jax.lax.fori_loop(0, T, step, h0, unroll=True)

        # ---- fused BatchNorm1d, training mode. Statistics over the B_real*T real positions;
        #      padded batch rows / padded time steps are exactly zero, so E[x] and E[x^2]
        #      computed from raw sums over the padded block are exact (single read pass). ----
        y = out_ref[...]                                                    # (T, Bp, 2Hp)
        inv_n = 1.0 / float(n_rows)
        s1 = jnp.sum(jnp.sum(y, axis=0), axis=0, keepdims=True)            # (1, 2Hp)
        s2 = jnp.sum(jnp.sum(y * y, axis=0), axis=0, keepdims=True)        # (1, 2Hp)
        mean = s1 * inv_n
        var = jnp.maximum(s2 * inv_n - mean * mean, 0.0)                   # biased variance
        scale = jax.lax.rsqrt(var + eps) * gamma_ref[...]                  # (1, 2Hp)  (EUP)
        shift = beta_ref[...] - mean * scale
        out_ref[...] = y * scale[None] + shift[None]

    return kernel


# ----------------------------- weight packing helpers -----------------------------
def _pad_gate_cols(w, H, Hp):
    """(rows, 3H) -> (rows, 3Hp): zero-pad each of the r/z/n gate blocks independently."""
    zc = jnp.zeros((w.shape[0], Hp - H), w.dtype)
    parts = []
    for g in range(3):
        parts += [w[:, g * H:(g + 1) * H], zc]
    return jnp.concatenate(parts, axis=1)


def _pad_rows(w, rows):
    return jnp.pad(w, ((0, rows - w.shape[0]), (0, 0)))


# ----------------------------- wrapper -----------------------------
def rnn_forward(x, x_len, params):
    """x: (B, T, D_in) float32, x_len: (B,) int. Returns (B, T, 2*H)."""
    B, T, Din = x.shape
    H = params["whh_f"].shape[0]
    Bp = _round_up(max(B, 8), 8)
    Hp = _round_up(max(H, 128), 128)
    Dp = _round_up(max(Din, 128), 128)

    # time-major, lane/sublane padded input; padded rows/cols are zero
    xt = jnp.transpose(x, (1, 0, 2)).astype(jnp.float32)                  # (T, B, Din)
    xt_p = jnp.pad(xt, ((0, 0), (0, Bp - B), (0, Dp - Din)))              # (T, Bp, Dp)
    lens_p = jnp.pad(x_len.astype(jnp.int32), (0, Bp - B)).reshape(Bp, 1)  # (Bp, 1)

    # pack + pad weights: both directions' input projections concatenated along lanes
    wih_cat = jnp.concatenate(
        [_pad_rows(_pad_gate_cols(params["wih_f"], H, Hp), Dp),
         _pad_rows(_pad_gate_cols(params["wih_r"], H, Hp), Dp)], axis=1)   # (Dp, 6Hp)
    bih_cat = jnp.concatenate(
        [_pad_gate_cols(params["bih_f"], H, Hp),
         _pad_gate_cols(params["bih_r"], H, Hp)], axis=1)                  # (1, 6Hp)
    whh_f_p = _pad_rows(_pad_gate_cols(params["whh_f"], H, Hp), Hp)        # (Hp, 3Hp)
    whh_r_p = _pad_rows(_pad_gate_cols(params["whh_r"], H, Hp), Hp)
    z3 = jnp.zeros((Hp, 3 * Hp), jnp.float32)
    whh_cat = jnp.concatenate(
        [jnp.concatenate([whh_f_p, z3], axis=1),
         jnp.concatenate([z3, whh_r_p], axis=1)], axis=0)                  # (2Hp, 6Hp)
    bhh_cat = jnp.concatenate(
        [_pad_gate_cols(params["bhh_f"], H, Hp),
         _pad_gate_cols(params["bhh_r"], H, Hp)], axis=1)                  # (1, 6Hp)
    gamma_p = jnp.concatenate(
        [jnp.pad(params["gamma"][:, :H], ((0, 0), (0, Hp - H)), constant_values=1.0),
         jnp.pad(params["gamma"][:, H:], ((0, 0), (0, Hp - H)), constant_values=1.0)], axis=1)
    beta_p = jnp.concatenate(
        [jnp.pad(params["beta"][:, :H], ((0, 0), (0, Hp - H))),
         jnp.pad(params["beta"][:, H:], ((0, 0), (0, Hp - H)))], axis=1)   # (1, 2Hp)

    kernel = _make_gru_bn_kernel(T=T, Bp=Bp, Hp=Hp, n_rows=B * T)
    out_pad = pl.pallas_call(
        kernel,
        out_shape=jax.ShapeDtypeStruct((T, Bp, 2 * Hp), jnp.float32),
        scratch_shapes=[pltpu.VMEM((T, Bp, 6 * Hp), jnp.float32)],
    )(xt_p, lens_p, wih_cat, bih_cat, whh_cat, bhh_cat, gamma_p, beta_p)

    # single slice + concat + transpose back to (B, T, 2H) at the very end
    yf = out_pad[:, :B, :H]
    yr = out_pad[:, :B, Hp:Hp + H]
    y = jnp.concatenate([yf, yr], axis=-1)            # (T, B, 2H) [fwd | rev] as in PyTorch
    return jnp.transpose(y, (1, 0, 2))                # (B, T, 2H)


# ----------------------------- deterministic parameter init -----------------------------
def init_params(key, d_in, d_out):
    H = d_out
    k = 1.0 / jnp.sqrt(jnp.float32(H))
    keys = jax.random.split(key, 8)
    u = lambda kk, shape: jax.random.uniform(kk, shape, jnp.float32, -k, k)
    # weights stored pre-transposed: wih (Din, 3H), whh (H, 3H); gate order [r, z, n]
    return dict(
        wih_f=u(keys[0], (d_in, 3 * H)), whh_f=u(keys[1], (H, 3 * H)),
        bih_f=u(keys[2], (1, 3 * H)),    bhh_f=u(keys[3], (1, 3 * H)),
        wih_r=u(keys[4], (d_in, 3 * H)), whh_r=u(keys[5], (H, 3 * H)),
        bih_r=u(keys[6], (1, 3 * H)),    bhh_r=u(keys[7], (1, 3 * H)),
        gamma=jnp.ones((1, 2 * H), jnp.float32),
        beta=jnp.zeros((1, 2 * H), jnp.float32),
    )


# ----------------------------- pure-JAX reference (correctness check) -----------------------------
def ref_forward(x, x_len, params):
    B, T, Din = x.shape
    H = params["whh_f"].shape[0]
    xt = jnp.transpose(x, (1, 0, 2))
    mask = (jnp.arange(T)[:, None] < x_len[None, :]).astype(jnp.float32)[:, :, None]
    hp = jax.lax.Precision.HIGHEST

    def run_dir(wih, whh, bih, bhh, reverse):
        h = jnp.zeros((B, H), jnp.float32)
        outs = [None] * T
        order = range(T - 1, -1, -1) if reverse else range(T)
        for t in order:
            xg = jnp.dot(xt[t], wih, precision=hp) + bih
            hg = jnp.dot(h, whh, precision=hp) + bhh
            r = jax.nn.sigmoid(xg[:, :H] + hg[:, :H])
            z = jax.nn.sigmoid(xg[:, H:2 * H] + hg[:, H:2 * H])
            n = jnp.tanh(xg[:, 2 * H:] + r * hg[:, 2 * H:])
            hn = (1.0 - z) * n + z * h
            m = mask[t]
            h = m * hn + (1.0 - m) * h
            outs[t] = m * h
        return jnp.stack(outs, 0)

    of = run_dir(params["wih_f"], params["whh_f"], params["bih_f"], params["bhh_f"], False)
    orv = run_dir(params["wih_r"], params["whh_r"], params["bih_r"], params["bhh_r"], True)
    y = jnp.transpose(jnp.concatenate([of, orv], -1), (1, 0, 2))
    C = y.shape[-1]
    flat = y.reshape(-1, C)
    mean = flat.mean(0)
    var = ((flat - mean) ** 2).mean(0)
    return (y - mean) * jax.lax.rsqrt(var + 1e-5) * params["gamma"][0] + params["beta"][0]


if __name__ == "__main__":
    key = jax.random.PRNGKey(0)
    pk, xk = jax.random.split(key)
    B, T, Din, H = 2, 8, 16, 32
    params = init_params(pk, Din, H)
    x = jax.random.normal(xk, (B, T, Din), jnp.float32)
    x_len = jnp.array([8, 5], jnp.int32)

    fwd = jax.jit(rnn_forward)
    out = fwd(x, x_len, params)
    jax.block_until_ready(out)

    ref = ref_forward(x, x_len, params)
    assert out.shape == (B, T, 2 * H), out.shape
    assert jnp.allclose(out, ref, atol=2e-3, rtol=2e-3), float(jnp.max(jnp.abs(out - ref)))
    print("KERNEL_OK")
</pallas_src>

<mosaic_0001>
module attributes {stable_mosaic.version = 11 : i64} {
  func.func @kernel(%arg0: memref<8x8x128xf32, #tpu.memory_space<vmem>>, %arg1: memref<8x1xi32, #tpu.memory_space<vmem>>, %arg2: memref<128x768xf32, #tpu.memory_space<vmem>>, %arg3: memref<1x768xf32, #tpu.memory_space<vmem>>, %arg4: memref<256x768xf32, #tpu.memory_space<vmem>>, %arg5: memref<1x768xf32, #tpu.memory_space<vmem>>, %arg6: memref<1x256xf32, #tpu.memory_space<vmem>>, %arg7: memref<1x256xf32, #tpu.memory_space<vmem>>, %arg8: memref<8x8x256xf32, #tpu.memory_space<vmem>>, %arg9: memref<8x8x768xf32, #tpu.memory_space<vmem>>) attributes {dimension_semantics = [], scalar_prefetch = 0 : i64, scratch_operands = 1 : i64, tpu.core_type = #tpu.core_type<tc>} {
    %c0 = arith.constant 0 : index
    %c0_0 = arith.constant 0 : index
    %c0_1 = arith.constant 0 : index
    %0 = vector.load %arg0[%c0, %c0_0, %c0_1] : memref<8x8x128xf32, #tpu.memory_space<vmem>>, vector<8x8x128xf32>
    %1 = vector.shape_cast %0 : vector<8x8x128xf32> to vector<64x128xf32>
    %c0_2 = arith.constant 0 : index
    %c0_3 = arith.constant 0 : index
    %2 = vector.load %arg2[%c0_2, %c0_3] : memref<128x768xf32, #tpu.memory_space<vmem>>, vector<128x768xf32>
    %cst = arith.constant dense<0.000000e+00> : vector<64x768xf32>
    %3 = tpu.matmul %1, %2, %cst {dimension_numbers = #tpu.dot_dimension_numbers<[1], [0], [0], [1], [0, 0, 1, 1], [], []>} : vector<64x128xf32>, vector<128x768xf32>, vector<64x768xf32> -> vector<64x768xf32>
    %c0_4 = arith.constant 0 : index
    %c0_5 = arith.constant 0 : index
    %4 = vector.load %arg3[%c0_4, %c0_5] : memref<1x768xf32, #tpu.memory_space<vmem>>, vector<1x768xf32>
    %5 = vector.broadcast %4 : vector<1x768xf32> to vector<64x768xf32>
    %6 = arith.addf %3, %5 : vector<64x768xf32>
    %7 = vector.shape_cast %6 : vector<64x768xf32> to vector<8x8x768xf32>
    %c0_6 = arith.constant 0 : index
    %c0_7 = arith.constant 0 : index
    %c0_8 = arith.constant 0 : index
    %8 = vector.load %arg9[%c0_6, %c0_7, %c0_8] : memref<8x8x768xf32, #tpu.memory_space<vmem>>, vector<8x8x768xf32>
    tpu.vector_store %arg9[%c0_6, %c0_7, %c0_8], %7 {strides = array<i32>} : memref<8x8x768xf32, #tpu.memory_space<vmem>>, vector<8x8x768xf32>,
    %c0_9 = arith.constant 0 : index
    %c0_10 = arith.constant 0 : index
    %9 = vector.load %arg1[%c0_9, %c0_10] : memref<8x1xi32, #tpu.memory_space<vmem>>, vector<8x1xi32>
    %c0_11 = arith.constant 0 : index
    %c0_12 = arith.constant 0 : index
    %10 = vector.load %arg4[%c0_11, %c0_12] : memref<256x768xf32, #tpu.memory_space<vmem>>, vector<256x768xf32>
    %c0_13 = arith.constant 0 : index
    %c0_14 = arith.constant 0 : index
    %11 = vector.load %arg5[%c0_13, %c0_14] : memref<1x768xf32, #tpu.memory_space<vmem>>, vector<1x768xf32>
    %cst_15 = arith.constant 0.000000e+00 : f32
    %12 = vector.broadcast %cst_15 : f32 to vector<8x256xf32>
    %c0_i32 = arith.constant 0 : i32
    %c7_i32 = arith.constant 7 : i32
    %13 = arith.subi %c7_i32, %c0_i32 : i32
    %cst_16 = arith.constant dense<0.000000e+00> : vector<8x768xf32>
    %14 = tpu.matmul %12, %10, %cst_16 {dimension_numbers = #tpu.dot_dimension_numbers<[1], [0], [0], [1], [0, 0, 1, 1], [], []>} : vector<8x256xf32>, vector<256x768xf32>, vector<8x768xf32> -> vector<8x768xf32>
    %15 = vector.broadcast %11 : vector<1x768xf32> to vector<8x768xf32>
    %16 = arith.addf %14, %15 : vector<8x768xf32>
    %17 = vector.broadcast %c0_i32 : i32 to vector<8x1xi32>
    %18 = arith.cmpi slt, %17, %9 : vector<8x1xi32>
    %19 = arith.extui %18 : vector<8x1xi1> to vector<8x1xi32>
    %20 = arith.sitofp %19 : vector<8x1xi32> to vector<8x1xf32>
    %21 = vector.broadcast %13 : i32 to vector<8x1xi32>
    %22 = arith.cmpi slt, %21, %9 : vector<8x1xi32>
    %23 = arith.extui %22 : vector<8x1xi1> to vector<8x1xi32>
    %24 = arith.sitofp %23 : vector<8x1xi32> to vector<8x1xf32>
    %25 = arith.index_cast %c0_i32 : i32 to index
    %c0_17 = arith.constant 0 : index
    %c0_18 = arith.constant 0 : index
    %26 = vector.load %arg9[%25, %c0_17, %c0_18] : memref<8x8x768xf32, #tpu.memory_space<vmem>>, vector<1x8x384xf32>
    %27 = vector.shape_cast %26 : vector<1x8x384xf32> to vector<8x384xf32>
    %28 = vector.extract_strided_slice %16 {offsets = [0, 0], sizes = [8, 384], strides = [1, 1]} : vector<8x768xf32> to vector<8x384xf32>
    %29 = vector.extract_strided_slice %12 {offsets = [0, 0], sizes = [8, 128], strides = [1, 1]} : vector<8x256xf32> to vector<8x128xf32>
    %30 = vector.extract_strided_slice %27 {offsets = [0, 0], sizes = [8, 128], strides = [1, 1]} : vector<8x384xf32> to vector<8x128xf32>
    %31 = vector.extract_strided_slice %28 {offsets = [0, 0], sizes = [8, 128], strides = [1, 1]} : vector<8x384xf32> to vector<8x128xf32>
    %32 = arith.addf %30, %31 : vector<8x128xf32>
    %33 = arith.negf %32 : vector<8x128xf32>
    %34 = math.exp %33 : vector<8x128xf32>
    %cst_19 = arith.constant 1.000000e+00 : f32
    %35 = vector.broadcast %cst_19 : f32 to vector<8x128xf32>
    %36 = arith.addf %35, %34 : vector<8x128xf32>
    %37 = arith.divf %35, %36 : vector<8x128xf32>
    %38 = vector.extract_strided_slice %27 {offsets = [0, 128], sizes = [8, 128], strides = [1, 1]} : vector<8x384xf32> to vector<8x128xf32>
    %39 = vector.extract_strided_slice %28 {offsets = [0, 128], sizes = [8, 128], strides = [1, 1]} : vector<8x384xf32> to vector<8x128xf32>
    %40 = arith.addf %38, %39 : vector<8x128xf32>
    %41 = arith.negf %40 : vector<8x128xf32>
    %42 = math.exp %41 : vector<8x128xf32>
    %cst_20 = arith.constant 1.000000e+00 : f32
    %43 = vector.broadcast %cst_20 : f32 to vector<8x128xf32>
    %44 = arith.addf %43, %42 : vector<8x128xf32>
    %45 = arith.divf %43, %44 : vector<8x128xf32>
    %46 = vector.extract_strided_slice %27 {offsets = [0, 256], sizes = [8, 128], strides = [1, 1]} : vector<8x384xf32> to vector<8x128xf32>
    %47 = vector.extract_strided_slice %28 {offsets = [0, 256], sizes = [8, 128], strides = [1, 1]} : vector<8x384xf32> to vector<8x128xf32>
    %48 = arith.mulf %37, %47 : vector<8x128xf32>
    %49 = arith.addf %46, %48 : vector<8x128xf32>
    %50 = math.tanh %49 : vector<8x128xf32>
    %cst_21 = arith.constant 1.000000e+00 : f32
    %51 = vector.broadcast %cst_21 : f32 to vector<8x128xf32>
    %52 = arith.subf %51, %45 : vector<8x128xf32>
    %53 = arith.mulf %52, %50 : vector<8x128xf32>
    %54 = arith.mulf %45, %29 : vector<8x128xf32>
    %55 = arith.addf %53, %54 : vector<8x128xf32>
    %56 = vector.broadcast %20 : vector<8x1xf32> to vector<8x128xf32>
    %57 = arith.mulf %56, %55 : vector<8x128xf32>
    %cst_22 = arith.constant 1.000000e+00 : f32
    %58 = vector.broadcast %cst_22 : f32 to vector<8x1xf32>
    %59 = arith.subf %58, %20 : vector<8x1xf32>
    %60 = vector.broadcast %59 : vector<8x1xf32> to vector<8x128xf32>
    %61 = arith.mulf %60, %29 : vector<8x128xf32>
    %62 = arith.addf %57, %61 : vector<8x128xf32>
    %63 = arith.index_cast %13 : i32 to index
    %c0_23 = arith.constant 0 : index
    %c384 = arith.constant 384 : index
    %64 = vector.load %arg9[%63, %c0_23, %c384] : memref<8x8x768xf32, #tpu.memory_space<vmem>>, vector<1x8x384xf32>
    %65 = vector.shape_cast %64 : vector<1x8x384xf32> to vector<8x384xf32>
    %66 = vector.extract_strided_slice %16 {offsets = [0, 384], sizes = [8, 384], strides = [1, 1]} : vector<8x768xf32> to vector<8x384xf32>
    %67 = vector.extract_strided_slice %12 {offsets = [0, 128], sizes = [8, 128], strides = [1, 1]} : vector<8x256xf32> to vector<8x128xf32>
    %68 = vector.extract_strided_slice %65 {offsets = [0, 0], sizes = [8, 128], strides = [1, 1]} : vector<8x384xf32> to vector<8x128xf32>
    %69 = vector.extract_strided_slice %66 {offsets = [0, 0], sizes = [8, 128], strides = [1, 1]} : vector<8x384xf32> to vector<8x128xf32>
    %70 = arith.addf %68, %69 : vector<8x128xf32>
    %71 = arith.negf %70 : vector<8x128xf32>
    %72 = math.exp %71 : vector<8x128xf32>
    %cst_24 = arith.constant 1.000000e+00 : f32
    %73 = vector.broadcast %cst_24 : f32 to vector<8x128xf32>
    %74 = arith.addf %73, %72 : vector<8x128xf32>
    %75 = arith.divf %73, %74 : vector<8x128xf32>
    %76 = vector.extract_strided_slice %65 {offsets = [0, 128], sizes = [8, 128], strides = [1, 1]} : vector<8x384xf32> to vector<8x128xf32>
    %77 = vector.extract_strided_slice %66 {offsets = [0, 128], sizes = [8, 128], strides = [1, 1]} : vector<8x384xf32> to vector<8x128xf32>
    %78 = arith.addf %76, %77 : vector<8x128xf32>
    %79 = arith.negf %78 : vector<8x128xf32>
    %80 = math.exp %79 : vector<8x128xf32>
    %cst_25 = arith.constant 1.000000e+00 : f32
    %81 = vector.broadcast %cst_25 : f32 to vector<8x128xf32>
    %82 = arith.addf %81, %80 : vector<8x128xf32>
    %83 = arith.divf %81, %82 : vector<8x128xf32>
    %84 = vector.extract_strided_slice %65 {offsets = [0, 256], sizes = [8, 128], strides = [1, 1]} : vector<8x384xf32> to vector<8x128xf32>
    %85 = vector.extract_strided_slice %66 {offsets = [0, 256], sizes = [8, 128], strides = [1, 1]} : vector<8x384xf32> to vector<8x128xf32>
    %86 = arith.mulf %75, %85 : vector<8x128xf32>
    %87 = arith.addf %84, %86 : vector<8x128xf32>
    %88 = math.tanh %87 : vector<8x128xf32>
    %cst_26 = arith.constant 1.000000e+00 : f32
    %89 = vector.broadcast %cst_26 : f32 to vector<8x128xf32>
    %90 = arith.subf %89, %83 : vector<8x128xf32>
    %91 = arith.mulf %90, %88 : vector<8x128xf32>
    %92 = arith.mulf %83, %67 : vector<8x128xf32>
    %93 = arith.addf %91, %92 : vector<8x128xf32>
    %94 = vector.broadcast %24 : vector<8x1xf32> to vector<8x128xf32>
    %95 = arith.mulf %94, %93 : vector<8x128xf32>
    %cst_27 = arith.constant 1.000000e+00 : f32
    %96 = vector.broadcast %cst_27 : f32 to vector<8x1xf32>
    %97 = arith.subf %96, %24 : vector<8x1xf32>
    %98 = vector.broadcast %97 : vector<8x1xf32> to vector<8x128xf32>
    %99 = arith.mulf %98, %67 : vector<8x128xf32>
    %100 = arith.addf %95, %99 : vector<8x128xf32>
    %101 = arith.index_cast %c0_i32 : i32 to index
    %c0_28 = arith.constant 0 : index
    %c0_29 = arith.constant 0 : index
    %102 = vector.load %arg8[%101, %c0_28, %c0_29] : memref<8x8x256xf32, #tpu.memory_space<vmem>>, vector<1x8x128xf32>
    %103 = vector.shape_cast %102 : vector<1x8x128xf32> to vector<8x128xf32>
    %104 = vector.shape_cast %57 : vector<8x128xf32> to vector<1x8x128xf32>
    tpu.vector_store %arg8[%101, %c0_28, %c0_29], %104 {strides = array<i32>} : memref<8x8x256xf32, #tpu.memory_space<vmem>>, vector<1x8x128xf32>,
    %105 = arith.index_cast %13 : i32 to index
    %c0_30 = arith.constant 0 : index
    %c128 = arith.constant 128 : index
    %106 = vector.load %arg8[%105, %c0_30, %c128] : memref<8x8x256xf32, #tpu.memory_space<vmem>>, vector<1x8x128xf32>
    %107 = vector.shape_cast %106 : vector<1x8x128xf32> to vector<8x128xf32>
    %108 = vector.shape_cast %95 : vector<8x128xf32> to vector<1x8x128xf32>
    tpu.vector_store %arg8[%105, %c0_30, %c128], %108 {strides = array<i32>} : memref<8x8x256xf32, #tpu.memory_space<vmem>>, vector<1x8x128xf32>,
    %109 = tpu.concatenate %62, %100 in 1 : vector<8x128xf32>, vector<8x128xf32> -> vector<8x256xf32>
    %c1_i32 = arith.constant 1 : i32
    %c7_i32_31 = arith.constant 7 : i32
    %110 = arith.subi %c7_i32_31, %c1_i32 : i32
    %cst_32 = arith.constant dense<0.000000e+00> : vector<8x768xf32>
    %111 = tpu.matmul %109, %10, %cst_32 {dimension_numbers = #tpu.dot_dimension_numbers<[1], [0], [0], [1], [0, 0, 1, 1], [], []>} : vector<8x256xf32>, vector<256x768xf32>, vector<8x768xf32> -> vector<8x768xf32>
    %112 = vector.broadcast %11 : vector<1x768xf32> to vector<8x768xf32>
    %113 = arith.addf %111, %112 : vector<8x768xf32>
    %114 = vector.broadcast %c1_i32 : i32 to vector<8x1xi32>
    %115 = arith.cmpi slt, %114, %9 : vector<8x1xi32>
    %116 = arith.extui %115 : vector<8x1xi1> to vector<8x1xi32>
    %117 = arith.sitofp %116 : vector<8x1xi32> to vector<8x1xf32>
    %118 = vector.broadcast %110 : i32 to vector<8x1xi32>
    %119 = arith.cmpi slt, %118, %9 : vector<8x1xi32>
    %120 = arith.extui %119 : vector<8x1xi1> to vector<8x1xi32>
    %121 = arith.sitofp %120 : vector<8x1xi32> to vector<8x1xf32>
    %122 = arith.index_cast %c1_i32 : i32 to index
    %c0_33 = arith.constant 0 : index
    %c0_34 = arith.constant 0 : index
    %123 = vector.load %arg9[%122, %c0_33, %c0_34] : memref<8x8x768xf32, #tpu.memory_space<vmem>>, vector<1x8x384xf32>
    %124 = vector.shape_cast %123 : vector<1x8x384xf32> to vector<8x384xf32>
    %125 = vector.extract_strided_slice %113 {offsets = [0, 0], sizes = [8, 384], strides = [1, 1]} : vector<8x768xf32> to vector<8x384xf32>
    %126 = vector.extract_strided_slice %109 {offsets = [0, 0], sizes = [8, 128], strides = [1, 1]} : vector<8x256xf32> to vector<8x128xf32>
    %127 = vector.extract_strided_slice %124 {offsets = [0, 0], sizes = [8, 128], strides = [1, 1]} : vector<8x384xf32> to vector<8x128xf32>
    %128 = vector.extract_strided_slice %125 {offsets = [0, 0], sizes = [8, 128], strides = [1, 1]} : vector<8x384xf32> to vector<8x128xf32>
    %129 = arith.addf %127, %128 : vector<8x128xf32>
    %130 = arith.negf %129 : vector<8x128xf32>
    %131 = math.exp %130 : vector<8x128xf32>
    %cst_35 = arith.constant 1.000000e+00 : f32
    %132 = vector.broadcast %cst_35 : f32 to vector<8x128xf32>
    %133 = arith.addf %132, %131 : vector<8x128xf32>
    %134 = arith.divf %132, %133 : vector<8x128xf32>
    %135 = vector.extract_strided_slice %124 {offsets = [0, 128], sizes = [8, 128], strides = [1, 1]} : vector<8x384xf32> to vector<8x128xf32>
    %136 = vector.extract_strided_slice %125 {offsets = [0, 128], sizes = [8, 128], strides = [1, 1]} : vector<8x384xf32> to vector<8x128xf32>
    %137 = arith.addf %135, %136 : vector<8x128xf32>
    %138 = arith.negf %137 : vector<8x128xf32>
    %139 = math.exp %138 : vector<8x128xf32>
    %cst_36 = arith.constant 1.000000e+00 : f32
    %140 = vector.broadcast %cst_36 : f32 to vector<8x128xf32>
    %141 = arith.addf %140, %139 : vector<8x128xf32>
    %142 = arith.divf %140, %141 : vector<8x128xf32>
    %143 = vector.extract_strided_slice %124 {offsets = [0, 256], sizes = [8, 128], strides = [1, 1]} : vector<8x384xf32> to vector<8x128xf32>
    %144 = vector.extract_strided_slice %125 {offsets = [0, 256], sizes = [8, 128], strides = [1, 1]} : vector<8x384xf32> to vector<8x128xf32>
    %145 = arith.mulf %134, %144 : vector<8x128xf32>
    %146 = arith.addf %143, %145 : vector<8x128xf32>
    %147 = math.tanh %146 : vector<8x128xf32>
    %cst_37 = arith.constant 1.000000e+00 : f32
    %148 = vector.broadcast %cst_37 : f32 to vector<8x128xf32>
    %149 = arith.subf %148, %142 : vector<8x128xf32>
    %150 = arith.mulf %149, %147 : vector<8x128xf32>
    %151 = arith.mulf %142, %126 : vector<8x128xf32>
    %152 = arith.addf %150, %151 : vector<8x128xf32>
    %153 = vector.broadcast %117 : vector<8x1xf32> to vector<8x128xf32>
    %154 = arith.mulf %153, %152 : vector<8x128xf32>
    %cst_38 = arith.constant 1.000000e+00 : f32
    %155 = vector.broadcast %cst_38 : f32 to vector<8x1xf32>
    %156 = arith.subf %155, %117 : vector<8x1xf32>
    %157 = vector.broadcast %156 : vector<8x1xf32> to vector<8x128xf32>
    %158 = arith.mulf %157, %126 : vector<8x128xf32>
    %159 = arith.addf %154, %158 : vector<8x128xf32>
    %160 = arith.index_cast %110 : i32 to index
    %c0_39 = arith.constant 0 : index
    %c384_40 = arith.constant 384 : index
    %161 = vector.load %arg9[%160, %c0_39, %c384_40] : memref<8x8x768xf32, #tpu.memory_space<vmem>>, vector<1x8x384xf32>
    %162 = vector.shape_cast %161 : vector<1x8x384xf32> to vector<8x384xf32>
    %163 = vector.extract_strided_slice %113 {offsets = [0, 384], sizes = [8, 384], strides = [1, 1]} : vector<8x768xf32> to vector<8x384xf32>
    %164 = vector.extract_strided_slice %109 {offsets = [0, 128], sizes = [8, 128], strides = [1, 1]} : vector<8x256xf32> to vector<8x128xf32>
    %165 = vector.extract_strided_slice %162 {offsets = [0, 0], sizes = [8, 128], strides = [1, 1]} : vector<8x384xf32> to vector<8x128xf32>
    %166 = vector.extract_strided_slice %163 {offsets = [0, 0], sizes = [8, 128], strides = [1, 1]} : vector<8x384xf32> to vector<8x128xf32>
    %167 = arith.addf %165, %166 : vector<8x128xf32>
    %168 = arith.negf %167 : vector<8x128xf32>
    %169 = math.exp %168 : vector<8x128xf32>
    %cst_41 = arith.constant 1.000000e+00 : f32
    %170 = vector.broadcast %cst_41 : f32 to vector<8x128xf32>
    %171 = arith.addf %170, %169 : vector<8x128xf32>
    %172 = arith.divf %170, %171 : vector<8x128xf32>
    %173 = vector.extract_strided_slice %162 {offsets = [0, 128], sizes = [8, 128], strides = [1, 1]} : vector<8x384xf32> to vector<8x128xf32>
    %174 = vector.extract_strided_slice %163 {offsets = [0, 128], sizes = [8, 128], strides = [1, 1]} : vector<8x384xf32> to vector<8x128xf32>
    %175 = arith.addf %173, %174 : vector<8x128xf32>
    %176 = arith.negf %175 : vector<8x128xf32>
    %177 = math.exp %176 : vector<8x128xf32>
    %cst_42 = arith.constant 1.000000e+00 : f32
    %178 = vector.broadcast %cst_42 : f32 to vector<8x128xf32>
    %179 = arith.addf %178, %177 : vector<8x128xf32>
    %180 = arith.divf %178, %179 : vector<8x128xf32>
    %181 = vector.extract_strided_slice %162 {offsets = [0, 256], sizes = [8, 128], strides = [1, 1]} : vector<8x384xf32> to vector<8x128xf32>
    %182 = vector.extract_strided_slice %163 {offsets = [0, 256], sizes = [8, 128], strides = [1, 1]} : vector<8x384xf32> to vector<8x128xf32>
    %183 = arith.mulf %172, %182 : vector<8x128xf32>
    %184 = arith.addf %181, %183 : vector<8x128xf32>
    %185 = math.tanh %184 : vector<8x128xf32>
    %cst_43 = arith.constant 1.000000e+00 : f32
    %186 = vector.broadcast %cst_43 : f32 to vector<8x128xf32>
    %187 = arith.subf %186, %180 : vector<8x128xf32>
    %188 = arith.mulf %187, %185 : vector<8x128xf32>
    %189 = arith.mulf %180, %164 : vector<8x128xf32>
    %190 = arith.addf %188, %189 : vector<8x128xf32>
    %191 = vector.broadcast %121 : vector<8x1xf32> to vector<8x128xf32>
    %192 = arith.mulf %191, %190 : vector<8x128xf32>
    %cst_44 = arith.constant 1.000000e+00 : f32
    %193 = vector.broadcast %cst_44 : f32 to vector<8x1xf32>
    %194 = arith.subf %193, %121 : vector<8x1xf32>
    %195 = vector.broadcast %194 : vector<8x1xf32> to vector<8x128xf32>
    %196 = arith.mulf %195, %164 : vector<8x128xf32>
    %197 = arith.addf %192, %196 : vector<8x128xf32>
    %198 = arith.index_cast %c1_i32 : i32 to index
    %c0_45 = arith.constant 0 : index
    %c0_46 = arith.constant 0 : index
    %199 = vector.load %arg8[%198, %c0_45, %c0_46] : memref<8x8x256xf32, #tpu.memory_space<vmem>>, vector<1x8x128xf32>
    %200 = vector.shape_cast %199 : vector<1x8x128xf32> to vector<8x128xf32>
    %201 = vector.shape_cast %154 : vector<8x128xf32> to vector<1x8x128xf32>
    tpu.vector_store %arg8[%198, %c0_45, %c0_46], %201 {strides = array<i32>} : memref<8x8x256xf32, #tpu.memory_space<vmem>>, vector<1x8x128xf32>,
    %202 = arith.index_cast %110 : i32 to index
    %c0_47 = arith.constant 0 : index
    %c128_48 = arith.constant 128 : index
    %203 = vector.load %arg8[%202, %c0_47, %c128_48] : memref<8x8x256xf32, #tpu.memory_space<vmem>>, vector<1x8x128xf32>
    %204 = vector.shape_cast %203 : vector<1x8x128xf32> to vector<8x128xf32>
    %205 = vector.shape_cast %192 : vector<8x128xf32> to vector<1x8x128xf32>
    tpu.vector_store %arg8[%202, %c0_47, %c128_48], %205 {strides = array<i32>} : memref<8x8x256xf32, #tpu.memory_space<vmem>>, vector<1x8x128xf32>,
    %206 = tpu.concatenate %159, %197 in 1 : vector<8x128xf32>, vector<8x128xf32> -> vector<8x256xf32>
    %c2_i32 = arith.constant 2 : i32
    %c7_i32_49 = arith.constant 7 : i32
    %207 = arith.subi %c7_i32_49, %c2_i32 : i32
    %cst_50 = arith.constant dense<0.000000e+00> : vector<8x768xf32>
    %208 = tpu.matmul %206, %10, %cst_50 {dimension_numbers = #tpu.dot_dimension_numbers<[1], [0], [0], [1], [0, 0, 1, 1], [], []>} : vector<8x256xf32>, vector<256x768xf32>, vector<8x768xf32> -> vector<8x768xf32>
    %209 = vector.broadcast %11 : vector<1x768xf32> to vector<8x768xf32>
    %210 = arith.addf %208, %209 : vector<8x768xf32>
    %211 = vector.broadcast %c2_i32 : i32 to vector<8x1xi32>
    %212 = arith.cmpi slt, %211, %9 : vector<8x1xi32>
    %213 = arith.extui %212 : vector<8x1xi1> to vector<8x1xi32>
    %214 = arith.sitofp %213 : vector<8x1xi32> to vector<8x1xf32>
    %215 = vector.broadcast %207 : i32 to vector<8x1xi32>
    %216 = arith.cmpi slt, %215, %9 : vector<8x1xi32>
    %217 = arith.extui %216 : vector<8x1xi1> to vector<8x1xi32>
    %218 = arith.sitofp %217 : vector<8x1xi32> to vector<8x1xf32>
    %219 = arith.index_cast %c2_i32 : i32 to index
    %c0_51 = arith.constant 0 : index
    %c0_52 = arith.constant 0 : index
    %220 = vector.load %arg9[%219, %c0_51, %c0_52] : memref<8x8x768xf32, #tpu.memory_space<vmem>>, vector<1x8x384xf32>
    %221 = vector.shape_cast %220 : vector<1x8x384xf32> to vector<8x384xf32>
    %222 = vector.extract_strided_slice %210 {offsets = [0, 0], sizes = [8, 384], strides = [1, 1]} : vector<8x768xf32> to vector<8x384xf32>
    %223 = vector.extract_strided_slice %206 {offsets = [0, 0], sizes = [8, 128], strides = [1, 1]} : vector<8x256xf32> to vector<8x128xf32>
    %224 = vector.extract_strided_slice %221 {offsets = [0, 0], sizes = [8, 128], strides = [1, 1]} : vector<8x384xf32> to vector<8x128xf32>
    %225 = vector.extract_strided_slice %222 {offsets = [0, 0], sizes = [8, 128], strides = [1, 1]} : vector<8x384xf32> to vector<8x128xf32>
    %226 = arith.addf %224, %225 : vector<8x128xf32>
    %227 = arith.negf %226 : vector<8x128xf32>
    %228 = math.exp %227 : vector<8x128xf32>
    %cst_53 = arith.constant 1.000000e+00 : f32
    %229 = vector.broadcast %cst_53 : f32 to vector<8x128xf32>
    %230 = arith.addf %229, %228 : vector<8x128xf32>
    %231 = arith.divf %229, %230 : vector<8x128xf32>
    %232 = vector.extract_strided_slice %221 {offsets = [0, 128], sizes = [8, 128], strides = [1, 1]} : vector<8x384xf32> to vector<8x128xf32>
    %233 = vector.extract_strided_slice %222 {offsets = [0, 128], sizes = [8, 128], strides = [1, 1]} : vector<8x384xf32> to vector<8x128xf32>
    %234 = arith.addf %232, %233 : vector<8x128xf32>
    %235 = arith.negf %234 : vector<8x128xf32>
    %236 = math.exp %235 : vector<8x128xf32>
    %cst_54 = arith.constant 1.000000e+00 : f32
    %237 = vector.broadcast %cst_54 : f32 to vector<8x128xf32>
    %238 = arith.addf %237, %236 : vector<8x128xf32>
    %239 = arith.divf %237, %238 : vector<8x128xf32>
    %240 = vector.extract_strided_slice %221 {offsets = [0, 256], sizes = [8, 128], strides = [1, 1]} : vector<8x384xf32> to vector<8x128xf32>
    %241 = vector.extract_strided_slice %222 {offsets = [0, 256], sizes = [8, 128], strides = [1, 1]} : vector<8x384xf32> to vector<8x128xf32>
    %242 = arith.mulf %231, %241 : vector<8x128xf32>
    %243 = arith.addf %240, %242 : vector<8x128xf32>
    %244 = math.tanh %243 : vector<8x128xf32>
    %cst_55 = arith.constant 1.000000e+00 : f32
    %245 = vector.broadcast %cst_55 : f32 to vector<8x128xf32>
    %246 = arith.subf %245, %239 : vector<8x128xf32>
    %247 = arith.mulf %246, %244 : vector<8x128xf32>
    %248 = arith.mulf %239, %223 : vector<8x128xf32>
    %249 = arith.addf %247, %248 : vector<8x128xf32>
    %250 = vector.broadcast %214 : vector<8x1xf32> to vector<8x128xf32>
    %251 = arith.mulf %250, %249 : vector<8x128xf32>
    %cst_56 = arith.constant 1.000000e+00 : f32
    %252 = vector.broadcast %cst_56 : f32 to vector<8x1xf32>
    %253 = arith.subf %252, %214 : vector<8x1xf32>
    %254 = vector.broadcast %253 : vector<8x1xf32> to vector<8x128xf32>
    %255 = arith.mulf %254, %223 : vector<8x128xf32>
    %256 = arith.addf %251, %255 : vector<8x128xf32>
    %257 = arith.index_cast %207 : i32 to index
    %c0_57 = arith.constant 0 : index
    %c384_58 = arith.constant 384 : index
    %258 = vector.load %arg9[%257, %c0_57, %c384_58] : memref<8x8x768xf32, #tpu.memory_space<vmem>>, vector<1x8x384xf32>
    %259 = vector.shape_cast %258 : vector<1x8x384xf32> to vector<8x384xf32>
    %260 = vector.extract_strided_slice %210 {offsets = [0, 384], sizes = [8, 384], strides = [1, 1]} : vector<8x768xf32> to vector<8x384xf32>
    %261 = vector.extract_strided_slice %206 {offsets = [0, 128], sizes = [8, 128], strides = [1, 1]} : vector<8x256xf32> to vector<8x128xf32>
    %262 = vector.extract_strided_slice %259 {offsets = [0, 0], sizes = [8, 128], strides = [1, 1]} : vector<8x384xf32> to vector<8x128xf32>
    %263 = vector.extract_strided_slice %260 {offsets = [0, 0], sizes = [8, 128], strides = [1, 1]} : vector<8x384xf32> to vector<8x128xf32>
    %264 = arith.addf %262, %263 : vector<8x128xf32>
    %265 = arith.negf %264 : vector<8x128xf32>
    %266 = math.exp %265 : vector<8x128xf32>
    %cst_59 = arith.constant 1.000000e+00 : f32
    %267 = vector.broadcast %cst_59 : f32 to vector<8x128xf32>
    %268 = arith.addf %267, %266 : vector<8x128xf32>
    %269 = arith.divf %267, %268 : vector<8x128xf32>
    %270 = vector.extract_strided_slice %259 {offsets = [0, 128], sizes = [8, 128], strides = [1, 1]} : vector<8x384xf32> to vector<8x128xf32>
    %271 = vector.extract_strided_slice %260 {offsets = [0, 128], sizes = [8, 128], strides = [1, 1]} : vector<8x384xf32> to vector<8x128xf32>
    %272 = arith.addf %270, %271 : vector<8x128xf32>
    %273 = arith.negf %272 : vector<8x128xf32>
    %274 = math.exp %273 : vector<8x128xf32>
    %cst_60 = arith.constant 1.000000e+00 : f32
    %275 = vector.broadcast %cst_60 : f32 to vector<8x128xf32>
    %276 = arith.addf %275, %274 : vector<8x128xf32>
    %277 = arith.divf %275, %276 : vector<8x128xf32>
    %278 = vector.extract_strided_slice %259 {offsets = [0, 256], sizes = [8, 128], strides = [1, 1]} : vector<8x384xf32> to vector<8x128xf32>
    %279 = vector.extract_strided_slice %260 {offsets = [0, 256], sizes = [8, 128], strides = [1, 1]} : vector<8x384xf32> to vector<8x128xf32>
    %280 = arith.mulf %269, %279 : vector<8x128xf32>
    %281 = arith.addf %278, %280 : vector<8x128xf32>
    %282 = math.tanh %281 : vector<8x128xf32>
    %cst_61 = arith.constant 1.000000e+00 : f32
    %283 = vector.broadcast %cst_61 : f32 to vector<8x128xf32>
    %284 = arith.subf %283, %277 : vector<8x128xf32>
    %285 = arith.mulf %284, %282 : vector<8x128xf32>
    %286 = arith.mulf %277, %261 : vector<8x128xf32>
    %287 = arith.addf %285, %286 : vector<8x128xf32>
    %288 = vector.broadcast %218 : vector<8x1xf32> to vector<8x128xf32>
    %289 = arith.mulf %288, %287 : vector<8x128xf32>
    %cst_62 = arith.constant 1.000000e+00 : f32
    %290 = vector.broadcast %cst_62 : f32 to vector<8x1xf32>
    %291 = arith.subf %290, %218 : vector<8x1xf32>
    %292 = vector.broadcast %291 : vector<8x1xf32> to vector<8x128xf32>
    %293 = arith.mulf %292, %261 : vector<8x128xf32>
    %294 = arith.addf %289, %293 : vector<8x128xf32>
    %295 = arith.index_cast %c2_i32 : i32 to index
    %c0_63 = arith.constant 0 : index
    %c0_64 = arith.constant 0 : index
    %296 = vector.load %arg8[%295, %c0_63, %c0_64] : memref<8x8x256xf32, #tpu.memory_space<vmem>>, vector<1x8x128xf32>
    %297 = vector.shape_cast %296 : vector<1x8x128xf32> to vector<8x128xf32>
    %298 = vector.shape_cast %251 : vector<8x128xf32> to vector<1x8x128xf32>
    tpu.vector_store %arg8[%295, %c0_63, %c0_64], %298 {strides = array<i32>} : memref<8x8x256xf32, #tpu.memory_space<vmem>>, vector<1x8x128xf32>,
    %299 = arith.index_cast %207 : i32 to index
    %c0_65 = arith.constant 0 : index
    %c128_66 = arith.constant 128 : index
    %300 = vector.load %arg8[%299, %c0_65, %c128_66] : memref<8x8x256xf32, #tpu.memory_space<vmem>>, vector<1x8x128xf32>
    %301 = vector.shape_cast %300 : vector<1x8x128xf32> to vector<8x128xf32>
    %302 = vector.shape_cast %289 : vector<8x128xf32> to vector<1x8x128xf32>
    tpu.vector_store %arg8[%299, %c0_65, %c128_66], %302 {strides = array<i32>} : memref<8x8x256xf32, #tpu.memory_space<vmem>>, vector<1x8x128xf32>,
    %303 = tpu.concatenate %256, %294 in 1 : vector<8x128xf32>, vector<8x128xf32> -> vector<8x256xf32>
    %c3_i32 = arith.constant 3 : i32
    %c7_i32_67 = arith.constant 7 : i32
    %304 = arith.subi %c7_i32_67, %c3_i32 : i32
    %cst_68 = arith.constant dense<0.000000e+00> : vector<8x768xf32>
    %305 = tpu.matmul %303, %10, %cst_68 {dimension_numbers = #tpu.dot_dimension_numbers<[1], [0], [0], [1], [0, 0, 1, 1], [], []>} : vector<8x256xf32>, vector<256x768xf32>, vector<8x768xf32> -> vector<8x768xf32>
    %306 = vector.broadcast %11 : vector<1x768xf32> to vector<8x768xf32>
    %307 = arith.addf %305, %306 : vector<8x768xf32>
    %308 = vector.broadcast %c3_i32 : i32 to vector<8x1xi32>
    %309 = arith.cmpi slt, %308, %9 : vector<8x1xi32>
    %310 = arith.extui %309 : vector<8x1xi1> to vector<8x1xi32>
    %311 = arith.sitofp %310 : vector<8x1xi32> to vector<8x1xf32>
    %312 = vector.broadcast %304 : i32 to vector<8x1xi32>
    %313 = arith.cmpi slt, %312, %9 : vector<8x1xi32>
    %314 = arith.extui %313 : vector<8x1xi1> to vector<8x1xi32>
    %315 = arith.sitofp %314 : vector<8x1xi32> to vector<8x1xf32>
    %316 = arith.index_cast %c3_i32 : i32 to index
    %c0_69 = arith.constant 0 : index
    %c0_70 = arith.constant 0 : index
    %317 = vector.load %arg9[%316, %c0_69, %c0_70] : memref<8x8x768xf32, #tpu.memory_space<vmem>>, vector<1x8x384xf32>
    %318 = vector.shape_cast %317 : vector<1x8x384xf32> to vector<8x384xf32>
    %319 = vector.extract_strided_slice %307 {offsets = [0, 0], sizes = [8, 384], strides = [1, 1]} : vector<8x768xf32> to vector<8x384xf32>
    %320 = vector.extract_strided_slice %303 {offsets = [0, 0], sizes = [8, 128], strides = [1, 1]} : vector<8x256xf32> to vector<8x128xf32>
    %321 = vector.extract_strided_slice %318 {offsets = [0, 0], sizes = [8, 128], strides = [1, 1]} : vector<8x384xf32> to vector<8x128xf32>
    %322 = vector.extract_strided_slice %319 {offsets = [0, 0], sizes = [8, 128], strides = [1, 1]} : vector<8x384xf32> to vector<8x128xf32>
    %323 = arith.addf %321, %322 : vector<8x128xf32>
    %324 = arith.negf %323 : vector<8x128xf32>
    %325 = math.exp %324 : vector<8x128xf32>
    %cst_71 = arith.constant 1.000000e+00 : f32
    %326 = vector.broadcast %cst_71 : f32 to vector<8x128xf32>
    %327 = arith.addf %326, %325 : vector<8x128xf32>
    %328 = arith.divf %326, %327 : vector<8x128xf32>
    %329 = vector.extract_strided_slice %318 {offsets = [0, 128], sizes = [8, 128], strides = [1, 1]} : vector<8x384xf32> to vector<8x128xf32>
    %330 = vector.extract_strided_slice %319 {offsets = [0, 128], sizes = [8, 128], strides = [1, 1]} : vector<8x384xf32> to vector<8x128xf32>
    %331 = arith.addf %329, %330 : vector<8x128xf32>
    %332 = arith.negf %331 : vector<8x128xf32>
    %333 = math.exp %332 : vector<8x128xf32>
    %cst_72 = arith.constant 1.000000e+00 : f32
    %334 = vector.broadcast %cst_72 : f32 to vector<8x128xf32>
    %335 = arith.addf %334, %333 : vector<8x128xf32>
    %336 = arith.divf %334, %335 : vector<8x128xf32>
    %337 = vector.extract_strided_slice %318 {offsets = [0, 256], sizes = [8, 128], strides = [1, 1]} : vector<8x384xf32> to vector<8x128xf32>
    %338 = vector.extract_strided_slice %319 {offsets = [0, 256], sizes = [8, 128], strides = [1, 1]} : vector<8x384xf32> to vector<8x128xf32>
    %339 = arith.mulf %328, %338 : vector<8x128xf32>
    %340 = arith.addf %337, %339 : vector<8x128xf32>
    %341 = math.tanh %340 : vector<8x128xf32>
    %cst_73 = arith.constant 1.000000e+00 : f32
    %342 = vector.broadcast %cst_73 : f32 to vector<8x128xf32>
    %343 = arith.subf %342, %336 : vector<8x128xf32>
    %344 = arith.mulf %343, %341 : vector<8x128xf32>
    %345 = arith.mulf %336, %320 : vector<8x128xf32>
    %346 = arith.addf %344, %345 : vector<8x128xf32>
    %347 = vector.broadcast %311 : vector<8x1xf32> to vector<8x128xf32>
    %348 = arith.mulf %347, %346 : vector<8x128xf32>
    %cst_74 = arith.constant 1.000000e+00 : f32
    %349 = vector.broadcast %cst_74 : f32 to vector<8x1xf32>
    %350 = arith.subf %349, %311 : vector<8x1xf32>
    %351 = vector.broadcast %350 : vector<8x1xf32> to vector<8x128xf32>
    %352 = arith.mulf %351, %320 : vector<8x128xf32>
    %353 = arith.addf %348, %352 : vector<8x128xf32>
    %354 = arith.index_cast %304 : i32 to index
    %c0_75 = arith.constant 0 : index
    %c384_76 = arith.constant 384 : index
    %355 = vector.load %arg9[%354, %c0_75, %c384_76] : memref<8x8x768xf32, #tpu.memory_space<vmem>>, vector<1x8x384xf32>
    %356 = vector.shape_cast %355 : vector<1x8x384xf32> to vector<8x384xf32>
    %357 = vector.extract_strided_slice %307 {offsets = [0, 384], sizes = [8, 384], strides = [1, 1]} : vector<8x768xf32> to vector<8x384xf32>
    %358 = vector.extract_strided_slice %303 {offsets = [0, 128], sizes = [8, 128], strides = [1, 1]} : vector<8x256xf32> to vector<8x128xf32>
    %359 = vector.extract_strided_slice %356 {offsets = [0, 0], sizes = [8, 128], strides = [1, 1]} : vector<8x384xf32> to vector<8x128xf32>
    %360 = vector.extract_strided_slice %357 {offsets = [0, 0], sizes = [8, 128], strides = [1, 1]} : vector<8x384xf32> to vector<8x128xf32>
    %361 = arith.addf %359, %360 : vector<8x128xf32>
    %362 = arith.negf %361 : vector<8x128xf32>
    %363 = math.exp %362 : vector<8x128xf32>
    %cst_77 = arith.constant 1.000000e+00 : f32
    %364 = vector.broadcast %cst_77 : f32 to vector<8x128xf32>
    %365 = arith.addf %364, %363 : vector<8x128xf32>
    %366 = arith.divf %364, %365 : vector<8x128xf32>
    %367 = vector.extract_strided_slice %356 {offsets = [0, 128], sizes = [8, 128], strides = [1, 1]} : vector<8x384xf32> to vector<8x128xf32>
    %368 = vector.extract_strided_slice %357 {offsets = [0, 128], sizes = [8, 128], strides = [1, 1]} : vector<8x384xf32> to vector<8x128xf32>
    %369 = arith.addf %367, %368 : vector<8x128xf32>
    %370 = arith.negf %369 : vector<8x128xf32>
    %371 = math.exp %370 : vector<8x128xf32>
    %cst_78 = arith.constant 1.000000e+00 : f32
    %372 = vector.broadcast %cst_78 : f32 to vector<8x128xf32>
    %373 = arith.addf %372, %371 : vector<8x128xf32>
    %374 = arith.divf %372, %373 : vector<8x128xf32>
    %375 = vector.extract_strided_slice %356 {offsets = [0, 256], sizes = [8, 128], strides = [1, 1]} : vector<8x384xf32> to vector<8x128xf32>
    %376 = vector.extract_strided_slice %357 {offsets = [0, 256], sizes = [8, 128], strides = [1, 1]} : vector<8x384xf32> to vector<8x128xf32>
    %377 = arith.mulf %366, %376 : vector<8x128xf32>
    %378 = arith.addf %375, %377 : vector<8x128xf32>
    %379 = math.tanh %378 : vector<8x128xf32>
    %cst_79 = arith.constant 1.000000e+00 : f32
    %380 = vector.broadcast %cst_79 : f32 to vector<8x128xf32>
    %381 = arith.subf %380, %374 : vector<8x128xf32>
    %382 = arith.mulf %381, %379 : vector<8x128xf32>
    %383 = arith.mulf %374, %358 : vector<8x128xf32>
    %384 = arith.addf %382, %383 : vector<8x128xf32>
    %385 = vector.broadcast %315 : vector<8x1xf32> to vector<8x128xf32>
    %386 = arith.mulf %385, %384 : vector<8x128xf32>
    %cst_80 = arith.constant 1.000000e+00 : f32
    %387 = vector.broadcast %cst_80 : f32 to vector<8x1xf32>
    %388 = arith.subf %387, %315 : vector<8x1xf32>
    %389 = vector.broadcast %388 : vector<8x1xf32> to vector<8x128xf32>
    %390 = arith.mulf %389, %358 : vector<8x128xf32>
    %391 = arith.addf %386, %390 : vector<8x128xf32>
    %392 = arith.index_cast %c3_i32 : i32 to index
    %c0_81 = arith.constant 0 : index
    %c0_82 = arith.constant 0 : index
    %393 = vector.load %arg8[%392, %c0_81, %c0_82] : memref<8x8x256xf32, #tpu.memory_space<vmem>>, vector<1x8x128xf32>
    %394 = vector.shape_cast %393 : vector<1x8x128xf32> to vector<8x128xf32>
    %395 = vector.shape_cast %348 : vector<8x128xf32> to vector<1x8x128xf32>
    tpu.vector_store %arg8[%392, %c0_81, %c0_82], %395 {strides = array<i32>} : memref<8x8x256xf32, #tpu.memory_space<vmem>>, vector<1x8x128xf32>,
    %396 = arith.index_cast %304 : i32 to index
    %c0_83 = arith.constant 0 : index
    %c128_84 = arith.constant 128 : index
    %397 = vector.load %arg8[%396, %c0_83, %c128_84] : memref<8x8x256xf32, #tpu.memory_space<vmem>>, vector<1x8x128xf32>
    %398 = vector.shape_cast %397 : vector<1x8x128xf32> to vector<8x128xf32>
    %399 = vector.shape_cast %386 : vector<8x128xf32> to vector<1x8x128xf32>
    tpu.vector_store %arg8[%396, %c0_83, %c128_84], %399 {strides = array<i32>} : memref<8x8x256xf32, #tpu.memory_space<vmem>>, vector<1x8x128xf32>,
    %400 = tpu.concatenate %353, %391 in 1 : vector<8x128xf32>, vector<8x128xf32> -> vector<8x256xf32>
    %c4_i32 = arith.constant 4 : i32
    %c7_i32_85 = arith.constant 7 : i32
    %401 = arith.subi %c7_i32_85, %c4_i32 : i32
    %cst_86 = arith.constant dense<0.000000e+00> : vector<8x768xf32>
    %402 = tpu.matmul %400, %10, %cst_86 {dimension_numbers = #tpu.dot_dimension_numbers<[1], [0], [0], [1], [0, 0, 1, 1], [], []>} : vector<8x256xf32>, vector<256x768xf32>, vector<8x768xf32> -> vector<8x768xf32>
    %403 = vector.broadcast %11 : vector<1x768xf32> to vector<8x768xf32>
    %404 = arith.addf %402, %403 : vector<8x768xf32>
    %405 = vector.broadcast %c4_i32 : i32 to vector<8x1xi32>
    %406 = arith.cmpi slt, %405, %9 : vector<8x1xi32>
    %407 = arith.extui %406 : vector<8x1xi1> to vector<8x1xi32>
    %408 = arith.sitofp %407 : vector<8x1xi32> to vector<8x1xf32>
    %409 = vector.broadcast %401 : i32 to vector<8x1xi32>
    %410 = arith.cmpi slt, %409, %9 : vector<8x1xi32>
    %411 = arith.extui %410 : vector<8x1xi1> to vector<8x1xi32>
    %412 = arith.sitofp %411 : vector<8x1xi32> to vector<8x1xf32>
    %413 = arith.index_cast %c4_i32 : i32 to index
    %c0_87 = arith.constant 0 : index
    %c0_88 = arith.constant 0 : index
    %414 = vector.load %arg9[%413, %c0_87, %c0_88] : memref<8x8x768xf32, #tpu.memory_space<vmem>>, vector<1x8x384xf32>
    %415 = vector.shape_cast %414 : vector<1x8x384xf32> to vector<8x384xf32>
    %416 = vector.extract_strided_slice %404 {offsets = [0, 0], sizes = [8, 384], strides = [1, 1]} : vector<8x768xf32> to vector<8x384xf32>
    %417 = vector.extract_strided_slice %400 {offsets = [0, 0], sizes = [8, 128], strides = [1, 1]} : vector<8x256xf32> to vector<8x128xf32>
    %418 = vector.extract_strided_slice %415 {offsets = [0, 0], sizes = [8, 128], strides = [1, 1]} : vector<8x384xf32> to vector<8x128xf32>
    %419 = vector.extract_strided_slice %416 {offsets = [0, 0], sizes = [8, 128], strides = [1, 1]} : vector<8x384xf32> to vector<8x128xf32>
    %420 = arith.addf %418, %419 : vector<8x128xf32>
    %421 = arith.negf %420 : vector<8x128xf32>
    %422 = math.exp %421 : vector<8x128xf32>
    %cst_89 = arith.constant 1.000000e+00 : f32
    %423 = vector.broadcast %cst_89 : f32 to vector<8x128xf32>
    %424 = arith.addf %423, %422 : vector<8x128xf32>
    %425 = arith.divf %423, %424 : vector<8x128xf32>
    %426 = vector.extract_strided_slice %415 {offsets = [0, 128], sizes = [8, 128], strides = [1, 1]} : vector<8x384xf32> to vector<8x128xf32>
    %427 = vector.extract_strided_slice %416 {offsets = [0, 128], sizes = [8, 128], strides = [1, 1]} : vector<8x384xf32> to vector<8x128xf32>
    %428 = arith.addf %426, %427 : vector<8x128xf32>
    %429 = arith.negf %428 : vector<8x128xf32>
    %430 = math.exp %429 : vector<8x128xf32>
    %cst_90 = arith.constant 1.000000e+00 : f32
    %431 = vector.broadcast %cst_90 : f32 to vector<8x128xf32>
    %432 = arith.addf %431, %430 : vector<8x128xf32>
    %433 = arith.divf %431, %432 : vector<8x128xf32>
    %434 = vector.extract_strided_slice %415 {offsets = [0, 256], sizes = [8, 128], strides = [1, 1]} : vector<8x384xf32> to vector<8x128xf32>
    %435 = vector.extract_strided_slice %416 {offsets = [0, 256], sizes = [8, 128], strides = [1, 1]} : vector<8x384xf32> to vector<8x128xf32>
    %436 = arith.mulf %425, %435 : vector<8x128xf32>
    %437 = arith.addf %434, %436 : vector<8x128xf32>
    %438 = math.tanh %437 : vector<8x128xf32>
    %cst_91 = arith.constant 1.000000e+00 : f32
    %439 = vector.broadcast %cst_91 : f32 to vector<8x128xf32>
    %440 = arith.subf %439, %433 : vector<8x128xf32>
    %441 = arith.mulf %440, %438 : vector<8x128xf32>
    %442 = arith.mulf %433, %417 : vector<8x128xf32>
    %443 = arith.addf %441, %442 : vector<8x128xf32>
    %444 = vector.broadcast %408 : vector<8x1xf32> to vector<8x128xf32>
    %445 = arith.mulf %444, %443 : vector<8x128xf32>
    %cst_92 = arith.constant 1.000000e+00 : f32
    %446 = vector.broadcast %cst_92 : f32 to vector<8x1xf32>
    %447 = arith.subf %446, %408 : vector<8x1xf32>
    %448 = vector.broadcast %447 : vector<8x1xf32> to vector<8x128xf32>
    %449 = arith.mulf %448, %417 : vector<8x128xf32>
    %450 = arith.addf %445, %449 : vector<8x128xf32>
    %451 = arith.index_cast %401 : i32 to index
    %c0_93 = arith.constant 0 : index
    %c384_94 = arith.constant 384 : index
    %452 = vector.load %arg9[%451, %c0_93, %c384_94] : memref<8x8x768xf32, #tpu.memory_space<vmem>>, vector<1x8x384xf32>
    %453 = vector.shape_cast %452 : vector<1x8x384xf32> to vector<8x384xf32>
    %454 = vector.extract_strided_slice %404 {offsets = [0, 384], sizes = [8, 384], strides = [1, 1]} : vector<8x768xf32> to vector<8x384xf32>
    %455 = vector.extract_strided_slice %400 {offsets = [0, 128], sizes = [8, 128], strides = [1, 1]} : vector<8x256xf32> to vector<8x128xf32>
    %456 = vector.extract_strided_slice %453 {offsets = [0, 0], sizes = [8, 128], strides = [1, 1]} : vector<8x384xf32> to vector<8x128xf32>
    %457 = vector.extract_strided_slice %454 {offsets = [0, 0], sizes = [8, 128], strides = [1, 1]} : vector<8x384xf32> to vector<8x128xf32>
    %458 = arith.addf %456, %457 : vector<8x128xf32>
    %459 = arith.negf %458 : vector<8x128xf32>
    %460 = math.exp %459 : vector<8x128xf32>
    %cst_95 = arith.constant 1.000000e+00 : f32
    %461 = vector.broadcast %cst_95 : f32 to vector<8x128xf32>
    %462 = arith.addf %461, %460 : vector<8x128xf32>
    %463 = arith.divf %461, %462 : vector<8x128xf32>
    %464 = vector.extract_strided_slice %453 {offsets = [0, 128], sizes = [8, 128], strides = [1, 1]} : vector<8x384xf32> to vector<8x128xf32>
    %465 = vector.extract_strided_slice %454 {offsets = [0, 128], sizes = [8, 128], strides = [1, 1]} : vector<8x384xf32> to vector<8x128xf32>
    %466 = arith.addf %464, %465 : vector<8x128xf32>
    %467 = arith.negf %466 : vector<8x128xf32>
    %468 = math.exp %467 : vector<8x128xf32>
    %cst_96 = arith.constant 1.000000e+00 : f32
    %469 = vector.broadcast %cst_96 : f32 to vector<8x128xf32>
    %470 = arith.addf %469, %468 : vector<8x128xf32>
    %471 = arith.divf %469, %470 : vector<8x128xf32>
    %472 = vector.extract_strided_slice %453 {offsets = [0, 256], sizes = [8, 128], strides = [1, 1]} : vector<8x384xf32> to vector<8x128xf32>
    %473 = vector.extract_strided_slice %454 {offsets = [0, 256], sizes = [8, 128], strides = [1, 1]} : vector<8x384xf32> to vector<8x128xf32>
    %474 = arith.mulf %463, %473 : vector<8x128xf32>
    %475 = arith.addf %472, %474 : vector<8x128xf32>
    %476 = math.tanh %475 : vector<8x128xf32>
    %cst_97 = arith.constant 1.000000e+00 : f32
    %477 = vector.broadcast %cst_97 : f32 to vector<8x128xf32>
    %478 = arith.subf %477, %471 : vector<8x128xf32>
    %479 = arith.mulf %478, %476 : vector<8x128xf32>
    %480 = arith.mulf %471, %455 : vector<8x128xf32>
    %481 = arith.addf %479, %480 : vector<8x128xf32>
    %482 = vector.broadcast %412 : vector<8x1xf32> to vector<8x128xf32>
    %483 = arith.mulf %482, %481 : vector<8x128xf32>
    %cst_98 = arith.constant 1.000000e+00 : f32
    %484 = vector.broadcast %cst_98 : f32 to vector<8x1xf32>
    %485 = arith.subf %484, %412 : vector<8x1xf32>
    %486 = vector.broadcast %485 : vector<8x1xf32> to vector<8x128xf32>
    %487 = arith.mulf %486, %455 : vector<8x128xf32>
    %488 = arith.addf %483, %487 : vector<8x128xf32>
    %489 = arith.index_cast %c4_i32 : i32 to index
    %c0_99 = arith.constant 0 : index
    %c0_100 = arith.constant 0 : index
    %490 = vector.load %arg8[%489, %c0_99, %c0_100] : memref<8x8x256xf32, #tpu.memory_space<vmem>>, vector<1x8x128xf32>
    %491 = vector.shape_cast %490 : vector<1x8x128xf32> to vector<8x128xf32>
    %492 = vector.shape_cast %445 : vector<8x128xf32> to vector<1x8x128xf32>
    tpu.vector_store %arg8[%489, %c0_99, %c0_100], %492 {strides = array<i32>} : memref<8x8x256xf32, #tpu.memory_space<vmem>>, vector<1x8x128xf32>,
    %493 = arith.index_cast %401 : i32 to index
    %c0_101 = arith.constant 0 : index
    %c128_102 = arith.constant 128 : index
    %494 = vector.load %arg8[%493, %c0_101, %c128_102] : memref<8x8x256xf32, #tpu.memory_space<vmem>>, vector<1x8x128xf32>
    %495 = vector.shape_cast %494 : vector<1x8x128xf32> to vector<8x128xf32>
    %496 = vector.shape_cast %483 : vector<8x128xf32> to vector<1x8x128xf32>
    tpu.vector_store %arg8[%493, %c0_101, %c128_102], %496 {strides = array<i32>} : memref<8x8x256xf32, #tpu.memory_space<vmem>>, vector<1x8x128xf32>,
    %497 = tpu.concatenate %450, %488 in 1 : vector<8x128xf32>, vector<8x128xf32> -> vector<8x256xf32>
    %c5_i32 = arith.constant 5 : i32
    %c7_i32_103 = arith.constant 7 : i32
    %498 = arith.subi %c7_i32_103, %c5_i32 : i32
    %cst_104 = arith.constant dense<0.000000e+00> : vector<8x768xf32>
    %499 = tpu.matmul %497, %10, %cst_104 {dimension_numbers = #tpu.dot_dimension_numbers<[1], [0], [0], [1], [0, 0, 1, 1], [], []>} : vector<8x256xf32>, vector<256x768xf32>, vector<8x768xf32> -> vector<8x768xf32>
    %500 = vector.broadcast %11 : vector<1x768xf32> to vector<8x768xf32>
    %501 = arith.addf %499, %500 : vector<8x768xf32>
    %502 = vector.broadcast %c5_i32 : i32 to vector<8x1xi32>
    %503 = arith.cmpi slt, %502, %9 : vector<8x1xi32>
    %504 = arith.extui %503 : vector<8x1xi1> to vector<8x1xi32>
    %505 = arith.sitofp %504 : vector<8x1xi32> to vector<8x1xf32>
    %506 = vector.broadcast %498 : i32 to vector<8x1xi32>
    %507 = arith.cmpi slt, %506, %9 : vector<8x1xi32>
    %508 = arith.extui %507 : vector<8x1xi1> to vector<8x1xi32>
    %509 = arith.sitofp %508 : vector<8x1xi32> to vector<8x1xf32>
    %510 = arith.index_cast %c5_i32 : i32 to index
    %c0_105 = arith.constant 0 : index
    %c0_106 = arith.constant 0 : index
    %511 = vector.load %arg9[%510, %c0_105, %c0_106] : memref<8x8x768xf32, #tpu.memory_space<vmem>>, vector<1x8x384xf32>
    %512 = vector.shape_cast %511 : vector<1x8x384xf32> to vector<8x384xf32>
    %513 = vector.extract_strided_slice %501 {offsets = [0, 0], sizes = [8, 384], strides = [1, 1]} : vector<8x768xf32> to vector<8x384xf32>
    %514 = vector.extract_strided_slice %497 {offsets = [0, 0], sizes = [8, 128], strides = [1, 1]} : vector<8x256xf32> to vector<8x128xf32>
    %515 = vector.extract_strided_slice %512 {offsets = [0, 0], sizes = [8, 128], strides = [1, 1]} : vector<8x384xf32> to vector<8x128xf32>
    %516 = vector.extract_strided_slice %513 {offsets = [0, 0], sizes = [8, 128], strides = [1, 1]} : vector<8x384xf32> to vector<8x128xf32>
    %517 = arith.addf %515, %516 : vector<8x128xf32>
    %518 = arith.negf %517 : vector<8x128xf32>
    %519 = math.exp %518 : vector<8x128xf32>
    %cst_107 = arith.constant 1.000000e+00 : f32
    %520 = vector.broadcast %cst_107 : f32 to vector<8x128xf32>
    %521 = arith.addf %520, %519 : vector<8x128xf32>
    %522 = arith.divf %520, %521 : vector<8x128xf32>
    %523 = vector.extract_strided_slice %512 {offsets = [0, 128], sizes = [8, 128], strides = [1, 1]} : vector<8x384xf32> to vector<8x128xf32>
    %524 = vector.extract_strided_slice %513 {offsets = [0, 128], sizes = [8, 128], strides = [1, 1]} : vector<8x384xf32> to vector<8x128xf32>
    %525 = arith.addf %523, %524 : vector<8x128xf32>
    %526 = arith.negf %525 : vector<8x128xf32>
    %527 = math.exp %526 : vector<8x128xf32>
    %cst_108 = arith.constant 1.000000e+00 : f32
    %528 = vector.broadcast %cst_108 : f32 to vector<8x128xf32>
    %529 = arith.addf %528, %527 : vector<8x128xf32>
    %530 = arith.divf %528, %529 : vector<8x128xf32>
    %531 = vector.extract_strided_slice %512 {offsets = [0, 256], sizes = [8, 128], strides = [1, 1]} : vector<8x384xf32> to vector<8x128xf32>
    %532 = vector.extract_strided_slice %513 {offsets = [0, 256], sizes = [8, 128], strides = [1, 1]} : vector<8x384xf32> to vector<8x128xf32>
    %533 = arith.mulf %522, %532 : vector<8x128xf32>
    %534 = arith.addf %531, %533 : vector<8x128xf32>
    %535 = math.tanh %534 : vector<8x128xf32>
    %cst_109 = arith.constant 1.000000e+00 : f32
    %536 = vector.broadcast %cst_109 : f32 to vector<8x128xf32>
    %537 = arith.subf %536, %530 : vector<8x128xf32>
    %538 = arith.mulf %537, %535 : vector<8x128xf32>
    %539 = arith.mulf %530, %514 : vector<8x128xf32>
    %540 = arith.addf %538, %539 : vector<8x128xf32>
    %541 = vector.broadcast %505 : vector<8x1xf32> to vector<8x128xf32>
    %542 = arith.mulf %541, %540 : vector<8x128xf32>
    %cst_110 = arith.constant 1.000000e+00 : f32
    %543 = vector.broadcast %cst_110 : f32 to vector<8x1xf32>
    %544 = arith.subf %543, %505 : vector<8x1xf32>
    %545 = vector.broadcast %544 : vector<8x1xf32> to vector<8x128xf32>
    %546 = arith.mulf %545, %514 : vector<8x128xf32>
    %547 = arith.addf %542, %546 : vector<8x128xf32>
    %548 = arith.index_cast %498 : i32 to index
    %c0_111 = arith.constant 0 : index
    %c384_112 = arith.constant 384 : index
    %549 = vector.load %arg9[%548, %c0_111, %c384_112] : memref<8x8x768xf32, #tpu.memory_space<vmem>>, vector<1x8x384xf32>
    %550 = vector.shape_cast %549 : vector<1x8x384xf32> to vector<8x384xf32>
    %551 = vector.extract_strided_slice %501 {offsets = [0, 384], sizes = [8, 384], strides = [1, 1]} : vector<8x768xf32> to vector<8x384xf32>
    %552 = vector.extract_strided_slice %497 {offsets = [0, 128], sizes = [8, 128], strides = [1, 1]} : vector<8x256xf32> to vector<8x128xf32>
    %553 = vector.extract_strided_slice %550 {offsets = [0, 0], sizes = [8, 128], strides = [1, 1]} : vector<8x384xf32> to vector<8x128xf32>
    %554 = vector.extract_strided_slice %551 {offsets = [0, 0], sizes = [8, 128], strides = [1, 1]} : vector<8x384xf32> to vector<8x128xf32>
    %555 = arith.addf %553, %554 : vector<8x128xf32>
    %556 = arith.negf %555 : vector<8x128xf32>
    %557 = math.exp %556 : vector<8x128xf32>
    %cst_113 = arith.constant 1.000000e+00 : f32
    %558 = vector.broadcast %cst_113 : f32 to vector<8x128xf32>
    %559 = arith.addf %558, %557 : vector<8x128xf32>
    %560 = arith.divf %558, %559 : vector<8x128xf32>
    %561 = vector.extract_strided_slice %550 {offsets = [0, 128], sizes = [8, 128], strides = [1, 1]} : vector<8x384xf32> to vector<8x128xf32>
    %562 = vector.extract_strided_slice %551 {offsets = [0, 128], sizes = [8, 128], strides = [1, 1]} : vector<8x384xf32> to vector<8x128xf32>
    %563 = arith.addf %561, %562 : vector<8x128xf32>
    %564 = arith.negf %563 : vector<8x128xf32>
    %565 = math.exp %564 : vector<8x128xf32>
    %cst_114 = arith.constant 1.000000e+00 : f32
    %566 = vector.broadcast %cst_114 : f32 to vector<8x128xf32>
    %567 = arith.addf %566, %565 : vector<8x128xf32>
    %568 = arith.divf %566, %567 : vector<8x128xf32>
    %569 = vector.extract_strided_slice %550 {offsets = [0, 256], sizes = [8, 128], strides = [1, 1]} : vector<8x384xf32> to vector<8x128xf32>
    %570 = vector.extract_strided_slice %551 {offsets = [0, 256], sizes = [8, 128], strides = [1, 1]} : vector<8x384xf32> to vector<8x128xf32>
    %571 = arith.mulf %560, %570 : vector<8x128xf32>
    %572 = arith.addf %569, %571 : vector<8x128xf32>
    %573 = math.tanh %572 : vector<8x128xf32>
    %cst_115 = arith.constant 1.000000e+00 : f32
    %574 = vector.broadcast %cst_115 : f32 to vector<8x128xf32>
    %575 = arith.subf %574, %568 : vector<8x128xf32>
    %576 = arith.mulf %575, %573 : vector<8x128xf32>
    %577 = arith.mulf %568, %552 : vector<8x128xf32>
    %578 = arith.addf %576, %577 : vector<8x128xf32>
    %579 = vector.broadcast %509 : vector<8x1xf32> to vector<8x128xf32>
    %580 = arith.mulf %579, %578 : vector<8x128xf32>
    %cst_116 = arith.constant 1.000000e+00 : f32
    %581 = vector.broadcast %cst_116 : f32 to vector<8x1xf32>
    %582 = arith.subf %581, %509 : vector<8x1xf32>
    %583 = vector.broadcast %582 : vector<8x1xf32> to vector<8x128xf32>
    %584 = arith.mulf %583, %552 : vector<8x128xf32>
    %585 = arith.addf %580, %584 : vector<8x128xf32>
    %586 = arith.index_cast %c5_i32 : i32 to index
    %c0_117 = arith.constant 0 : index
    %c0_118 = arith.constant 0 : index
    %587 = vector.load %arg8[%586, %c0_117, %c0_118] : memref<8x8x256xf32, #tpu.memory_space<vmem>>, vector<1x8x128xf32>
    %588 = vector.shape_cast %587 : vector<1x8x128xf32> to vector<8x128xf32>
    %589 = vector.shape_cast %542 : vector<8x128xf32> to vector<1x8x128xf32>
    tpu.vector_store %arg8[%586, %c0_117, %c0_118], %589 {strides = array<i32>} : memref<8x8x256xf32, #tpu.memory_space<vmem>>, vector<1x8x128xf32>,
    %590 = arith.index_cast %498 : i32 to index
    %c0_119 = arith.constant 0 : index
    %c128_120 = arith.constant 128 : index
    %591 = vector.load %arg8[%590, %c0_119, %c128_120] : memref<8x8x256xf32, #tpu.memory_space<vmem>>, vector<1x8x128xf32>
    %592 = vector.shape_cast %591 : vector<1x8x128xf32> to vector<8x128xf32>
    %593 = vector.shape_cast %580 : vector<8x128xf32> to vector<1x8x128xf32>
    tpu.vector_store %arg8[%590, %c0_119, %c128_120], %593 {strides = array<i32>} : memref<8x8x256xf32, #tpu.memory_space<vmem>>, vector<1x8x128xf32>,
    %594 = tpu.concatenate %547, %585 in 1 : vector<8x128xf32>, vector<8x128xf32> -> vector<8x256xf32>
    %c6_i32 = arith.constant 6 : i32
    %c7_i32_121 = arith.constant 7 : i32
    %595 = arith.subi %c7_i32_121, %c6_i32 : i32
    %cst_122 = arith.constant dense<0.000000e+00> : vector<8x768xf32>
    %596 = tpu.matmul %594, %10, %cst_122 {dimension_numbers = #tpu.dot_dimension_numbers<[1], [0], [0], [1], [0, 0, 1, 1], [], []>} : vector<8x256xf32>, vector<256x768xf32>, vector<8x768xf32> -> vector<8x768xf32>
    %597 = vector.broadcast %11 : vector<1x768xf32> to vector<8x768xf32>
    %598 = arith.addf %596, %597 : vector<8x768xf32>
    %599 = vector.broadcast %c6_i32 : i32 to vector<8x1xi32>
    %600 = arith.cmpi slt, %599, %9 : vector<8x1xi32>
    %601 = arith.extui %600 : vector<8x1xi1> to vector<8x1xi32>
    %602 = arith.sitofp %601 : vector<8x1xi32> to vector<8x1xf32>
    %603 = vector.broadcast %595 : i32 to vector<8x1xi32>
    %604 = arith.cmpi slt, %603, %9 : vector<8x1xi32>
    %605 = arith.extui %604 : vector<8x1xi1> to vector<8x1xi32>
    %606 = arith.sitofp %605 : vector<8x1xi32> to vector<8x1xf32>
    %607 = arith.index_cast %c6_i32 : i32 to index
    %c0_123 = arith.constant 0 : index
    %c0_124 = arith.constant 0 : index
    %608 = vector.load %arg9[%607, %c0_123, %c0_124] : memref<8x8x768xf32, #tpu.memory_space<vmem>>, vector<1x8x384xf32>
    %609 = vector.shape_cast %608 : vector<1x8x384xf32> to vector<8x384xf32>
    %610 = vector.extract_strided_slice %598 {offsets = [0, 0], sizes = [8, 384], strides = [1, 1]} : vector<8x768xf32> to vector<8x384xf32>
    %611 = vector.extract_strided_slice %594 {offsets = [0, 0], sizes = [8, 128], strides = [1, 1]} : vector<8x256xf32> to vector<8x128xf32>
    %612 = vector.extract_strided_slice %609 {offsets = [0, 0], sizes = [8, 128], strides = [1, 1]} : vector<8x384xf32> to vector<8x128xf32>
    %613 = vector.extract_strided_slice %610 {offsets = [0, 0], sizes = [8, 128], strides = [1, 1]} : vector<8x384xf32> to vector<8x128xf32>
    %614 = arith.addf %612, %613 : vector<8x128xf32>
    %615 = arith.negf %614 : vector<8x128xf32>
    %616 = math.exp %615 : vector<8x128xf32>
    %cst_125 = arith.constant 1.000000e+00 : f32
    %617 = vector.broadcast %cst_125 : f32 to vector<8x128xf32>
    %618 = arith.addf %617, %616 : vector<8x128xf32>
    %619 = arith.divf %617, %618 : vector<8x128xf32>
    %620 = vector.extract_strided_slice %609 {offsets = [0, 128], sizes = [8, 128], strides = [1, 1]} : vector<8x384xf32> to vector<8x128xf32>
    %621 = vector.extract_strided_slice %610 {offsets = [0, 128], sizes = [8, 128], strides = [1, 1]} : vector<8x384xf32> to vector<8x128xf32>
    %622 = arith.addf %620, %621 : vector<8x128xf32>
    %623 = arith.negf %622 : vector<8x128xf32>
    %624 = math.exp %623 : vector<8x128xf32>
    %cst_126 = arith.constant 1.000000e+00 : f32
    %625 = vector.broadcast %cst_126 : f32 to vector<8x128xf32>
    %626 = arith.addf %625, %624 : vector<8x128xf32>
    %627 = arith.divf %625, %626 : vector<8x128xf32>
    %628 = vector.extract_strided_slice %609 {offsets = [0, 256], sizes = [8, 128], strides = [1, 1]} : vector<8x384xf32> to vector<8x128xf32>
    %629 = vector.extract_strided_slice %610 {offsets = [0, 256], sizes = [8, 128], strides = [1, 1]} : vector<8x384xf32> to vector<8x128xf32>
    %630 = arith.mulf %619, %629 : vector<8x128xf32>
    %631 = arith.addf %628, %630 : vector<8x128xf32>
    %632 = math.tanh %631 : vector<8x128xf32>
    %cst_127 = arith.constant 1.000000e+00 : f32
    %633 = vector.broadcast %cst_127 : f32 to vector<8x128xf32>
    %634 = arith.subf %633, %627 : vector<8x128xf32>
    %635 = arith.mulf %634, %632 : vector<8x128xf32>
    %636 = arith.mulf %627, %611 : vector<8x128xf32>
    %637 = arith.addf %635, %636 : vector<8x128xf32>
    %638 = vector.broadcast %602 : vector<8x1xf32> to vector<8x128xf32>
    %639 = arith.mulf %638, %637 : vector<8x128xf32>
    %cst_128 = arith.constant 1.000000e+00 : f32
    %640 = vector.broadcast %cst_128 : f32 to vector<8x1xf32>
    %641 = arith.subf %640, %602 : vector<8x1xf32>
    %642 = vector.broadcast %641 : vector<8x1xf32> to vector<8x128xf32>
    %643 = arith.mulf %642, %611 : vector<8x128xf32>
    %644 = arith.addf %639, %643 : vector<8x128xf32>
    %645 = arith.index_cast %595 : i32 to index
    %c0_129 = arith.constant 0 : index
    %c384_130 = arith.constant 384 : index
    %646 = vector.load %arg9[%645, %c0_129, %c384_130] : memref<8x8x768xf32, #tpu.memory_space<vmem>>, vector<1x8x384xf32>
    %647 = vector.shape_cast %646 : vector<1x8x384xf32> to vector<8x384xf32>
    %648 = vector.extract_strided_slice %598 {offsets = [0, 384], sizes = [8, 384], strides = [1, 1]} : vector<8x768xf32> to vector<8x384xf32>
    %649 = vector.extract_strided_slice %594 {offsets = [0, 128], sizes = [8, 128], strides = [1, 1]} : vector<8x256xf32> to vector<8x128xf32>
    %650 = vector.extract_strided_slice %647 {offsets = [0, 0], sizes = [8, 128], strides = [1, 1]} : vector<8x384xf32> to vector<8x128xf32>
    %651 = vector.extract_strided_slice %648 {offsets = [0, 0], sizes = [8, 128], strides = [1, 1]} : vector<8x384xf32> to vector<8x128xf32>
    %652 = arith.addf %650, %651 : vector<8x128xf32>
    %653 = arith.negf %652 : vector<8x128xf32>
    %654 = math.exp %653 : vector<8x128xf32>
    %cst_131 = arith.constant 1.000000e+00 : f32
    %655 = vector.broadcast %cst_131 : f32 to vector<8x128xf32>
    %656 = arith.addf %655, %654 : vector<8x128xf32>
    %657 = arith.divf %655, %656 : vector<8x128xf32>
    %658 = vector.extract_strided_slice %647 {offsets = [0, 128], sizes = [8, 128], strides = [1, 1]} : vector<8x384xf32> to vector<8x128xf32>
    %659 = vector.extract_strided_slice %648 {offsets = [0, 128], sizes = [8, 128], strides = [1, 1]} : vector<8x384xf32> to vector<8x128xf32>
    %660 = arith.addf %658, %659 : vector<8x128xf32>
    %661 = arith.negf %660 : vector<8x128xf32>
    %662 = math.exp %661 : vector<8x128xf32>
    %cst_132 = arith.constant 1.000000e+00 : f32
    %663 = vector.broadcast %cst_132 : f32 to vector<8x128xf32>
    %664 = arith.addf %663, %662 : vector<8x128xf32>
    %665 = arith.divf %663, %664 : vector<8x128xf32>
    %666 = vector.extract_strided_slice %647 {offsets = [0, 256], sizes = [8, 128], strides = [1, 1]} : vector<8x384xf32> to vector<8x128xf32>
    %667 = vector.extract_strided_slice %648 {offsets = [0, 256], sizes = [8, 128], strides = [1, 1]} : vector<8x384xf32> to vector<8x128xf32>
    %668 = arith.mulf %657, %667 : vector<8x128xf32>
    %669 = arith.addf %666, %668 : vector<8x128xf32>
    %670 = math.tanh %669 : vector<8x128xf32>
    %cst_133 = arith.constant 1.000000e+00 : f32
    %671 = vector.broadcast %cst_133 : f32 to vector<8x128xf32>
    %672 = arith.subf %671, %665 : vector<8x128xf32>
    %673 = arith.mulf %672, %670 : vector<8x128xf32>
    %674 = arith.mulf %665, %649 : vector<8x128xf32>
    %675 = arith.addf %673, %674 : vector<8x128xf32>
    %676 = vector.broadcast %606 : vector<8x1xf32> to vector<8x128xf32>
    %677 = arith.mulf %676, %675 : vector<8x128xf32>
    %cst_134 = arith.constant 1.000000e+00 : f32
    %678 = vector.broadcast %cst_134 : f32 to vector<8x1xf32>
    %679 = arith.subf %678, %606 : vector<8x1xf32>
    %680 = vector.broadcast %679 : vector<8x1xf32> to vector<8x128xf32>
    %681 = arith.mulf %680, %649 : vector<8x128xf32>
    %682 = arith.addf %677, %681 : vector<8x128xf32>
    %683 = arith.index_cast %c6_i32 : i32 to index
    %c0_135 = arith.constant 0 : index
    %c0_136 = arith.constant 0 : index
    %684 = vector.load %arg8[%683, %c0_135, %c0_136] : memref<8x8x256xf32, #tpu.memory_space<vmem>>, vector<1x8x128xf32>
    %685 = vector.shape_cast %684 : vector<1x8x128xf32> to vector<8x128xf32>
    %686 = vector.shape_cast %639 : vector<8x128xf32> to vector<1x8x128xf32>
    tpu.vector_store %arg8[%683, %c0_135, %c0_136], %686 {strides = array<i32>} : memref<8x8x256xf32, #tpu.memory_space<vmem>>, vector<1x8x128xf32>,
    %687 = arith.index_cast %595 : i32 to index
    %c0_137 = arith.constant 0 : index
    %c128_138 = arith.constant 128 : index
    %688 = vector.load %arg8[%687, %c0_137, %c128_138] : memref<8x8x256xf32, #tpu.memory_space<vmem>>, vector<1x8x128xf32>
    %689 = vector.shape_cast %688 : vector<1x8x128xf32> to vector<8x128xf32>
    %690 = vector.shape_cast %677 : vector<8x128xf32> to vector<1x8x128xf32>
    tpu.vector_store %arg8[%687, %c0_137, %c128_138], %690 {strides = array<i32>} : memref<8x8x256xf32, #tpu.memory_space<vmem>>, vector<1x8x128xf32>,
    %691 = tpu.concatenate %644, %682 in 1 : vector<8x128xf32>, vector<8x128xf32> -> vector<8x256xf32>
    %c7_i32_139 = arith.constant 7 : i32
    %c7_i32_140 = arith.constant 7 : i32
    %692 = arith.subi %c7_i32_140, %c7_i32_139 : i32
    %cst_141 = arith.constant dense<0.000000e+00> : vector<8x768xf32>
    %693 = tpu.matmul %691, %10, %cst_141 {dimension_numbers = #tpu.dot_dimension_numbers<[1], [0], [0], [1], [0, 0, 1, 1], [], []>} : vector<8x256xf32>, vector<256x768xf32>, vector<8x768xf32> -> vector<8x768xf32>
    %694 = vector.broadcast %11 : vector<1x768xf32> to vector<8x768xf32>
    %695 = arith.addf %693, %694 : vector<8x768xf32>
    %696 = vector.broadcast %c7_i32_139 : i32 to vector<8x1xi32>
    %697 = arith.cmpi slt, %696, %9 : vector<8x1xi32>
    %698 = arith.extui %697 : vector<8x1xi1> to vector<8x1xi32>
    %699 = arith.sitofp %698 : vector<8x1xi32> to vector<8x1xf32>
    %700 = vector.broadcast %692 : i32 to vector<8x1xi32>
    %701 = arith.cmpi slt, %700, %9 : vector<8x1xi32>
    %702 = arith.extui %701 : vector<8x1xi1> to vector<8x1xi32>
    %703 = arith.sitofp %702 : vector<8x1xi32> to vector<8x1xf32>
    %704 = arith.index_cast %c7_i32_139 : i32 to index
    %c0_142 = arith.constant 0 : index
    %c0_143 = arith.constant 0 : index
    %705 = vector.load %arg9[%704, %c0_142, %c0_143] : memref<8x8x768xf32, #tpu.memory_space<vmem>>, vector<1x8x384xf32>
    %706 = vector.shape_cast %705 : vector<1x8x384xf32> to vector<8x384xf32>
    %707 = vector.extract_strided_slice %695 {offsets = [0, 0], sizes = [8, 384], strides = [1, 1]} : vector<8x768xf32> to vector<8x384xf32>
    %708 = vector.extract_strided_slice %691 {offsets = [0, 0], sizes = [8, 128], strides = [1, 1]} : vector<8x256xf32> to vector<8x128xf32>
    %709 = vector.extract_strided_slice %706 {offsets = [0, 0], sizes = [8, 128], strides = [1, 1]} : vector<8x384xf32> to vector<8x128xf32>
    %710 = vector.extract_strided_slice %707 {offsets = [0, 0], sizes = [8, 128], strides = [1, 1]} : vector<8x384xf32> to vector<8x128xf32>
    %711 = arith.addf %709, %710 : vector<8x128xf32>
    %712 = arith.negf %711 : vector<8x128xf32>
    %713 = math.exp %712 : vector<8x128xf32>
    %cst_144 = arith.constant 1.000000e+00 : f32
    %714 = vector.broadcast %cst_144 : f32 to vector<8x128xf32>
    %715 = arith.addf %714, %713 : vector<8x128xf32>
    %716 = arith.divf %714, %715 : vector<8x128xf32>
    %717 = vector.extract_strided_slice %706 {offsets = [0, 128], sizes = [8, 128], strides = [1, 1]} : vector<8x384xf32> to vector<8x128xf32>
    %718 = vector.extract_strided_slice %707 {offsets = [0, 128], sizes = [8, 128], strides = [1, 1]} : vector<8x384xf32> to vector<8x128xf32>
    %719 = arith.addf %717, %718 : vector<8x128xf32>
    %720 = arith.negf %719 : vector<8x128xf32>
    %721 = math.exp %720 : vector<8x128xf32>
    %cst_145 = arith.constant 1.000000e+00 : f32
    %722 = vector.broadcast %cst_145 : f32 to vector<8x128xf32>
    %723 = arith.addf %722, %721 : vector<8x128xf32>
    %724 = arith.divf %722, %723 : vector<8x128xf32>
    %725 = vector.extract_strided_slice %706 {offsets = [0, 256], sizes = [8, 128], strides = [1, 1]} : vector<8x384xf32> to vector<8x128xf32>
    %726 = vector.extract_strided_slice %707 {offsets = [0, 256], sizes = [8, 128], strides = [1, 1]} : vector<8x384xf32> to vector<8x128xf32>
    %727 = arith.mulf %716, %726 : vector<8x128xf32>
    %728 = arith.addf %725, %727 : vector<8x128xf32>
    %729 = math.tanh %728 : vector<8x128xf32>
    %cst_146 = arith.constant 1.000000e+00 : f32
    %730 = vector.broadcast %cst_146 : f32 to vector<8x128xf32>
    %731 = arith.subf %730, %724 : vector<8x128xf32>
    %732 = arith.mulf %731, %729 : vector<8x128xf32>
    %733 = arith.mulf %724, %708 : vector<8x128xf32>
    %734 = arith.addf %732, %733 : vector<8x128xf32>
    %735 = vector.broadcast %699 : vector<8x1xf32> to vector<8x128xf32>
    %736 = arith.mulf %735, %734 : vector<8x128xf32>
    %cst_147 = arith.constant 1.000000e+00 : f32
    %737 = vector.broadcast %cst_147 : f32 to vector<8x1xf32>
    %738 = arith.subf %737, %699 : vector<8x1xf32>
    %739 = vector.broadcast %738 : vector<8x1xf32> to vector<8x128xf32>
    %740 = arith.mulf %739, %708 : vector<8x128xf32>
    %741 = arith.addf %736, %740 : vector<8x128xf32>
    %742 = arith.index_cast %692 : i32 to index
    %c0_148 = arith.constant 0 : index
    %c384_149 = arith.constant 384 : index
    %743 = vector.load %arg9[%742, %c0_148, %c384_149] : memref<8x8x768xf32, #tpu.memory_space<vmem>>, vector<1x8x384xf32>
    %744 = vector.shape_cast %743 : vector<1x8x384xf32> to vector<8x384xf32>
    %745 = vector.extract_strided_slice %695 {offsets = [0, 384], sizes = [8, 384], strides = [1, 1]} : vector<8x768xf32> to vector<8x384xf32>
    %746 = vector.extract_strided_slice %691 {offsets = [0, 128], sizes = [8, 128], strides = [1, 1]} : vector<8x256xf32> to vector<8x128xf32>
    %747 = vector.extract_strided_slice %744 {offsets = [0, 0], sizes = [8, 128], strides = [1, 1]} : vector<8x384xf32> to vector<8x128xf32>
    %748 = vector.extract_strided_slice %745 {offsets = [0, 0], sizes = [8, 128], strides = [1, 1]} : vector<8x384xf32> to vector<8x128xf32>
    %749 = arith.addf %747, %748 : vector<8x128xf32>
    %750 = arith.negf %749 : vector<8x128xf32>
    %751 = math.exp %750 : vector<8x128xf32>
    %cst_150 = arith.constant 1.000000e+00 : f32
    %752 = vector.broadcast %cst_150 : f32 to vector<8x128xf32>
    %753 = arith.addf %752, %751 : vector<8x128xf32>
    %754 = arith.divf %752, %753 : vector<8x128xf32>
    %755 = vector.extract_strided_slice %744 {offsets = [0, 128], sizes = [8, 128], strides = [1, 1]} : vector<8x384xf32> to vector<8x128xf32>
    %756 = vector.extract_strided_slice %745 {offsets = [0, 128], sizes = [8, 128], strides = [1, 1]} : vector<8x384xf32> to vector<8x128xf32>
    %757 = arith.addf %755, %756 : vector<8x128xf32>
    %758 = arith.negf %757 : vector<8x128xf32>
    %759 = math.exp %758 : vector<8x128xf32>
    %cst_151 = arith.constant 1.000000e+00 : f32
    %760 = vector.broadcast %cst_151 : f32 to vector<8x128xf32>
    %761 = arith.addf %760, %759 : vector<8x128xf32>
    %762 = arith.divf %760, %761 : vector<8x128xf32>
    %763 = vector.extract_strided_slice %744 {offsets = [0, 256], sizes = [8, 128], strides = [1, 1]} : vector<8x384xf32> to vector<8x128xf32>
    %764 = vector.extract_strided_slice %745 {offsets = [0, 256], sizes = [8, 128], strides = [1, 1]} : vector<8x384xf32> to vector<8x128xf32>
    %765 = arith.mulf %754, %764 : vector<8x128xf32>
    %766 = arith.addf %763, %765 : vector<8x128xf32>
    %767 = math.tanh %766 : vector<8x128xf32>
    %cst_152 = arith.constant 1.000000e+00 : f32
    %768 = vector.broadcast %cst_152 : f32 to vector<8x128xf32>
    %769 = arith.subf %768, %762 : vector<8x128xf32>
    %770 = arith.mulf %769, %767 : vector<8x128xf32>
    %771 = arith.mulf %762, %746 : vector<8x128xf32>
    %772 = arith.addf %770, %771 : vector<8x128xf32>
    %773 = vector.broadcast %703 : vector<8x1xf32> to vector<8x128xf32>
    %774 = arith.mulf %773, %772 : vector<8x128xf32>
    %cst_153 = arith.constant 1.000000e+00 : f32
    %775 = vector.broadcast %cst_153 : f32 to vector<8x1xf32>
    %776 = arith.subf %775, %703 : vector<8x1xf32>
    %777 = vector.broadcast %776 : vector<8x1xf32> to vector<8x128xf32>
    %778 = arith.mulf %777, %746 : vector<8x128xf32>
    %779 = arith.addf %774, %778 : vector<8x128xf32>
    %780 = arith.index_cast %c7_i32_139 : i32 to index
    %c0_154 = arith.constant 0 : index
    %c0_155 = arith.constant 0 : index
    %781 = vector.load %arg8[%780, %c0_154, %c0_155] : memref<8x8x256xf32, #tpu.memory_space<vmem>>, vector<1x8x128xf32>
    %782 = vector.shape_cast %781 : vector<1x8x128xf32> to vector<8x128xf32>
    %783 = vector.shape_cast %736 : vector<8x128xf32> to vector<1x8x128xf32>
    tpu.vector_store %arg8[%780, %c0_154, %c0_155], %783 {strides = array<i32>} : memref<8x8x256xf32, #tpu.memory_space<vmem>>, vector<1x8x128xf32>,
    %784 = arith.index_cast %692 : i32 to index
    %c0_156 = arith.constant 0 : index
    %c128_157 = arith.constant 128 : index
    %785 = vector.load %arg8[%784, %c0_156, %c128_157] : memref<8x8x256xf32, #tpu.memory_space<vmem>>, vector<1x8x128xf32>
    %786 = vector.shape_cast %785 : vector<1x8x128xf32> to vector<8x128xf32>
    %787 = vector.shape_cast %774 : vector<8x128xf32> to vector<1x8x128xf32>
    tpu.vector_store %arg8[%784, %c0_156, %c128_157], %787 {strides = array<i32>} : memref<8x8x256xf32, #tpu.memory_space<vmem>>, vector<1x8x128xf32>,
    %788 = tpu.concatenate %741, %779 in 1 : vector<8x128xf32>, vector<8x128xf32> -> vector<8x256xf32>
    %c8_i32 = arith.constant 8 : i32
    %c0_158 = arith.constant 0 : index
    %c0_159 = arith.constant 0 : index
    %c0_160 = arith.constant 0 : index
    %789 = vector.load %arg8[%c0_158, %c0_159, %c0_160] : memref<8x8x256xf32, #tpu.memory_space<vmem>>, vector<8x8x256xf32>
    %cst_161 = arith.constant dense<0.000000e+00> : vector<8x256xf32>
    %790 = vector.multi_reduction <add>, %789, %cst_161 [0] : vector<8x8x256xf32> to vector<8x256xf32>
    %cst_162 = arith.constant dense<0.000000e+00> : vector<256xf32>
    %791 = vector.multi_reduction <add>, %790, %cst_162 [0] : vector<8x256xf32> to vector<256xf32>
    %792 = vector.shape_cast %791 : vector<256xf32> to vector<1x256xf32>
    %793 = arith.mulf %789, %789 : vector<8x8x256xf32>
    %cst_163 = arith.constant dense<0.000000e+00> : vector<8x256xf32>
    %794 = vector.multi_reduction <add>, %793, %cst_163 [0] : vector<8x8x256xf32> to vector<8x256xf32>
    %cst_164 = arith.constant dense<0.000000e+00> : vector<256xf32>
    %795 = vector.multi_reduction <add>, %794, %cst_164 [0] : vector<8x256xf32> to vector<256xf32>
    %796 = vector.shape_cast %795 : vector<256xf32> to vector<1x256xf32>
    %cst_165 = arith.constant 6.250000e-02 : f32
    %797 = vector.broadcast %cst_165 : f32 to vector<1x256xf32>
    %798 = arith.mulf %792, %797 : vector<1x256xf32>
    %cst_166 = arith.constant 6.250000e-02 : f32
    %799 = vector.broadcast %cst_166 : f32 to vector<1x256xf32>
    %800 = arith.mulf %796, %799 : vector<1x256xf32>
    %801 = arith.mulf %798, %798 : vector<1x256xf32>
    %802 = arith.subf %800, %801 : vector<1x256xf32>
    %cst_167 = arith.constant 0.000000e+00 : f32
    %803 = vector.broadcast %cst_167 : f32 to vector<1x256xf32>
    %804 = arith.maximumf %802, %803 : vector<1x256xf32>
    %cst_168 = arith.constant 9.99999974E-6 : f32
    %805 = vector.broadcast %cst_168 : f32 to vector<1x256xf32>
    %806 = arith.addf %804, %805 : vector<1x256xf32>
    %807 = math.rsqrt %806 : vector<1x256xf32>
    %c0_169 = arith.constant 0 : index
    %c0_170 = arith.constant 0 : index
    %808 = vector.load %arg6[%c0_169, %c0_170] : memref<1x256xf32, #tpu.memory_space<vmem>>, vector<1x256xf32>
    %809 = arith.mulf %807, %808 : vector<1x256xf32>
    %c0_171 = arith.constant 0 : index
    %c0_172 = arith.constant 0 : index
    %810 = vector.load %arg7[%c0_171, %c0_172] : memref<1x256xf32, #tpu.memory_space<vmem>>, vector<1x256xf32>
    %811 = arith.mulf %798, %809 : vector<1x256xf32>
    %812 = arith.subf %810, %811 : vector<1x256xf32>
    %813 = vector.shape_cast %809 : vector<1x256xf32> to vector<1x1x256xf32>
    %814 = vector.broadcast %813 : vector<1x1x256xf32> to vector<8x8x256xf32>
    %815 = arith.mulf %789, %814 : vector<8x8x256xf32>
    %816 = vector.shape_cast %812 : vector<1x256xf32> to vector<1x1x256xf32>
    %817 = vector.broadcast %816 : vector<1x1x256xf32> to vector<8x8x256xf32>
    %818 = arith.addf %815, %817 : vector<8x8x256xf32>
    %c0_173 = arith.constant 0 : index
    %c0_174 = arith.constant 0 : index
    %c0_175 = arith.constant 0 : index
    %819 = vector.load %arg8[%c0_173, %c0_174, %c0_175] : memref<8x8x256xf32, #tpu.memory_space<vmem>>, vector<8x8x256xf32>
    tpu.vector_store %arg8[%c0_173, %c0_174, %c0_175], %818 {strides = array<i32>} : memref<8x8x256xf32, #tpu.memory_space<vmem>>, vector<8x8x256xf32>,
    return
  }
}

</mosaic_0001>

<llo_original>
// kernel: rnn_forward.1
$region0: #{rnn_forward.1}
  #allocation0 [shape = 'u32[]', space=smem, size = 0x4, offset = 0x4, fixed_abs, tag = 'smem constant byte address 0x4 - core index']
  #allocation1 [shape = 'u32[144,128]{1,0:T(1,128)}', space=vmem, size = 0x12000, scoped, tag = 'internal scratch']
  #allocation2 [shape = 'f32[8,8,768]{2,1,0:T(8,128)}', space=vmem, size = 0x30000, scoped, tag = 'scratch operand']
  %s0 = inlined_call_operand.vmem [shape: f32[8,8,128], index: 0, kind: input, shape index: {}]
  %s1 = inlined_call_operand.vmem [shape: s32[8,1], index: 1, kind: input, shape index: {}]
  %s2 = inlined_call_operand.vmem [shape: f32[128,768], index: 2, kind: input, shape index: {}]
  %s3 = inlined_call_operand.vmem [shape: f32[1,768], index: 3, kind: input, shape index: {}]
  %s4 = inlined_call_operand.vmem [shape: f32[256,768], index: 4, kind: input, shape index: {}]
  %s5 = inlined_call_operand.vmem [shape: f32[1,768], index: 5, kind: input, shape index: {}]
  %s6 = inlined_call_operand.vmem [shape: f32[1,256], index: 6, kind: input, shape index: {}]
  %s7 = inlined_call_operand.vmem [shape: f32[1,256], index: 7, kind: input, shape index: {}]
  %s8 = inlined_call_operand.vmem [shape: f32[8,8,256], index: 8, kind: output, shape index: {}]
  %s9 = sld [smem:[#allocation0]]
  $region42: #{rnn_forward.1} parent=0
    _
  %s11 = ssub.s32 1, %s9
  %s12 = scalar_select 0, %s11, %s9
  // Predicated region
  $region2: #{rnn_forward.1} parent=0 // pred_check
    _
  $region3: #{rnn_forward.1} parent=0 // pred_check_branch
    %14 = sbr.rel (0) target = $region5
  $region4: #{rnn_forward.1} parent=0 // pred_region
    _
  $region5: #{rnn_forward.1} parent=0 // pred_fallthru
    _
  // Predicated region
  $region6: #{rnn_forward.1} parent=0 // pred_check
    _
  $region7: #{rnn_forward.1} parent=0 // pred_check_branch
    %16 = sbr.rel (0) target = $region9
  $region8: #{rnn_forward.1} parent=0 // pred_region
    _
  $region9: #{rnn_forward.1} parent=0 // pred_fallthru
    _
  // Predicated region
  $region10: #{rnn_forward.1} parent=0 // pred_check
    _
  $region11: #{rnn_forward.1} parent=0 // pred_check_branch
    %18 = sbr.rel (0) target = $region13
  $region12: #{rnn_forward.1} parent=0 // pred_region
    _
  $region13: #{rnn_forward.1} parent=0 // pred_fallthru
    _
  // Predicated region
  $region14: #{rnn_forward.1} parent=0 // pred_check
    _
  $region15: #{rnn_forward.1} parent=0 // pred_check_branch
    %20 = sbr.rel (0) target = $region17
  $region16: #{rnn_forward.1} parent=0 // pred_region
    _
  $region17: #{rnn_forward.1} parent=0 // pred_fallthru
    _
  // Predicated region
  $region18: #{rnn_forward.1} parent=0 // pred_check
    _
  $region19: #{rnn_forward.1} parent=0 // pred_check_branch
    %22 = sbr.rel (0) target = $region21
  $region20: #{rnn_forward.1} parent=0 // pred_region
    _
  $region21: #{rnn_forward.1} parent=0 // pred_fallthru
    _
  // Predicated region
  $region22: #{rnn_forward.1} parent=0 // pred_check
    _
  $region23: #{rnn_forward.1} parent=0 // pred_check_branch
    %24 = sbr.rel (0) target = $region25
  $region24: #{rnn_forward.1} parent=0 // pred_region
    _
  $region25: #{rnn_forward.1} parent=0 // pred_fallthru
    _
  // Predicated region
  $region26: #{rnn_forward.1} parent=0 // pred_check
    _
  $region27: #{rnn_forward.1} parent=0 // pred_check_branch
    %26 = sbr.rel (0) target = $region29
  $region28: #{rnn_forward.1} parent=0 // pred_region
    _
  $region29: #{rnn_forward.1} parent=0 // pred_fallthru
    _
  // Predicated region
  $region30: #{rnn_forward.1} parent=0 // pred_check
    _
  $region31: #{rnn_forward.1} parent=0 // pred_check_branch
    %28 = sbr.rel (0) target = $region33
  $region32: #{rnn_forward.1} parent=0 // pred_region
    _
  $region33: #{rnn_forward.1} parent=0 // pred_fallthru
    _
  %v29 = vld [vmem:[%s0] sm:$0xff]
  %v30 = vld [vmem:[%s0 + $0x8] sm:$0xff]
  %v31 = vld [vmem:[%s0 + $0x10] sm:$0xff]
  %v32 = vld [vmem:[%s0 + $0x18] sm:$0xff]
  %v33 = vld [vmem:[%s0 + $0x20] sm:$0xff]
  %v34 = vld [vmem:[%s0 + $0x28] sm:$0xff]
  %v35 = vld [vmem:[%s0 + $0x30] sm:$0xff]
  %v36 = vld [vmem:[%s0 + $0x38] sm:$0xff]
  %v37 = vld [vmem:[%s2] sm:$0xff]
  %v38 = vld [vmem:[%s2 + $0x8] sm:$0xff]
  %v39 = vld [vmem:[%s2 + $0x10] sm:$0xff]
  %v40 = vld [vmem:[%s2 + $0x18] sm:$0xff]
  %v41 = vld [vmem:[%s2 + $0x20] sm:$0xff]
  %v42 = vld [vmem:[%s2 + $0x28] sm:$0xff]
  %v43 = vld [vmem:[%s2 + $0x30] sm:$0xff]
  %v44 = vld [vmem:[%s2 + $0x38] sm:$0xff]
  %v45 = vld [vmem:[%s2 + $0x40] sm:$0xff]
  %v46 = vld [vmem:[%s2 + $0x48] sm:$0xff]
  %v47 = vld [vmem:[%s2 + $0x50] sm:$0xff]
  %v48 = vld [vmem:[%s2 + $0x58] sm:$0xff]
  %v49 = vld [vmem:[%s2 + $0x60] sm:$0xff]
  %v50 = vld [vmem:[%s2 + $0x68] sm:$0xff]
  %v51 = vld [vmem:[%s2 + $0x70] sm:$0xff]
  %v52 = vld [vmem:[%s2 + $0x78] sm:$0xff]
  %v53 = vld [vmem:[%s2 + $0x80] sm:$0xff]
  %v54 = vld [vmem:[%s2 + $0x88] sm:$0xff]
  %v55 = vld [vmem:[%s2 + $0x90] sm:$0xff]
  %v56 = vld [vmem:[%s2 + $0x98] sm:$0xff]
  %v57 = vld [vmem:[%s2 + $0xa0] sm:$0xff]
  %v58 = vld [vmem:[%s2 + $0xa8] sm:$0xff]
  %v59 = vld [vmem:[%s2 + $0xb0] sm:$0xff]
  %v60 = vld [vmem:[%s2 + $0xb8] sm:$0xff]
  %v61 = vld [vmem:[%s2 + $0xc0] sm:$0xff]
  %v62 = vld [vmem:[%s2 + $0xc8] sm:$0xff]
  %v63 = vld [vmem:[%s2 + $0xd0] sm:$0xff]
  %v64 = vld [vmem:[%s2 + $0xd8] sm:$0xff]
  %v65 = vld [vmem:[%s2 + $0xe0] sm:$0xff]
  %v66 = vld [vmem:[%s2 + $0xe8] sm:$0xff]
  %v67 = vld [vmem:[%s2 + $0xf0] sm:$0xff]
  %v68 = vld [vmem:[%s2 + $0xf8] sm:$0xff]
  %v69 = vld [vmem:[%s2 + $0x100] sm:$0xff]
  %v70 = vld [vmem:[%s2 + $0x108] sm:$0xff]
  %v71 = vld [vmem:[%s2 + $0x110] sm:$0xff]
  %v72 = vld [vmem:[%s2 + $0x118] sm:$0xff]
  %v73 = vld [vmem:[%s2 + $0x120] sm:$0xff]
  %v74 = vld [vmem:[%s2 + $0x128] sm:$0xff]
  %v75 = vld [vmem:[%s2 + $0x130] sm:$0xff]
  %v76 = vld [vmem:[%s2 + $0x138] sm:$0xff]
  %v77 = vld [vmem:[%s2 + $0x140] sm:$0xff]
  %v78 = vld [vmem:[%s2 + $0x148] sm:$0xff]
  %v79 = vld [vmem:[%s2 + $0x150] sm:$0xff]
  %v80 = vld [vmem:[%s2 + $0x158] sm:$0xff]
  %v81 = vld [vmem:[%s2 + $0x160] sm:$0xff]
  %v82 = vld [vmem:[%s2 + $0x168] sm:$0xff]
  %v83 = vld [vmem:[%s2 + $0x170] sm:$0xff]
  %v84 = vld [vmem:[%s2 + $0x178] sm:$0xff]
  %v85 = vld [vmem:[%s2 + $0x180] sm:$0xff]
  %v86 = vld [vmem:[%s2 + $0x188] sm:$0xff]
  %v87 = vld [vmem:[%s2 + $0x190] sm:$0xff]
  %v88 = vld [vmem:[%s2 + $0x198] sm:$0xff]
  %v89 = vld [vmem:[%s2 + $0x1a0] sm:$0xff]
  %v90 = vld [vmem:[%s2 + $0x1a8] sm:$0xff]
  %v91 = vld [vmem:[%s2 + $0x1b0] sm:$0xff]
  %v92 = vld [vmem:[%s2 + $0x1b8] sm:$0xff]
  %v93 = vld [vmem:[%s2 + $0x1c0] sm:$0xff]
  %v94 = vld [vmem:[%s2 + $0x1c8] sm:$0xff]
  %v95 = vld [vmem:[%s2 + $0x1d0] sm:$0xff]
  %v96 = vld [vmem:[%s2 + $0x1d8] sm:$0xff]
  %v97 = vld [vmem:[%s2 + $0x1e0] sm:$0xff]
  %v98 = vld [vmem:[%s2 + $0x1e8] sm:$0xff]
  %v99 = vld [vmem:[%s2 + $0x1f0] sm:$0xff]
  %v100 = vld [vmem:[%s2 + $0x1f8] sm:$0xff]
  %v101 = vld [vmem:[%s2 + $0x200] sm:$0xff]
  %v102 = vld [vmem:[%s2 + $0x208] sm:$0xff]
  %v103 = vld [vmem:[%s2 + $0x210] sm:$0xff]
  %v104 = vld [vmem:[%s2 + $0x218] sm:$0xff]
  %v105 = vld [vmem:[%s2 + $0x220] sm:$0xff]
  %v106 = vld [vmem:[%s2 + $0x228] sm:$0xff]
  %v107 = vld [vmem:[%s2 + $0x230] sm:$0xff]
  %v108 = vld [vmem:[%s2 + $0x238] sm:$0xff]
  %v109 = vld [vmem:[%s2 + $0x240] sm:$0xff]
  %v110 = vld [vmem:[%s2 + $0x248] sm:$0xff]
  %v111 = vld [vmem:[%s2 + $0x250] sm:$0xff]
  %v112 = vld [vmem:[%s2 + $0x258] sm:$0xff]
  %v113 = vld [vmem:[%s2 + $0x260] sm:$0xff]
  %v114 = vld [vmem:[%s2 + $0x268] sm:$0xff]
  %v115 = vld [vmem:[%s2 + $0x270] sm:$0xff]
  %v116 = vld [vmem:[%s2 + $0x278] sm:$0xff]
  %v117 = vld [vmem:[%s2 + $0x280] sm:$0xff]
  %v118 = vld [vmem:[%s2 + $0x288] sm:$0xff]
  %v119 = vld [vmem:[%s2 + $0x290] sm:$0xff]
  %v120 = vld [vmem:[%s2 + $0x298] sm:$0xff]
  %v121 = vld [vmem:[%s2 + $0x2a0] sm:$0xff]
  %v122 = vld [vmem:[%s2 + $0x2a8] sm:$0xff]
  %v123 = vld [vmem:[%s2 + $0x2b0] sm:$0xff]
  %v124 = vld [vmem:[%s2 + $0x2b8] sm:$0xff]
  %v125 = vld [vmem:[%s2 + $0x2c0] sm:$0xff]
  %v126 = vld [vmem:[%s2 + $0x2c8] sm:$0xff]
  %v127 = vld [vmem:[%s2 + $0x2d0] sm:$0xff]
  %v128 = vld [vmem:[%s2 + $0x2d8] sm:$0xff]
  %v129 = vld [vmem:[%s2 + $0x2e0] sm:$0xff]
  %v130 = vld [vmem:[%s2 + $0x2e8] sm:$0xff]
  %v131 = vld [vmem:[%s2 + $0x2f0] sm:$0xff]
  %v132 = vld [vmem:[%s2 + $0x2f8] sm:$0xff]
  %v133 = vld [vmem:[%s3] sm:$0x3f]
  %v135 = vlaneseq
  %v136 = vshrl.u32 %v135, 7
  %v137 = vsub.s32 0, %v136
  %v138 = vrot.slane %v133, %v137
  %v139 = vlaneseq
  %v140 = vshrl.u32 %v139, 7
  %v141 = vsub.s32 1, %v140
  %v142 = vrot.slane %v133, %v141
  %v143 = vlaneseq
  %v144 = vshrl.u32 %v143, 7
  %v145 = vsub.s32 2, %v144
  %v146 = vrot.slane %v133, %v145
  %v147 = vlaneseq
  %v148 = vshrl.u32 %v147, 7
  %v149 = vsub.s32 3, %v148
  %v150 = vrot.slane %v133, %v149
  %v151 = vlaneseq
  %v152 = vshrl.u32 %v151, 7
  %v153 = vsub.s32 4, %v152
  %v154 = vrot.slane %v133, %v153
  %v155 = vlaneseq
  %v156 = vshrl.u32 %v155, 7
  %v157 = vsub.s32 5, %v156
  %v158 = vrot.slane %v133, %v157
  %165 = vmatprep.subr.mxu0 %v128
  %166 = vmatpush1.msra.mxu0 %v127
  %167 = vmatprep.subr.mxu0 %v122
  %168 = vmatpush1.msra.mxu0 %v121
  %169 = vmatprep.subr.mxu0 %v116
  %170 = vmatpush1.msra.mxu0 %v115
  %171 = vmatprep.subr.mxu0 %v110
  %172 = vmatpush1.msra.mxu0 %v109
  %173 = vmatprep.subr.mxu0 %v104
  %174 = vmatpush1.msra.mxu0 %v103
  %175 = vmatprep.subr.mxu0 %v98
  %176 = vmatpush1.msra.mxu0 %v97
  %177 = vmatprep.subr.mxu0 %v92
  %178 = vmatpush1.msra.mxu0 %v91
  %179 = vmatprep.subr.mxu0 %v86
  %180 = vmatpush1.msra.mxu0 %v85
  %181 = vmatprep.subr.mxu0 %v80
  %182 = vmatpush1.msra.mxu0 %v79
  %183 = vmatprep.subr.mxu0 %v74
  %184 = vmatpush1.msra.mxu0 %v73
  %185 = vmatprep.subr.mxu0 %v68
  %186 = vmatpush1.msra.mxu0 %v67
  %187 = vmatprep.subr.mxu0 %v62
  %188 = vmatpush1.msra.mxu0 %v61
  %189 = vmatprep.subr.mxu0 %v56
  %190 = vmatpush1.msra.mxu0 %v55
  %191 = vmatprep.subr.mxu0 %v50
  %192 = vmatpush1.msra.mxu0 %v49
  %193 = vmatprep.subr.mxu0 %v44
  %194 = vmatpush1.msra.mxu0 %v43
  %195 = vmatprep.subr.mxu0 %v38
  %196 = vmatpush1.msra.mxu0 %v37
  %197 = vmatprep.subr.mxu0 0.0
  %198 = vmatpush2.msra.mxu0 0.0
  %199 = vmatprep.subr.mxu0 0.0
  %200 = vmatpush2.msra.mxu0 0.0
  %201 = vmatprep.subr.mxu0 0.0
  %202 = vmatpush2.msra.mxu0 0.0
  %203 = vmatprep.subr.mxu0 0.0
  %204 = vmatpush2.msra.mxu0 0.0
  %205 = vmatprep.subr.mxu0 0.0
  %206 = vmatpush2.msra.mxu0 0.0
  %207 = vmatprep.subr.mxu0 0.0
  %208 = vmatpush2.msra.mxu0 0.0
  %209 = vmatprep.subr.mxu0 0.0
  %210 = vmatpush2.msra.mxu0 0.0
  %211 = vmatprep.subr.mxu0 0.0
  %212 = vmatpush2.msra.mxu0 0.0
  %213 = vmatprep.subr.mxu0 0.0
  %214 = vmatpush2.msra.mxu0 0.0
  %215 = vmatprep.subr.mxu0 0.0
  %216 = vmatpush2.msra.mxu0 0.0
  %217 = vmatprep.subr.mxu0 0.0
  %218 = vmatpush2.msra.mxu0 0.0
  %219 = vmatprep.subr.mxu0 0.0
  %220 = vmatpush2.msra.mxu0 0.0
  %221 = vmatprep.subr.mxu0 0.0
  %222 = vmatpush2.msra.mxu0 0.0
  %223 = vmatprep.subr.mxu0 0.0
  %224 = vmatpush2.msra.mxu0 0.0
  %225 = vmatprep.subr.mxu0 0.0
  %226 = vmatpush2.msra.mxu0 0.0
  %227 = vmatprep.subr.mxu0 0.0
  %228 = vmatpush2.msra.mxu0 0.0
  %229 = vmatprep.mubr.f32.mxu0 0.0
  %230 = vmatmul.mubr.f32.gmra.mxu0 %v29
  %v231 = vpop.f32.mrf.mxu0
  %v232 = vadd.f32 %v138, %v231
  %v233 = vpop.f32.mrf.mxu0
  %v234 = vadd.f32 %v142, %v233
  %235 = vmatprep.mubr.f32.mxu0 0.0
  %236 = vmatmul.mubr.f32.gmra.mxu0 %v30
  %v237 = vpop.f32.mrf.mxu0
  %v238 = vadd.f32 %v138, %v237
  %v239 = vpop.f32.mrf.mxu0
  %v240 = vadd.f32 %v142, %v239
  %241 = vmatprep.mubr.f32.mxu0 0.0
  %242 = vmatmul.mubr.f32.gmra.mxu0 %v31
  %v243 = vpop.f32.mrf.mxu0
  %v244 = vadd.f32 %v138, %v243
  %v245 = vpop.f32.mrf.mxu0
  %v246 = vadd.f32 %v142, %v245
  %247 = vmatprep.mubr.f32.mxu0 0.0
  %248 = vmatmul.mubr.f32.gmra.mxu0 %v32
  %v249 = vpop.f32.mrf.mxu0
  %v250 = vadd.f32 %v138, %v249
  %v251 = vpop.f32.mrf.mxu0
  %v252 = vadd.f32 %v142, %v251
  %253 = vmatprep.mubr.f32.mxu0 0.0
  %254 = vmatmul.mubr.f32.gmra.mxu0 %v33
  %v255 = vpop.f32.mrf.mxu0
  %v256 = vadd.f32 %v138, %v255
  %v257 = vpop.f32.mrf.mxu0
  %v258 = vadd.f32 %v142, %v257
  %259 = vmatprep.mubr.f32.mxu0 0.0
  %260 = vmatmul.mubr.f32.gmra.mxu0 %v34
  %v261 = vpop.f32.mrf.mxu0
  %v262 = vadd.f32 %v138, %v261
  %v263 = vpop.f32.mrf.mxu0
  %v264 = vadd.f32 %v142, %v263
  %265 = vmatprep.mubr.f32.mxu0 0.0
  %266 = vmatmul.mubr.f32.gmra.mxu0 %v35
  %v267 = vpop.f32.mrf.mxu0
  %v268 = vadd.f32 %v138, %v267
  %v269 = vpop.f32.mrf.mxu0
  %v270 = vadd.f32 %v142, %v269
  %271 = vmatprep.mubr.f32.mxu0 0.0
  %272 = vmatmul.mubr.f32.gmra.mxu0 %v36
  %v273 = vpop.f32.mrf.mxu0
  %v274 = vadd.f32 %v138, %v273
  %v275 = vpop.f32.mrf.mxu0
  %v276 = vadd.f32 %v142, %v275
  %277 = vdwg.mxu0
  %278 = vmatprep.subr.mxu0 %v130
  %279 = vmatpush1.msra.mxu0 %v129
  %280 = vmatprep.subr.mxu0 %v124
  %281 = vmatpush1.msra.mxu0 %v123
  %282 = vmatprep.subr.mxu0 %v118
  %283 = vmatpush1.msra.mxu0 %v117
  %284 = vmatprep.subr.mxu0 %v112
  %285 = vmatpush1.msra.mxu0 %v111
  %286 = vmatprep.subr.mxu0 %v106
  %287 = vmatpush1.msra.mxu0 %v105
  %288 = vmatprep.subr.mxu0 %v100
  %289 = vmatpush1.msra.mxu0 %v99
  %290 = vmatprep.subr.mxu0 %v94
  %291 = vmatpush1.msra.mxu0 %v93
  %292 = vmatprep.subr.mxu0 %v88
  %293 = vmatpush1.msra.mxu0 %v87
  %294 = vmatprep.subr.mxu0 %v82
  %295 = vmatpush1.msra.mxu0 %v81
  %296 = vmatprep.subr.mxu0 %v76
  %297 = vmatpush1.msra.mxu0 %v75
  %298 = vmatprep.subr.mxu0 %v70
  %299 = vmatpush1.msra.mxu0 %v69
  %300 = vmatprep.subr.mxu0 %v64
  %301 = vmatpush1.msra.mxu0 %v63
  %302 = vmatprep.subr.mxu0 %v58
  %303 = vmatpush1.msra.mxu0 %v57
  %304 = vmatprep.subr.mxu0 %v52
  %305 = vmatpush1.msra.mxu0 %v51
  %306 = vmatprep.subr.mxu0 %v46
  %307 = vmatpush1.msra.mxu0 %v45
  %308 = vmatprep.subr.mxu0 %v40
  %309 = vmatpush1.msra.mxu0 %v39
  %310 = vmatprep.subr.mxu0 0.0
  %311 = vmatpush2.msra.mxu0 0.0
  %312 = vmatprep.subr.mxu0 0.0
  %313 = vmatpush2.msra.mxu0 0.0
  %314 = vmatprep.subr.mxu0 0.0
  %315 = vmatpush2.msra.mxu0 0.0
  %316 = vmatprep.subr.mxu0 0.0
  %317 = vmatpush2.msra.mxu0 0.0
  %318 = vmatprep.subr.mxu0 0.0
  %319 = vmatpush2.msra.mxu0 0.0
  %320 = vmatprep.subr.mxu0 0.0
  %321 = vmatpush2.msra.mxu0 0.0
  %322 = vmatprep.subr.mxu0 0.0
  %323 = vmatpush2.msra.mxu0 0.0
  %324 = vmatprep.subr.mxu0 0.0
  %325 = vmatpush2.msra.mxu0 0.0
  %326 = vmatprep.subr.mxu0 0.0
  %327 = vmatpush2.msra.mxu0 0.0
  %328 = vmatprep.subr.mxu0 0.0
  %329 = vmatpush2.msra.mxu0 0.0
  %330 = vmatprep.subr.mxu0 0.0
  %331 = vmatpush2.msra.mxu0 0.0
  %332 = vmatprep.subr.mxu0 0.0
  %333 = vmatpush2.msra.mxu0 0.0
  %334 = vmatprep.subr.mxu0 0.0
  %335 = vmatpush2.msra.mxu0 0.0
  %336 = vmatprep.subr.mxu0 0.0
  %337 = vmatpush2.msra.mxu0 0.0
  %338 = vmatprep.subr.mxu0 0.0
  %339 = vmatpush2.msra.mxu0 0.0
  %340 = vmatprep.subr.mxu0 0.0
  %341 = vmatpush2.msra.mxu0 0.0
  %342 = vmatprep.mubr.f32.mxu0 0.0
  %343 = vmatmul.mubr.f32.gmra.mxu0 %v29
  %v344 = vpop.f32.mrf.mxu0
  %v345 = vadd.f32 %v146, %v344
  %v346 = vpop.f32.mrf.mxu0
  %v347 = vadd.f32 %v150, %v346
  %348 = vmatprep.mubr.f32.mxu0 0.0
  %349 = vmatmul.mubr.f32.gmra.mxu0 %v30
  %v350 = vpop.f32.mrf.mxu0
  %v351 = vadd.f32 %v146, %v350
  %v352 = vpop.f32.mrf.mxu0
  %v353 = vadd.f32 %v150, %v352
  %354 = vmatprep.mubr.f32.mxu0 0.0
  %355 = vmatmul.mubr.f32.gmra.mxu0 %v31
  %v356 = vpop.f32.mrf.mxu0
  %v357 = vadd.f32 %v146, %v356
  %v358 = vpop.f32.mrf.mxu0
  %v359 = vadd.f32 %v150, %v358
  %360 = vmatprep.mubr.f32.mxu0 0.0
  %361 = vmatmul.mubr.f32.gmra.mxu0 %v32
  %v362 = vpop.f32.mrf.mxu0
  %v363 = vadd.f32 %v146, %v362
  %v364 = vpop.f32.mrf.mxu0
  %v365 = vadd.f32 %v150, %v364
  %366 = vmatprep.mubr.f32.mxu0 0.0
  %367 = vmatmul.mubr.f32.gmra.mxu0 %v33
  %v368 = vpop.f32.mrf.mxu0
  %v369 = vadd.f32 %v146, %v368
  %v370 = vpop.f32.mrf.mxu0
  %v371 = vadd.f32 %v150, %v370
  %372 = vmatprep.mubr.f32.mxu0 0.0
  %373 = vmatmul.mubr.f32.gmra.mxu0 %v34
  %v374 = vpop.f32.mrf.mxu0
  %v375 = vadd.f32 %v146, %v374
  %v376 = vpop.f32.mrf.mxu0
  %v377 = vadd.f32 %v150, %v376
  %378 = vmatprep.mubr.f32.mxu0 0.0
  %379 = vmatmul.mubr.f32.gmra.mxu0 %v35
  %v380 = vpop.f32.mrf.mxu0
  %v381 = vadd.f32 %v146, %v380
  %v382 = vpop.f32.mrf.mxu0
  %v383 = vadd.f32 %v150, %v382
  %384 = vmatprep.mubr.f32.mxu0 0.0
  %385 = vmatmul.mubr.f32.gmra.mxu0 %v36
  %v386 = vpop.f32.mrf.mxu0
  %v387 = vadd.f32 %v146, %v386
  %v388 = vpop.f32.mrf.mxu0
  %v389 = vadd.f32 %v150, %v388
  %390 = vdwg.mxu0
  %391 = vmatprep.subr.mxu0 %v132
  %392 = vmatpush1.msra.mxu0 %v131
  %393 = vmatprep.subr.mxu0 %v126
  %394 = vmatpush1.msra.mxu0 %v125
  %395 = vmatprep.subr.mxu0 %v120
  %396 = vmatpush1.msra.mxu0 %v119
  %397 = vmatprep.subr.mxu0 %v114
  %398 = vmatpush1.msra.mxu0 %v113
  %399 = vmatprep.subr.mxu0 %v108
  %400 = vmatpush1.msra.mxu0 %v107
  %401 = vmatprep.subr.mxu0 %v102
  %402 = vmatpush1.msra.mxu0 %v101
  %403 = vmatprep.subr.mxu0 %v96
  %404 = vmatpush1.msra.mxu0 %v95
  %405 = vmatprep.subr.mxu0 %v90
  %406 = vmatpush1.msra.mxu0 %v89
  %407 = vmatprep.subr.mxu0 %v84
  %408 = vmatpush1.msra.mxu0 %v83
  %409 = vmatprep.subr.mxu0 %v78
  %410 = vmatpush1.msra.mxu0 %v77
  %411 = vmatprep.subr.mxu0 %v72
  %412 = vmatpush1.msra.mxu0 %v71
  %413 = vmatprep.subr.mxu0 %v66
  %414 = vmatpush1.msra.mxu0 %v65
  %415 = vmatprep.subr.mxu0 %v60
  %416 = vmatpush1.msra.mxu0 %v59
  %417 = vmatprep.subr.mxu0 %v54
  %418 = vmatpush1.msra.mxu0 %v53
  %419 = vmatprep.subr.mxu0 %v48
  %420 = vmatpush1.msra.mxu0 %v47
  %421 = vmatprep.subr.mxu0 %v42
  %422 = vmatpush1.msra.mxu0 %v41
  %423 = vmatprep.subr.mxu0 0.0
  %424 = vmatpush2.msra.mxu0 0.0
  %425 = vmatprep.subr.mxu0 0.0
  %426 = vmatpush2.msra.mxu0 0.0
  %427 = vmatprep.subr.mxu0 0.0
  %428 = vmatpush2.msra.mxu0 0.0
  %429 = vmatprep.subr.mxu0 0.0
  %430 = vmatpush2.msra.mxu0 0.0
  %431 = vmatprep.subr.mxu0 0.0
  %432 = vmatpush2.msra.mxu0 0.0
  %433 = vmatprep.subr.mxu0 0.0
  %434 = vmatpush2.msra.mxu0 0.0
  %435 = vmatprep.subr.mxu0 0.0
  %436 = vmatpush2.msra.mxu0 0.0
  %437 = vmatprep.subr.mxu0 0.0
  %438 = vmatpush2.msra.mxu0 0.0
  %439 = vmatprep.subr.mxu0 0.0
  %440 = vmatpush2.msra.mxu0 0.0
  %441 = vmatprep.subr.mxu0 0.0
  %442 = vmatpush2.msra.mxu0 0.0
  %443 = vmatprep.subr.mxu0 0.0
  %444 = vmatpush2.msra.mxu0 0.0
  %445 = vmatprep.subr.mxu0 0.0
  %446 = vmatpush2.msra.mxu0 0.0
  %447 = vmatprep.subr.mxu0 0.0
  %448 = vmatpush2.msra.mxu0 0.0
  %449 = vmatprep.subr.mxu0 0.0
  %450 = vmatpush2.msra.mxu0 0.0
  %451 = vmatprep.subr.mxu0 0.0
  %452 = vmatpush2.msra.mxu0 0.0
  %453 = vmatprep.subr.mxu0 0.0
  %454 = vmatpush2.msra.mxu0 0.0
  %455 = vmatprep.mubr.f32.mxu0 0.0
  %456 = vmatmul.mubr.f32.gmra.mxu0 %v29
  %v457 = vpop.f32.mrf.mxu0
  %v458 = vadd.f32 %v154, %v457
  %v459 = vpop.f32.mrf.mxu0
  %v460 = vadd.f32 %v158, %v459
  %461 = vmatprep.mubr.f32.mxu0 0.0
  %462 = vmatmul.mubr.f32.gmra.mxu0 %v30
  %v463 = vpop.f32.mrf.mxu0
  %v464 = vadd.f32 %v154, %v463
  %v465 = vpop.f32.mrf.mxu0
  %v466 = vadd.f32 %v158, %v465
  %467 = vmatprep.mubr.f32.mxu0 0.0
  %468 = vmatmul.mubr.f32.gmra.mxu0 %v31
  %v469 = vpop.f32.mrf.mxu0
  %v470 = vadd.f32 %v154, %v469
  %v471 = vpop.f32.mrf.mxu0
  %v472 = vadd.f32 %v158, %v471
  %473 = vmatprep.mubr.f32.mxu0 0.0
  %474 = vmatmul.mubr.f32.gmra.mxu0 %v32
  %v475 = vpop.f32.mrf.mxu0
  %v476 = vadd.f32 %v154, %v475
  %v477 = vpop.f32.mrf.mxu0
  %v478 = vadd.f32 %v158, %v477
  %479 = vmatprep.mubr.f32.mxu0 0.0
  %480 = vmatmul.mubr.f32.gmra.mxu0 %v33
  %v481 = vpop.f32.mrf.mxu0
  %v482 = vadd.f32 %v154, %v481
  %v483 = vpop.f32.mrf.mxu0
  %v484 = vadd.f32 %v158, %v483
  %485 = vmatprep.mubr.f32.mxu0 0.0
  %486 = vmatmul.mubr.f32.gmra.mxu0 %v34
  %v487 = vpop.f32.mrf.mxu0
  %v488 = vadd.f32 %v154, %v487
  %v489 = vpop.f32.mrf.mxu0
  %v490 = vadd.f32 %v158, %v489
  %491 = vmatprep.mubr.f32.mxu0 0.0
  %492 = vmatmul.mubr.f32.gmra.mxu0 %v35
  %v493 = vpop.f32.mrf.mxu0
  %v494 = vadd.f32 %v154, %v493
  %v495 = vpop.f32.mrf.mxu0
  %v496 = vadd.f32 %v158, %v495
  %497 = vmatprep.mubr.f32.mxu0 0.0
  %498 = vmatmul.mubr.f32.gmra.mxu0 %v36
  %v499 = vpop.f32.mrf.mxu0
  %v500 = vadd.f32 %v154, %v499
  %v501 = vpop.f32.mrf.mxu0
  %v502 = vadd.f32 %v158, %v501
  %503 = vdwg.mxu0
  %504 = vst [vmem:[#allocation2] sm:$0xff] %v232
  %505 = vst [vmem:[#allocation2 + $0x8] sm:$0xff] %v234
  %506 = vst [vmem:[#allocation2 + $0x10] sm:$0xff] %v345
  %507 = vst [vmem:[#allocation2 + $0x18] sm:$0xff] %v347
  %508 = vst [vmem:[#allocation2 + $0x20] sm:$0xff] %v458
  %509 = vst [vmem:[#allocation2 + $0x28] sm:$0xff] %v460
  %510 = vst [vmem:[#allocation2 + $0x30] sm:$0xff] %v238
  %511 = vst [vmem:[#allocation2 + $0x38] sm:$0xff] %v240
  %512 = vst [vmem:[#allocation2 + $0x40] sm:$0xff] %v351
  %513 = vst [vmem:[#allocation2 + $0x48] sm:$0xff] %v353
  %514 = vst [vmem:[#allocation2 + $0x50] sm:$0xff] %v464
  %515 = vst [vmem:[#allocation2 + $0x58] sm:$0xff] %v466
  %516 = vst [vmem:[#allocation2 + $0x60] sm:$0xff] %v244
  %517 = vst [vmem:[#allocation2 + $0x68] sm:$0xff] %v246
  %518 = vst [vmem:[#allocation2 + $0x70] sm:$0xff] %v357
  %519 = vst [vmem:[#allocation2 + $0x78] sm:$0xff] %v359
  %520 = vst [vmem:[#allocation2 + $0x80] sm:$0xff] %v470
  %521 = vst [vmem:[#allocation2 + $0x88] sm:$0xff] %v472
  %522 = vst [vmem:[#allocation2 + $0x90] sm:$0xff] %v250
  %523 = vst [vmem:[#allocation2 + $0x98] sm:$0xff] %v252
  %524 = vst [vmem:[#allocation2 + $0xa0] sm:$0xff] %v363
  %525 = vst [vmem:[#allocation2 + $0xa8] sm:$0xff] %v365
  %526 = vst [vmem:[#allocation2 + $0xb0] sm:$0xff] %v476
  %527 = vst [vmem:[#allocation2 + $0xb8] sm:$0xff] %v478
  %528 = vst [vmem:[#allocation2 + $0xc0] sm:$0xff] %v256
  %529 = vst [vmem:[#allocation2 + $0xc8] sm:$0xff] %v258
  %530 = vst [vmem:[#allocation2 + $0xd0] sm:$0xff] %v369
  %531 = vst [vmem:[#allocation2 + $0xd8] sm:$0xff] %v371
  %532 = vst [vmem:[#allocation2 + $0xe0] sm:$0xff] %v482
  %533 = vst [vmem:[#allocation2 + $0xe8] sm:$0xff] %v484
  %534 = vst [vmem:[#allocation2 + $0xf0] sm:$0xff] %v262
  %535 = vst [vmem:[#allocation2 + $0xf8] sm:$0xff] %v264
  %536 = vst [vmem:[#allocation2 + $0x100] sm:$0xff] %v375
  %537 = vst [vmem:[#allocation2 + $0x108] sm:$0xff] %v377
  %538 = vst [vmem:[#allocation2 + $0x110] sm:$0xff] %v488
  %539 = vst [vmem:[#allocation2 + $0x118] sm:$0xff] %v490
  %540 = vst [vmem:[#allocation2 + $0x120] sm:$0xff] %v268
  %541 = vst [vmem:[#allocation2 + $0x128] sm:$0xff] %v270
  %542 = vst [vmem:[#allocation2 + $0x130] sm:$0xff] %v381
  %543 = vst [vmem:[#allocation2 + $0x138] sm:$0xff] %v383
  %544 = vst [vmem:[#allocation2 + $0x140] sm:$0xff] %v494
  %545 = vst [vmem:[#allocation2 + $0x148] sm:$0xff] %v496
  %546 = vst [vmem:[#allocation2 + $0x150] sm:$0xff] %v274
  %547 = vst [vmem:[#allocation2 + $0x158] sm:$0xff] %v276
  %548 = vst [vmem:[#allocation2 + $0x160] sm:$0xff] %v387
  %549 = vst [vmem:[#allocation2 + $0x168] sm:$0xff] %v389
  %550 = vst [vmem:[#allocation2 + $0x170] sm:$0xff] %v500
  %551 = vst [vmem:[#allocation2 + $0x178] sm:$0xff] %v502
  %v552 = vld [vmem:[%s1] sm:$0xff]
  %v553 = vld [vmem:[%s4] sm:$0xff]
  %v554 = vld [vmem:[%s4 + $0x8] sm:$0xff]
  %v555 = vld [vmem:[%s4 + $0x10] sm:$0xff]
  %v556 = vld [vmem:[%s4 + $0x18] sm:$0xff]
  %v557 = vld [vmem:[%s4 + $0x20] sm:$0xff]
  %v558 = vld [vmem:[%s4 + $0x28] sm:$0xff]
  %v559 = vld [vmem:[%s4 + $0x30] sm:$0xff]
  %v560 = vld [vmem:[%s4 + $0x38] sm:$0xff]
  %v561 = vld [vmem:[%s4 + $0x40] sm:$0xff]
  %v562 = vld [vmem:[%s4 + $0x48] sm:$0xff]
  %v563 = vld [vmem:[%s4 + $0x50] sm:$0xff]
  %v564 = vld [vmem:[%s4 + $0x58] sm:$0xff]
  %v565 = vld [vmem:[%s4 + $0x60] sm:$0xff]
  %v566 = vld [vmem:[%s4 + $0x68] sm:$0xff]
  %v567 = vld [vmem:[%s4 + $0x70] sm:$0xff]
  %v568 = vld [vmem:[%s4 + $0x78] sm:$0xff]
  %v569 = vld [vmem:[%s4 + $0x80] sm:$0xff]
  %v570 = vld [vmem:[%s4 + $0x88] sm:$0xff]
  %v571 = vld [vmem:[%s4 + $0x90] sm:$0xff]
  %v572 = vld [vmem:[%s4 + $0x98] sm:$0xff]
  %v573 = vld [vmem:[%s4 + $0xa0] sm:$0xff]
  %v574 = vld [vmem:[%s4 + $0xa8] sm:$0xff]
  %v575 = vld [vmem:[%s4 + $0xb0] sm:$0xff]
  %v576 = vld [vmem:[%s4 + $0xb8] sm:$0xff]
  %v577 = vld [vmem:[%s4 + $0xc0] sm:$0xff]
  %v578 = vld [vmem:[%s4 + $0xc8] sm:$0xff]
  %v579 = vld [vmem:[%s4 + $0xd0] sm:$0xff]
  %v580 = vld [vmem:[%s4 + $0xd8] sm:$0xff]
  %v581 = vld [vmem:[%s4 + $0xe0] sm:$0xff]
  %v582 = vld [vmem:[%s4 + $0xe8] sm:$0xff]
  %v583 = vld [vmem:[%s4 + $0xf0] sm:$0xff]
  %v584 = vld [vmem:[%s4 + $0xf8] sm:$0xff]
  %v585 = vld [vmem:[%s4 + $0x100] sm:$0xff]
  %v586 = vld [vmem:[%s4 + $0x108] sm:$0xff]
  %v587 = vld [vmem:[%s4 + $0x110] sm:$0xff]
  %v588 = vld [vmem:[%s4 + $0x118] sm:$0xff]
  %v589 = vld [vmem:[%s4 + $0x120] sm:$0xff]
  %v590 = vld [vmem:[%s4 + $0x128] sm:$0xff]
  %v591 = vld [vmem:[%s4 + $0x130] sm:$0xff]
  %v592 = vld [vmem:[%s4 + $0x138] sm:$0xff]
  %v593 = vld [vmem:[%s4 + $0x140] sm:$0xff]
  %v594 = vld [vmem:[%s4 + $0x148] sm:$0xff]
  %v595 = vld [vmem:[%s4 + $0x150] sm:$0xff]
  %v596 = vld [vmem:[%s4 + $0x158] sm:$0xff]
  %v597 = vld [vmem:[%s4 + $0x160] sm:$0xff]
  %v598 = vld [vmem:[%s4 + $0x168] sm:$0xff]
  %v599 = vld [vmem:[%s4 + $0x170] sm:$0xff]
  %v600 = vld [vmem:[%s4 + $0x178] sm:$0xff]
  %v601 = vld [vmem:[%s4 + $0x180] sm:$0xff]
  %v602 = vld [vmem:[%s4 + $0x188] sm:$0xff]
  %v603 = vld [vmem:[%s4 + $0x190] sm:$0xff]
  %v604 = vld [vmem:[%s4 + $0x198] sm:$0xff]
  %v605 = vld [vmem:[%s4 + $0x1a0] sm:$0xff]
  %v606 = vld [vmem:[%s4 + $0x1a8] sm:$0xff]
  %v607 = vld [vmem:[%s4 + $0x1b0] sm:$0xff]
  %v608 = vld [vmem:[%s4 + $0x1b8] sm:$0xff]
  %v609 = vld [vmem:[%s4 + $0x1c0] sm:$0xff]
  %v610 = vld [vmem:[%s4 + $0x1c8] sm:$0xff]
  %v611 = vld [vmem:[%s4 + $0x1d0] sm:$0xff]
  %v612 = vld [vmem:[%s4 + $0x1d8] sm:$0xff]
  %v613 = vld [vmem:[%s4 + $0x1e0] sm:$0xff]
  %v614 = vld [vmem:[%s4 + $0x1e8] sm:$0xff]
  %v615 = vld [vmem:[%s4 + $0x1f0] sm:$0xff]
  %v616 = vld [vmem:[%s4 + $0x1f8] sm:$0xff]
  %v617 = vld [vmem:[%s4 + $0x200] sm:$0xff]
  %v618 = vld [vmem:[%s4 + $0x208] sm:$0xff]
  %v619 = vld [vmem:[%s4 + $0x210] sm:$0xff]
  %v620 = vld [vmem:[%s4 + $0x218] sm:$0xff]
  %v621 = vld [vmem:[%s4 + $0x220] sm:$0xff]
  %v622 = vld [vmem:[%s4 + $0x228] sm:$0xff]
  %v623 = vld [vmem:[%s4 + $0x230] sm:$0xff]
  %v624 = vld [vmem:[%s4 + $0x238] sm:$0xff]
  %v625 = vld [vmem:[%s4 + $0x240] sm:$0xff]
  %v626 = vld [vmem:[%s4 + $0x248] sm:$0xff]
  %v627 = vld [vmem:[%s4 + $0x250] sm:$0xff]
  %v628 = vld [vmem:[%s4 + $0x258] sm:$0xff]
  %v629 = vld [vmem:[%s4 + $0x260] sm:$0xff]
  %v630 = vld [vmem:[%s4 + $0x268] sm:$0xff]
  %v631 = vld [vmem:[%s4 + $0x270] sm:$0xff]
  %v632 = vld [vmem:[%s4 + $0x278] sm:$0xff]
  %v633 = vld [vmem:[%s4 + $0x280] sm:$0xff]
  %v634 = vld [vmem:[%s4 + $0x288] sm:$0xff]
  %v635 = vld [vmem:[%s4 + $0x290] sm:$0xff]
  %v636 = vld [vmem:[%s4 + $0x298] sm:$0xff]
  %v637 = vld [vmem:[%s4 + $0x2a0] sm:$0xff]
  %v638 = vld [vmem:[%s4 + $0x2a8] sm:$0xff]
  %v639 = vld [vmem:[%s4 + $0x2b0] sm:$0xff]
  %v640 = vld [vmem:[%s4 + $0x2b8] sm:$0xff]
  %v641 = vld [vmem:[%s4 + $0x2c0] sm:$0xff]
  %v642 = vld [vmem:[%s4 + $0x2c8] sm:$0xff]
  %v643 = vld [vmem:[%s4 + $0x2d0] sm:$0xff]
  %v644 = vld [vmem:[%s4 + $0x2d8] sm:$0xff]
  %v645 = vld [vmem:[%s4 + $0x2e0] sm:$0xff]
  %v646 = vld [vmem:[%s4 + $0x2e8] sm:$0xff]
  %v647 = vld [vmem:[%s4 + $0x2f0] sm:$0xff]
  %v648 = vld [vmem:[%s4 + $0x2f8] sm:$0xff]
  %v649 = vld [vmem:[%s4 + $0x300] sm:$0xff]
  %v650 = vld [vmem:[%s4 + $0x308] sm:$0xff]
  %v651 = vld [vmem:[%s4 + $0x310] sm:$0xff]
  %v652 = vld [vmem:[%s4 + $0x318] sm:$0xff]
  %v653 = vld [vmem:[%s4 + $0x320] sm:$0xff]
  %v654 = vld [vmem:[%s4 + $0x328] sm:$0xff]
  %v655 = vld [vmem:[%s4 + $0x330] sm:$0xff]
  %v656 = vld [vmem:[%s4 + $0x338] sm:$0xff]
  %v657 = vld [vmem:[%s4 + $0x340] sm:$0xff]
  %v658 = vld [vmem:[%s4 + $0x348] sm:$0xff]
  %v659 = vld [vmem:[%s4 + $0x350] sm:$0xff]
  %v660 = vld [vmem:[%s4 + $0x358] sm:$0xff]
  %v661 = vld [vmem:[%s4 + $0x360] sm:$0xff]
  %v662 = vld [vmem:[%s4 + $0x368] sm:$0xff]
  %v663 = vld [vmem:[%s4 + $0x370] sm:$0xff]
  %v664 = vld [vmem:[%s4 + $0x378] sm:$0xff]
  %v665 = vld [vmem:[%s4 + $0x380] sm:$0xff]
  %v666 = vld [vmem:[%s4 + $0x388] sm:$0xff]
  %v667 = vld [vmem:[%s4 + $0x390] sm:$0xff]
  %v668 = vld [vmem:[%s4 + $0x398] sm:$0xff]
  %v669 = vld [vmem:[%s4 + $0x3a0] sm:$0xff]
  %v670 = vld [vmem:[%s4 + $0x3a8] sm:$0xff]
  %v671 = vld [vmem:[%s4 + $0x3b0] sm:$0xff]
  %v672 = vld [vmem:[%s4 + $0x3b8] sm:$0xff]
  %v673 = vld [vmem:[%s4 + $0x3c0] sm:$0xff]
  %v674 = vld [vmem:[%s4 + $0x3c8] sm:$0xff]
  %v675 = vld [vmem:[%s4 + $0x3d0] sm:$0xff]
  %v676 = vld [vmem:[%s4 + $0x3d8] sm:$0xff]
  %v677 = vld [vmem:[%s4 + $0x3e0] sm:$0xff]
  %v678 = vld [vmem:[%s4 + $0x3e8] sm:$0xff]
  %v679 = vld [vmem:[%s4 + $0x3f0] sm:$0xff]
  %v680 = vld [vmem:[%s4 + $0x3f8] sm:$0xff]
  %v681 = vld [vmem:[%s4 + $0x400] sm:$0xff]
  %v682 = vld [vmem:[%s4 + $0x408] sm:$0xff]
  %v683 = vld [vmem:[%s4 + $0x410] sm:$0xff]
  %v684 = vld [vmem:[%s4 + $0x418] sm:$0xff]
  %v685 = vld [vmem:[%s4 + $0x420] sm:$0xff]
  %v686 = vld [vmem:[%s4 + $0x428] sm:$0xff]
  %v687 = vld [vmem:[%s4 + $0x430] sm:$0xff]
  %v688 = vld [vmem:[%s4 + $0x438] sm:$0xff]
  %v689 = vld [vmem:[%s4 + $0x440] sm:$0xff]
  %v690 = vld [vmem:[%s4 + $0x448] sm:$0xff]
  %v691 = vld [vmem:[%s4 + $0x450] sm:$0xff]
  %v692 = vld [vmem:[%s4 + $0x458] sm:$0xff]
  %v693 = vld [vmem:[%s4 + $0x460] sm:$0xff]
  %v694 = vld [vmem:[%s4 + $0x468] sm:$0xff]
  %v695 = vld [vmem:[%s4 + $0x470] sm:$0xff]
  %v696 = vld [vmem:[%s4 + $0x478] sm:$0xff]
  %v697 = vld [vmem:[%s4 + $0x480] sm:$0xff]
  %v698 = vld [vmem:[%s4 + $0x488] sm:$0xff]
  %v699 = vld [vmem:[%s4 + $0x490] sm:$0xff]
  %v700 = vld [vmem:[%s4 + $0x498] sm:$0xff]
  %v701 = vld [vmem:[%s4 + $0x4a0] sm:$0xff]
  %v702 = vld [vmem:[%s4 + $0x4a8] sm:$0xff]
  %v703 = vld [vmem:[%s4 + $0x4b0] sm:$0xff]
  %v704 = vld [vmem:[%s4 + $0x4b8] sm:$0xff]
  %v705 = vld [vmem:[%s4 + $0x4c0] sm:$0xff]
  %v706 = vld [vmem:[%s4 + $0x4c8] sm:$0xff]
  %v707 = vld [vmem:[%s4 + $0x4d0] sm:$0xff]
  %v708 = vld [vmem:[%s4 + $0x4d8] sm:$0xff]
  %v709 = vld [vmem:[%s4 + $0x4e0] sm:$0xff]
  %v710 = vld [vmem:[%s4 + $0x4e8] sm:$0xff]
  %v711 = vld [vmem:[%s4 + $0x4f0] sm:$0xff]
  %v712 = vld [vmem:[%s4 + $0x4f8] sm:$0xff]
  %v713 = vld [vmem:[%s4 + $0x500] sm:$0xff]
  %v714 = vld [vmem:[%s4 + $0x508] sm:$0xff]
  %v715 = vld [vmem:[%s4 + $0x510] sm:$0xff]
  %v716 = vld [vmem:[%s4 + $0x518] sm:$0xff]
  %v717 = vld [vmem:[%s4 + $0x520] sm:$0xff]
  %v718 = vld [vmem:[%s4 + $0x528] sm:$0xff]
  %v719 = vld [vmem:[%s4 + $0x530] sm:$0xff]
  %v720 = vld [vmem:[%s4 + $0x538] sm:$0xff]
  %v721 = vld [vmem:[%s4 + $0x540] sm:$0xff]
  %v722 = vld [vmem:[%s4 + $0x548] sm:$0xff]
  %v723 = vld [vmem:[%s4 + $0x550] sm:$0xff]
  %v724 = vld [vmem:[%s4 + $0x558] sm:$0xff]
  %v725 = vld [vmem:[%s4 + $0x560] sm:$0xff]
  %v726 = vld [vmem:[%s4 + $0x568] sm:$0xff]
  %v727 = vld [vmem:[%s4 + $0x570] sm:$0xff]
  %v728 = vld [vmem:[%s4 + $0x578] sm:$0xff]
  %v729 = vld [vmem:[%s4 + $0x580] sm:$0xff]
  %v730 = vld [vmem:[%s4 + $0x588] sm:$0xff]
  %v731 = vld [vmem:[%s4 + $0x590] sm:$0xff]
  %v732 = vld [vmem:[%s4 + $0x598] sm:$0xff]
  %v733 = vld [vmem:[%s4 + $0x5a0] sm:$0xff]
  %v734 = vld [vmem:[%s4 + $0x5a8] sm:$0xff]
  %v735 = vld [vmem:[%s4 + $0x5b0] sm:$0xff]
  %v736 = vld [vmem:[%s4 + $0x5b8] sm:$0xff]
  %v737 = vld [vmem:[%s4 + $0x5c0] sm:$0xff]
  %v738 = vld [vmem:[%s4 + $0x5c8] sm:$0xff]
  %v739 = vld [vmem:[%s4 + $0x5d0] sm:$0xff]
  %v740 = vld [vmem:[%s4 + $0x5d8] sm:$0xff]
  %v741 = vld [vmem:[%s4 + $0x5e0] sm:$0xff]
  %v742 = vld [vmem:[%s4 + $0x5e8] sm:$0xff]
  %v743 = vld [vmem:[%s4 + $0x5f0] sm:$0xff]
  %v744 = vld [vmem:[%s4 + $0x5f8] sm:$0xff]
  %v745 = vld [vmem:[%s5] sm:$0x3f]
  %v747 = vlaneseq
  %v748 = vshrl.u32 %v747, 7
  %v749 = vsub.s32 0, %v748
  %v750 = vrot.slane %v745, %v749
  %v751 = vlaneseq
  %v752 = vshrl.u32 %v751, 7
  %v753 = vsub.s32 1, %v752
  %v754 = vrot.slane %v745, %v753
  %v755 = vlaneseq
  %v756 = vshrl.u32 %v755, 7
  %v757 = vsub.s32 2, %v756
  %v758 = vrot.slane %v745, %v757
  %v759 = vlaneseq
  %v760 = vshrl.u32 %v759, 7
  %v761 = vsub.s32 3, %v760
  %v762 = vrot.slane %v745, %v761
  %v763 = vlaneseq
  %v764 = vshrl.u32 %v763, 7
  %v765 = vsub.s32 4, %v764
  %v766 = vrot.slane %v745, %v765
  %v767 = vlaneseq
  %v768 = vshrl.u32 %v767, 7
  %v769 = vsub.s32 5, %v768
  %v770 = vrot.slane %v745, %v769
  %777 = vmatprep.subr.mxu0 %v644
  %778 = vmatpush1.msra.mxu0 %v643
  %779 = vmatprep.subr.mxu0 %v638
  %780 = vmatpush1.msra.mxu0 %v637
  %781 = vmatprep.subr.mxu0 %v632
  %782 = vmatpush1.msra.mxu0 %v631
  %783 = vmatprep.subr.mxu0 %v626
  %784 = vmatpush1.msra.mxu0 %v625
  %785 = vmatprep.subr.mxu0 %v620
  %786 = vmatpush1.msra.mxu0 %v619
  %787 = vmatprep.subr.mxu0 %v614
  %788 = vmatpush1.msra.mxu0 %v613
  %789 = vmatprep.subr.mxu0 %v608
  %790 = vmatpush1.msra.mxu0 %v607
  %791 = vmatprep.subr.mxu0 %v602
  %792 = vmatpush1.msra.mxu0 %v601
  %793 = vmatprep.subr.mxu0 %v596
  %794 = vmatpush1.msra.mxu0 %v595
  %795 = vmatprep.subr.mxu0 %v590
  %796 = vmatpush1.msra.mxu0 %v589
  %797 = vmatprep.subr.mxu0 %v584
  %798 = vmatpush1.msra.mxu0 %v583
  %799 = vmatprep.subr.mxu0 %v578
  %800 = vmatpush1.msra.mxu0 %v577
  %801 = vmatprep.subr.mxu0 %v572
  %802 = vmatpush1.msra.mxu0 %v571
  %803 = vmatprep.subr.mxu0 %v566
  %804 = vmatpush1.msra.mxu0 %v565
  %805 = vmatprep.subr.mxu0 %v560
  %806 = vmatpush1.msra.mxu0 %v559
  %807 = vmatprep.subr.mxu0 %v554
  %808 = vmatpush1.msra.mxu0 %v553
  %809 = vmatprep.subr.mxu0 %v740
  %810 = vmatpush2.msra.mxu0 %v739
  %811 = vmatprep.subr.mxu0 %v734
  %812 = vmatpush2.msra.mxu0 %v733
  %813 = vmatprep.subr.mxu0 %v728
  %814 = vmatpush2.msra.mxu0 %v727
  %815 = vmatprep.subr.mxu0 %v722
  %816 = vmatpush2.msra.mxu0 %v721
  %817 = vmatprep.subr.mxu0 %v716
  %818 = vmatpush2.msra.mxu0 %v715
  %819 = vmatprep.subr.mxu0 %v710
  %820 = vmatpush2.msra.mxu0 %v709
  %821 = vmatprep.subr.mxu0 %v704
  %822 = vmatpush2.msra.mxu0 %v703
  %823 = vmatprep.subr.mxu0 %v698
  %824 = vmatpush2.msra.mxu0 %v697
  %825 = vmatprep.subr.mxu0 %v692
  %826 = vmatpush2.msra.mxu0 %v691
  %827 = vmatprep.subr.mxu0 %v686
  %828 = vmatpush2.msra.mxu0 %v685
  %829 = vmatprep.subr.mxu0 %v680
  %830 = vmatpush2.msra.mxu0 %v679
  %831 = vmatprep.subr.mxu0 %v674
  %832 = vmatpush2.msra.mxu0 %v673
  %833 = vmatprep.subr.mxu0 %v668
  %834 = vmatpush2.msra.mxu0 %v667
  %835 = vmatprep.subr.mxu0 %v662
  %836 = vmatpush2.msra.mxu0 %v661
  %837 = vmatprep.subr.mxu0 %v656
  %838 = vmatpush2.msra.mxu0 %v655
  %839 = vmatprep.subr.mxu0 %v650
  %840 = vmatpush2.msra.mxu0 %v649
  %841 = vmatprep.mubr.f32.mxu0 0.0
  %842 = vmatmul.mubr.f32.gmra.mxu0 0.0
  %v843 = vpop.f32.mrf.mxu0
  %v844 = vadd.f32 %v750, %v843
  %v845 = vpop.f32.mrf.mxu0
  %v846 = vadd.f32 %v754, %v845
  %847 = vdwg.mxu0
  %848 = vmatprep.subr.mxu0 %v646
  %849 = vmatpush1.msra.mxu0 %v645
  %850 = vmatprep.subr.mxu0 %v640
  %851 = vmatpush1.msra.mxu0 %v639
  %852 = vmatprep.subr.mxu0 %v634
  %853 = vmatpush1.msra.mxu0 %v633
  %854 = vmatprep.subr.mxu0 %v628
  %855 = vmatpush1.msra.mxu0 %v627
  %856 = vmatprep.subr.mxu0 %v622
  %857 = vmatpush1.msra.mxu0 %v621
  %858 = vmatprep.subr.mxu0 %v616
  %859 = vmatpush1.msra.mxu0 %v615
  %860 = vmatprep.subr.mxu0 %v610
  %861 = vmatpush1.msra.mxu0 %v609
  %862 = vmatprep.subr.mxu0 %v604
  %863 = vmatpush1.msra.mxu0 %v603
  %864 = vmatprep.subr.mxu0 %v598
  %865 = vmatpush1.msra.mxu0 %v597
  %866 = vmatprep.subr.mxu0 %v592
  %867 = vmatpush1.msra.mxu0 %v591
  %868 = vmatprep.subr.mxu0 %v586
  %869 = vmatpush1.msra.mxu0 %v585
  %870 = vmatprep.subr.mxu0 %v580
  %871 = vmatpush1.msra.mxu0 %v579
  %872 = vmatprep.subr.mxu0 %v574
  %873 = vmatpush1.msra.mxu0 %v573
  %874 = vmatprep.subr.mxu0 %v568
  %875 = vmatpush1.msra.mxu0 %v567
  %876 = vmatprep.subr.mxu0 %v562
  %877 = vmatpush1.msra.mxu0 %v561
  %878 = vmatprep.subr.mxu0 %v556
  %879 = vmatpush1.msra.mxu0 %v555
  %880 = vmatprep.subr.mxu0 %v742
  %881 = vmatpush2.msra.mxu0 %v741
  %882 = vmatprep.subr.mxu0 %v736
  %883 = vmatpush2.msra.mxu0 %v735
  %884 = vmatprep.subr.mxu0 %v730
  %885 = vmatpush2.msra.mxu0 %v729
  %886 = vmatprep.subr.mxu0 %v724
  %887 = vmatpush2.msra.mxu0 %v723
  %888 = vmatprep.subr.mxu0 %v718
  %889 = vmatpush2.msra.mxu0 %v717
  %890 = vmatprep.subr.mxu0 %v712
  %891 = vmatpush2.msra.mxu0 %v711
  %892 = vmatprep.subr.mxu0 %v706
  %893 = vmatpush2.msra.mxu0 %v705
  %894 = vmatprep.subr.mxu0 %v700
  %895 = vmatpush2.msra.mxu0 %v699
  %896 = vmatprep.subr.mxu0 %v694
  %897 = vmatpush2.msra.mxu0 %v693
  %898 = vmatprep.subr.mxu0 %v688
  %899 = vmatpush2.msra.mxu0 %v687
  %900 = vmatprep.subr.mxu0 %v682
  %901 = vmatpush2.msra.mxu0 %v681
  %902 = vmatprep.subr.mxu0 %v676
  %903 = vmatpush2.msra.mxu0 %v675
  %904 = vmatprep.subr.mxu0 %v670
  %905 = vmatpush2.msra.mxu0 %v669
  %906 = vmatprep.subr.mxu0 %v664
  %907 = vmatpush2.msra.mxu0 %v663
  %908 = vmatprep.subr.mxu0 %v658
  %909 = vmatpush2.msra.mxu0 %v657
  %910 = vmatprep.subr.mxu0 %v652
  %911 = vmatpush2.msra.mxu0 %v651
  %912 = vmatprep.mubr.f32.mxu0 0.0
  %913 = vmatmul.mubr.f32.gmra.mxu0 0.0
  %v914 = vpop.f32.mrf.mxu0
  %v915 = vadd.f32 %v758, %v914
  %v916 = vpop.f32.mrf.mxu0
  %v917 = vadd.f32 %v762, %v916
  %918 = vdwg.mxu0
  %919 = vmatprep.subr.mxu0 %v648
  %920 = vmatpush1.msra.mxu0 %v647
  %921 = vmatprep.subr.mxu0 %v642
  %922 = vmatpush1.msra.mxu0 %v641
  %923 = vmatprep.subr.mxu0 %v636
  %924 = vmatpush1.msra.mxu0 %v635
  %925 = vmatprep.subr.mxu0 %v630
  %926 = vmatpush1.msra.mxu0 %v629
  %927 = vmatprep.subr.mxu0 %v624
  %928 = vmatpush1.msra.mxu0 %v623
  %929 = vmatprep.subr.mxu0 %v618
  %930 = vmatpush1.msra.mxu0 %v617
  %931 = vmatprep.subr.mxu0 %v612
  %932 = vmatpush1.msra.mxu0 %v611
  %933 = vmatprep.subr.mxu0 %v606
  %934 = vmatpush1.msra.mxu0 %v605
  %935 = vmatprep.subr.mxu0 %v600
  %936 = vmatpush1.msra.mxu0 %v599
  %937 = vmatprep.subr.mxu0 %v594
  %938 = vmatpush1.msra.mxu0 %v593
  %939 = vmatprep.subr.mxu0 %v588
  %940 = vmatpush1.msra.mxu0 %v587
  %941 = vmatprep.subr.mxu0 %v582
  %942 = vmatpush1.msra.mxu0 %v581
  %943 = vmatprep.subr.mxu0 %v576
  %944 = vmatpush1.msra.mxu0 %v575
  %945 = vmatprep.subr.mxu0 %v570
  %946 = vmatpush1.msra.mxu0 %v569
  %947 = vmatprep.subr.mxu0 %v564
  %948 = vmatpush1.msra.mxu0 %v563
  %949 = vmatprep.subr.mxu0 %v558
  %950 = vmatpush1.msra.mxu0 %v557
  %951 = vmatprep.subr.mxu0 %v744
  %952 = vmatpush2.msra.mxu0 %v743
  %953 = vmatprep.subr.mxu0 %v738
  %954 = vmatpush2.msra.mxu0 %v737
  %955 = vmatprep.subr.mxu0 %v732
  %956 = vmatpush2.msra.mxu0 %v731
  %957 = vmatprep.subr.mxu0 %v726
  %958 = vmatpush2.msra.mxu0 %v725
  %959 = vmatprep.subr.mxu0 %v720
  %960 = vmatpush2.msra.mxu0 %v719
  %961 = vmatprep.subr.mxu0 %v714
  %962 = vmatpush2.msra.mxu0 %v713
  %963 = vmatprep.subr.mxu0 %v708
  %964 = vmatpush2.msra.mxu0 %v707
  %965 = vmatprep.subr.mxu0 %v702
  %966 = vmatpush2.msra.mxu0 %v701
  %967 = vmatprep.subr.mxu0 %v696
  %968 = vmatpush2.msra.mxu0 %v695
  %969 = vmatprep.subr.mxu0 %v690
  %970 = vmatpush2.msra.mxu0 %v689
  %971 = vmatprep.subr.mxu0 %v684
  %972 = vmatpush2.msra.mxu0 %v683
  %973 = vmatprep.subr.mxu0 %v678
  %974 = vmatpush2.msra.mxu0 %v677
  %975 = vmatprep.subr.mxu0 %v672
  %976 = vmatpush2.msra.mxu0 %v671
  %977 = vmatprep.subr.mxu0 %v666
  %978 = vmatpush2.msra.mxu0 %v665
  %979 = vmatprep.subr.mxu0 %v660
  %980 = vmatpush2.msra.mxu0 %v659
  %981 = vmatprep.subr.mxu0 %v654
  %982 = vmatpush2.msra.mxu0 %v653
  %983 = vmatprep.mubr.f32.mxu0 0.0
  %984 = vmatmul.mubr.f32.gmra.mxu0 0.0
  %v985 = vpop.f32.mrf.mxu0
  %v986 = vadd.f32 %v766, %v985
  %v987 = vpop.f32.mrf.mxu0
  %v988 = vadd.f32 %v770, %v987
  %989 = vdwg.mxu0
  %vm990 = vcmp.gt.s32.totalorder %v552, 0
  %v991 = vsel %vm990, 1, 0
  %v992 = vcvt.s32.f32 %v991
  %vm993 = vcmp.gt.s32.totalorder %v552, 7
  %v994 = vsel %vm993, 1, 0
  %v995 = vcvt.s32.f32 %v994
  %v996 = vld [vmem:[#allocation2] sm:$0xff]
  %v997 = vld [vmem:[#allocation2 + $0x8] sm:$0xff]
  %v998 = vld [vmem:[#allocation2 + $0x10] sm:$0xff]
  %v999 = vadd.f32 %v996, %v844
  %v1000 = vxor.u32 %v999, 2147483648
  %v1001 = vmul.f32 %v1000, 1.442695
  %v1002 = vpow.pop %v1001
  %v1003 = vadd.f32 %v1002, 1.0
  %v1004 = vrcp.pop %v1003
  %v1005 = vmul.f32 1.0, %v1004
  %v1006 = vadd.f32 %v997, %v846
  %v1007 = vxor.u32 %v1006, 2147483648
  %v1008 = vmul.f32 %v1007, 1.442695
  %v1009 = vpow.pop %v1008
  %v1010 = vadd.f32 %v1009, 1.0
  %v1011 = vrcp.pop %v1010
  %v1012 = vmul.f32 1.0, %v1011
  %v1013 = vmul.f32 %v1005, %v915
  %v1014 = vadd.f32 %v998, %v1013
  %v1015 = vtanh.pop %v1014
  %v1016 = vsub.f32 1.0, %v1012
  %v1017 = vmul.f32 %v1016, %v1015
  %v1018 = vmul.f32 %v1012, 0.0
  %v1019 = vadd.f32 %v1017, %v1018
  %1021 = vset.pattern.permute.xlu0 0
  %1022 = vperm.xlu0 %1021, %v992
  %v1023 = vpop.permute.xlu0 %1022
  %v1025 = vmul.f32 %v1023, %v1019
  %v1026 = vsub.f32 1.0, %v992
  %1028 = vset.pattern.permute.xlu0 0
  %1029 = vperm.xlu0 %1028, %v1026
  %v1030 = vpop.permute.xlu0 %1029
  %v1032 = vmul.f32 %v1030, 0.0
  %v1033 = vadd.f32 %v1025, %v1032
  %s1034 = scalar_lea.vmem [#allocation2], 336
  %v1035 = vld [vmem:[%s1034 + $0x18] sm:$0xff]
  %v1036 = vld [vmem:[%s1034 + $0x20] sm:$0xff]
  %v1037 = vld [vmem:[%s1034 + $0x28] sm:$0xff]
  %v1038 = vadd.f32 %v1035, %v917
  %v1039 = vxor.u32 %v1038, 2147483648
  %v1040 = vmul.f32 %v1039, 1.442695
  %v1041 = vpow.pop %v1040
  %v1042 = vadd.f32 %v1041, 1.0
  %v1043 = vrcp.pop %v1042
  %v1044 = vmul.f32 1.0, %v1043
  %v1045 = vadd.f32 %v1036, %v986
  %v1046 = vxor.u32 %v1045, 2147483648
  %v1047 = vmul.f32 %v1046, 1.442695
  %v1048 = vpow.pop %v1047
  %v1049 = vadd.f32 %v1048, 1.0
  %v1050 = vrcp.pop %v1049
  %v1051 = vmul.f32 1.0, %v1050
  %v1052 = vmul.f32 %v1044, %v988
  %v1053 = vadd.f32 %v1037, %v1052
  %v1054 = vtanh.pop %v1053
  %v1055 = vsub.f32 1.0, %v1051
  %v1056 = vmul.f32 %v1055, %v1054
  %v1057 = vmul.f32 %v1051, 0.0
  %v1058 = vadd.f32 %v1056, %v1057
  %1060 = vset.pattern.permute.xlu0 0
  %1061 = vperm.xlu0 %1060, %v995
  %v1062 = vpop.permute.xlu0 %1061
  %v1064 = vmul.f32 %v1062, %v1058
  %v1065 = vsub.f32 1.0, %v995
  %1067 = vset.pattern.permute.xlu0 0
  %1068 = vperm.xlu0 %1067, %v1065
  %v1069 = vpop.permute.xlu0 %1068
  %v1071 = vmul.f32 %v1069, 0.0
  %v1072 = vadd.f32 %v1064, %v1071
  %1073 = vst [vmem:[%s8] sm:$0xff] %v1025
  %s1074 = scalar_lea.vmem %s8, 112
  %1075 = vst [vmem:[%s1074 + $0x8] sm:$0xff] %v1064
  %1076 = vmatprep.subr.mxu0 %v644
  %1077 = vmatpush1.msra.mxu0 %v643
  %1078 = vmatprep.subr.mxu0 %v638
  %1079 = vmatpush1.msra.mxu0 %v637
  %1080 = vmatprep.subr.mxu0 %v632
  %1081 = vmatpush1.msra.mxu0 %v631
  %1082 = vmatprep.subr.mxu0 %v626
  %1083 = vmatpush1.msra.mxu0 %v625
  %1084 = vmatprep.subr.mxu0 %v620
  %1085 = vmatpush1.msra.mxu0 %v619
  %1086 = vmatprep.subr.mxu0 %v614
  %1087 = vmatpush1.msra.mxu0 %v613
  %1088 = vmatprep.subr.mxu0 %v608
  %1089 = vmatpush1.msra.mxu0 %v607
  %1090 = vmatprep.subr.mxu0 %v602
  %1091 = vmatpush1.msra.mxu0 %v601
  %1092 = vmatprep.subr.mxu0 %v596
  %1093 = vmatpush1.msra.mxu0 %v595
  %1094 = vmatprep.subr.mxu0 %v590
  %1095 = vmatpush1.msra.mxu0 %v589
  %1096 = vmatprep.subr.mxu0 %v584
  %1097 = vmatpush1.msra.mxu0 %v583
  %1098 = vmatprep.subr.mxu0 %v578
  %1099 = vmatpush1.msra.mxu0 %v577
  %1100 = vmatprep.subr.mxu0 %v572
  %1101 = vmatpush1.msra.mxu0 %v571
  %1102 = vmatprep.subr.mxu0 %v566
  %1103 = vmatpush1.msra.mxu0 %v565
  %1104 = vmatprep.subr.mxu0 %v560
  %1105 = vmatpush1.msra.mxu0 %v559
  %1106 = vmatprep.subr.mxu0 %v554
  %1107 = vmatpush1.msra.mxu0 %v553
  %1108 = vmatprep.subr.mxu0 %v740
  %1109 = vmatpush2.msra.mxu0 %v739
  %1110 = vmatprep.subr.mxu0 %v734
  %1111 = vmatpush2.msra.mxu0 %v733
  %1112 = vmatprep.subr.mxu0 %v728
  %1113 = vmatpush2.msra.mxu0 %v727
  %1114 = vmatprep.subr.mxu0 %v722
  %1115 = vmatpush2.msra.mxu0 %v721
  %1116 = vmatprep.subr.mxu0 %v716
  %1117 = vmatpush2.msra.mxu0 %v715
  %1118 = vmatprep.subr.mxu0 %v710
  %1119 = vmatpush2.msra.mxu0 %v709
  %1120 = vmatprep.subr.mxu0 %v704
  %1121 = vmatpush2.msra.mxu0 %v703
  %1122 = vmatprep.subr.mxu0 %v698
  %1123 = vmatpush2.msra.mxu0 %v697
  %1124 = vmatprep.subr.mxu0 %v692
  %1125 = vmatpush2.msra.mxu0 %v691
  %1126 = vmatprep.subr.mxu0 %v686
  %1127 = vmatpush2.msra.mxu0 %v685
  %1128 = vmatprep.subr.mxu0 %v680
  %1129 = vmatpush2.msra.mxu0 %v679
  %1130 = vmatprep.subr.mxu0 %v674
  %1131 = vmatpush2.msra.mxu0 %v673
  %1132 = vmatprep.subr.mxu0 %v668
  %1133 = vmatpush2.msra.mxu0 %v667
  %1134 = vmatprep.subr.mxu0 %v662
  %1135 = vmatpush2.msra.mxu0 %v661
  %1136 = vmatprep.subr.mxu0 %v656
  %1137 = vmatpush2.msra.mxu0 %v655
  %1138 = vmatprep.subr.mxu0 %v650
  %1139 = vmatpush2.msra.mxu0 %v649
  %1140 = vmatprep.mubr.f32.mxu0 %v1072
  %1141 = vmatmul.mubr.f32.gmra.mxu0 %v1033
  %v1142 = vpop.f32.mrf.mxu0
  %v1143 = vadd.f32 %v750, %v1142
  %v1144 = vpop.f32.mrf.mxu0
  %v1145 = vadd.f32 %v754, %v1144
  %1146 = vdwg.mxu0
  %1147 = vmatprep.subr.mxu0 %v646
  %1148 = vmatpush1.msra.mxu0 %v645
  %1149 = vmatprep.subr.mxu0 %v640
  %1150 = vmatpush1.msra.mxu0 %v639
  %1151 = vmatprep.subr.mxu0 %v634
  %1152 = vmatpush1.msra.mxu0 %v633
  %1153 = vmatprep.subr.mxu0 %v628
  %1154 = vmatpush1.msra.mxu0 %v627
  %1155 = vmatprep.subr.mxu0 %v622
  %1156 = vmatpush1.msra.mxu0 %v621
  %1157 = vmatprep.subr.mxu0 %v616
  %1158 = vmatpush1.msra.mxu0 %v615
  %1159 = vmatprep.subr.mxu0 %v610
  %1160 = vmatpush1.msra.mxu0 %v609
  %1161 = vmatprep.subr.mxu0 %v604
  %1162 = vmatpush1.msra.mxu0 %v603
  %1163 = vmatprep.subr.mxu0 %v598
  %1164 = vmatpush1.msra.mxu0 %v597
  %1165 = vmatprep.subr.mxu0 %v592
  %1166 = vmatpush1.msra.mxu0 %v591
  %1167 = vmatprep.subr.mxu0 %v586
  %1168 = vmatpush1.msra.mxu0 %v585
  %1169 = vmatprep.subr.mxu0 %v580
  %1170 = vmatpush1.msra.mxu0 %v579
  %1171 = vmatprep.subr.mxu0 %v574
  %1172 = vmatpush1.msra.mxu0 %v573
  %1173 = vmatprep.subr.mxu0 %v568
  %1174 = vmatpush1.msra.mxu0 %v567
  %1175 = vmatprep.subr.mxu0 %v562
  %1176 = vmatpush1.msra.mxu0 %v561
  %1177 = vmatprep.subr.mxu0 %v556
  %1178 = vmatpush1.msra.mxu0 %v555
  %1179 = vmatprep.subr.mxu0 %v742
  %1180 = vmatpush2.msra.mxu0 %v741
  %1181 = vmatprep.subr.mxu0 %v736
  %1182 = vmatpush2.msra.mxu0 %v735
  %1183 = vmatprep.subr.mxu0 %v730
  %1184 = vmatpush2.msra.mxu0 %v729
  %1185 = vmatprep.subr.mxu0 %v724
  %1186 = vmatpush2.msra.mxu0 %v723
  %1187 = vmatprep.subr.mxu0 %v718
  %1188 = vmatpush2.msra.mxu0 %v717
  %1189 = vmatprep.subr.mxu0 %v712
  %1190 = vmatpush2.msra.mxu0 %v711
  %1191 = vmatprep.subr.mxu0 %v706
  %1192 = vmatpush2.msra.mxu0 %v705
  %1193 = vmatprep.subr.mxu0 %v700
  %1194 = vmatpush2.msra.mxu0 %v699
  %1195 = vmatprep.subr.mxu0 %v694
  %1196 = vmatpush2.msra.mxu0 %v693
  %1197 = vmatprep.subr.mxu0 %v688
  %1198 = vmatpush2.msra.mxu0 %v687
  %1199 = vmatprep.subr.mxu0 %v682
  %1200 = vmatpush2.msra.mxu0 %v681
  %1201 = vmatprep.subr.mxu0 %v676
  %1202 = vmatpush2.msra.mxu0 %v675
  %1203 = vmatprep.subr.mxu0 %v670
  %1204 = vmatpush2.msra.mxu0 %v669
  %1205 = vmatprep.subr.mxu0 %v664
  %1206 = vmatpush2.msra.mxu0 %v663
  %1207 = vmatprep.subr.mxu0 %v658
  %1208 = vmatpush2.msra.mxu0 %v657
  %1209 = vmatprep.subr.mxu0 %v652
  %1210 = vmatpush2.msra.mxu0 %v651
  %1211 = vmatprep.mubr.f32.mxu0 %v1072
  %1212 = vmatmul.mubr.f32.gmra.mxu0 %v1033
  %v1213 = vpop.f32.mrf.mxu0
  %v1214 = vadd.f32 %v758, %v1213
  %v1215 = vpop.f32.mrf.mxu0
  %v1216 = vadd.f32 %v762, %v1215
  %1217 = vdwg.mxu0
  %1218 = vmatprep.subr.mxu0 %v648
  %1219 = vmatpush1.msra.mxu0 %v647
  %1220 = vmatprep.subr.mxu0 %v642
  %1221 = vmatpush1.msra.mxu0 %v641
  %1222 = vmatprep.subr.mxu0 %v636
  %1223 = vmatpush1.msra.mxu0 %v635
  %1224 = vmatprep.subr.mxu0 %v630
  %1225 = vmatpush1.msra.mxu0 %v629
  %1226 = vmatprep.subr.mxu0 %v624
  %1227 = vmatpush1.msra.mxu0 %v623
  %1228 = vmatprep.subr.mxu0 %v618
  %1229 = vmatpush1.msra.mxu0 %v617
  %1230 = vmatprep.subr.mxu0 %v612
  %1231 = vmatpush1.msra.mxu0 %v611
  %1232 = vmatprep.subr.mxu0 %v606
  %1233 = vmatpush1.msra.mxu0 %v605
  %1234 = vmatprep.subr.mxu0 %v600
  %1235 = vmatpush1.msra.mxu0 %v599
  %1236 = vmatprep.subr.mxu0 %v594
  %1237 = vmatpush1.msra.mxu0 %v593
  %1238 = vmatprep.subr.mxu0 %v588
  %1239 = vmatpush1.msra.mxu0 %v587
  %1240 = vmatprep.subr.mxu0 %v582
  %1241 = vmatpush1.msra.mxu0 %v581
  %1242 = vmatprep.subr.mxu0 %v576
  %1243 = vmatpush1.msra.mxu0 %v575
  %1244 = vmatprep.subr.mxu0 %v570
  %1245 = vmatpush1.msra.mxu0 %v569
  %1246 = vmatprep.subr.mxu0 %v564
  %1247 = vmatpush1.msra.mxu0 %v563
  %1248 = vmatprep.subr.mxu0 %v558
  %1249 = vmatpush1.msra.mxu0 %v557
  %1250 = vmatprep.subr.mxu0 %v744
  %1251 = vmatpush2.msra.mxu0 %v743
  %1252 = vmatprep.subr.mxu0 %v738
  %1253 = vmatpush2.msra.mxu0 %v737
  %1254 = vmatprep.subr.mxu0 %v732
  %1255 = vmatpush2.msra.mxu0 %v731
  %1256 = vmatprep.subr.mxu0 %v726
  %1257 = vmatpush2.msra.mxu0 %v725
  %1258 = vmatprep.subr.mxu0 %v720
  %1259 = vmatpush2.msra.mxu0 %v719
  %1260 = vmatprep.subr.mxu0 %v714
  %1261 = vmatpush2.msra.mxu0 %v713
  %1262 = vmatprep.subr.mxu0 %v708
  %1263 = vmatpush2.msra.mxu0 %v707
  %1264 = vmatprep.subr.mxu0 %v702
  %1265 = vmatpush2.msra.mxu0 %v701
  %1266 = vmatprep.subr.mxu0 %v696
  %1267 = vmatpush2.msra.mxu0 %v695
  %1268 = vmatprep.subr.mxu0 %v690
  %1269 = vmatpush2.msra.mxu0 %v689
  %1270 = vmatprep.subr.mxu0 %v684
  %1271 = vmatpush2.msra.mxu0 %v683
  %1272 = vmatprep.subr.mxu0 %v678
  %1273 = vmatpush2.msra.mxu0 %v677
  %1274 = vmatprep.subr.mxu0 %v672
  %1275 = vmatpush2.msra.mxu0 %v671
  %1276 = vmatprep.subr.mxu0 %v666
  %1277 = vmatpush2.msra.mxu0 %v665
  %1278 = vmatprep.subr.mxu0 %v660
  %1279 = vmatpush2.msra.mxu0 %v659
  %1280 = vmatprep.subr.mxu0 %v654
  %1281 = vmatpush2.msra.mxu0 %v653
  %1282 = vmatprep.mubr.f32.mxu0 %v1072
  %1283 = vmatmul.mubr.f32.gmra.mxu0 %v1033
  %v1284 = vpop.f32.mrf.mxu0
  %v1285 = vadd.f32 %v766, %v1284
  %v1286 = vpop.f32.mrf.mxu0
  %v1287 = vadd.f32 %v770, %v1286
  %1288 = vdwg.mxu0
  %vm1289 = vcmp.gt.s32.totalorder %v552, 1
  %v1290 = vsel %vm1289, 1, 0
  %v1291 = vcvt.s32.f32 %v1290
  %vm1292 = vcmp.gt.s32.totalorder %v552, 6
  %v1293 = vsel %vm1292, 1, 0
  %v1294 = vcvt.s32.f32 %v1293
  %s1295 = scalar_lea.vmem [#allocation2], 48
  %v1296 = vld [vmem:[%s1295] sm:$0xff]
  %v1297 = vld [vmem:[%s1295 + $0x8] sm:$0xff]
  %v1298 = vld [vmem:[%s1295 + $0x10] sm:$0xff]
  %v1299 = vadd.f32 %v1296, %v1143
  %v1300 = vxor.u32 %v1299, 2147483648
  %v1301 = vmul.f32 %v1300, 1.442695
  %v1302 = vpow.pop %v1301
  %v1303 = vadd.f32 %v1302, 1.0
  %v1304 = vrcp.pop %v1303
  %v1305 = vmul.f32 1.0, %v1304
  %v1306 = vadd.f32 %v1297, %v1145
  %v1307 = vxor.u32 %v1306, 2147483648
  %v1308 = vmul.f32 %v1307, 1.442695
  %v1309 = vpow.pop %v1308
  %v1310 = vadd.f32 %v1309, 1.0
  %v1311 = vrcp.pop %v1310
  %v1312 = vmul.f32 1.0, %v1311
  %v1313 = vmul.f32 %v1305, %v1214
  %v1314 = vadd.f32 %v1298, %v1313
  %v1315 = vtanh.pop %v1314
  %v1316 = vsub.f32 1.0, %v1312
  %v1317 = vmul.f32 %v1316, %v1315
  %v1318 = vmul.f32 %v1312, %v1033
  %v1319 = vadd.f32 %v1317, %v1318
  %1321 = vset.pattern.permute.xlu0 0
  %1322 = vperm.xlu0 %1321, %v1291
  %v1323 = vpop.permute.xlu0 %1322
  %v1325 = vmul.f32 %v1323, %v1319
  %v1326 = vsub.f32 1.0, %v1291
  %1328 = vset.pattern.permute.xlu0 0
  %1329 = vperm.xlu0 %1328, %v1326
  %v1330 = vpop.permute.xlu0 %1329
  %v1332 = vmul.f32 %v1330, %v1033
  %v1333 = vadd.f32 %v1325, %v1332
  %s1334 = scalar_lea.vmem [#allocation2], 288
  %v1335 = vld [vmem:[%s1334 + $0x18] sm:$0xff]
  %v1336 = vld [vmem:[%s1334 + $0x20] sm:$0xff]
  %v1337 = vld [vmem:[%s1334 + $0x28] sm:$0xff]
  %v1338 = vadd.f32 %v1335, %v1216
  %v1339 = vxor.u32 %v1338, 2147483648
  %v1340 = vmul.f32 %v1339, 1.442695
  %v1341 = vpow.pop %v1340
  %v1342 = vadd.f32 %v1341, 1.0
  %v1343 = vrcp.pop %v1342
  %v1344 = vmul.f32 1.0, %v1343
  %v1345 = vadd.f32 %v1336, %v1285
  %v1346 = vxor.u32 %v1345, 2147483648
  %v1347 = vmul.f32 %v1346, 1.442695
  %v1348 = vpow.pop %v1347
  %v1349 = vadd.f32 %v1348, 1.0
  %v1350 = vrcp.pop %v1349
  %v1351 = vmul.f32 1.0, %v1350
  %v1352 = vmul.f32 %v1344, %v1287
  %v1353 = vadd.f32 %v1337, %v1352
  %v1354 = vtanh.pop %v1353
  %v1355 = vsub.f32 1.0, %v1351
  %v1356 = vmul.f32 %v1355, %v1354
  %v1357 = vmul.f32 %v1351, %v1072
  %v1358 = vadd.f32 %v1356, %v1357
  %1360 = vset.pattern.permute.xlu0 0
  %1361 = vperm.xlu0 %1360, %v1294
  %v1362 = vpop.permute.xlu0 %1361
  %v1364 = vmul.f32 %v1362, %v1358
  %v1365 = vsub.f32 1.0, %v1294
  %1367 = vset.pattern.permute.xlu0 0
  %1368 = vperm.xlu0 %1367, %v1365
  %v1369 = vpop.permute.xlu0 %1368
  %v1371 = vmul.f32 %v1369, %v1072
  %v1372 = vadd.f32 %v1364, %v1371
  %s1373 = scalar_lea.vmem %s8, 16
  %1374 = vst [vmem:[%s1373] sm:$0xff] %v1325
  %s1375 = scalar_lea.vmem %s8, 96
  %1376 = vst [vmem:[%s1375 + $0x8] sm:$0xff] %v1364
  %1377 = vmatprep.subr.mxu0 %v644
  %1378 = vmatpush1.msra.mxu0 %v643
  %1379 = vmatprep.subr.mxu0 %v638
  %1380 = vmatpush1.msra.mxu0 %v637
  %1381 = vmatprep.subr.mxu0 %v632
  %1382 = vmatpush1.msra.mxu0 %v631
  %1383 = vmatprep.subr.mxu0 %v626
  %1384 = vmatpush1.msra.mxu0 %v625
  %1385 = vmatprep.subr.mxu0 %v620
  %1386 = vmatpush1.msra.mxu0 %v619
  %1387 = vmatprep.subr.mxu0 %v614
  %1388 = vmatpush1.msra.mxu0 %v613
  %1389 = vmatprep.subr.mxu0 %v608
  %1390 = vmatpush1.msra.mxu0 %v607
  %1391 = vmatprep.subr.mxu0 %v602
  %1392 = vmatpush1.msra.mxu0 %v601
  %1393 = vmatprep.subr.mxu0 %v596
  %1394 = vmatpush1.msra.mxu0 %v595
  %1395 = vmatprep.subr.mxu0 %v590
  %1396 = vmatpush1.msra.mxu0 %v589
  %1397 = vmatprep.subr.mxu0 %v584
  %1398 = vmatpush1.msra.mxu0 %v583
  %1399 = vmatprep.subr.mxu0 %v578
  %1400 = vmatpush1.msra.mxu0 %v577
  %1401 = vmatprep.subr.mxu0 %v572
  %1402 = vmatpush1.msra.mxu0 %v571
  %1403 = vmatprep.subr.mxu0 %v566
  %1404 = vmatpush1.msra.mxu0 %v565
  %1405 = vmatprep.subr.mxu0 %v560
  %1406 = vmatpush1.msra.mxu0 %v559
  %1407 = vmatprep.subr.mxu0 %v554
  %1408 = vmatpush1.msra.mxu0 %v553
  %1409 = vmatprep.subr.mxu0 %v740
  %1410 = vmatpush2.msra.mxu0 %v739
  %1411 = vmatprep.subr.mxu0 %v734
  %1412 = vmatpush2.msra.mxu0 %v733
  %1413 = vmatprep.subr.mxu0 %v728
  %1414 = vmatpush2.msra.mxu0 %v727
  %1415 = vmatprep.subr.mxu0 %v722
  %1416 = vmatpush2.msra.mxu0 %v721
  %1417 = vmatprep.subr.mxu0 %v716
  %1418 = vmatpush2.msra.mxu0 %v715
  %1419 = vmatprep.subr.mxu0 %v710
  %1420 = vmatpush2.msra.mxu0 %v709
  %1421 = vmatprep.subr.mxu0 %v704
  %1422 = vmatpush2.msra.mxu0 %v703
  %1423 = vmatprep.subr.mxu0 %v698
  %1424 = vmatpush2.msra.mxu0 %v697
  %1425 = vmatprep.subr.mxu0 %v692
  %1426 = vmatpush2.msra.mxu0 %v691
  %1427 = vmatprep.subr.mxu0 %v686
  %1428 = vmatpush2.msra.mxu0 %v685
  %1429 = vmatprep.subr.mxu0 %v680
  %1430 = vmatpush2.msra.mxu0 %v679
  %1431 = vmatprep.subr.mxu0 %v674
  %1432 = vmatpush2.msra.mxu0 %v673
  %1433 = vmatprep.subr.mxu0 %v668
  %1434 = vmatpush2.msra.mxu0 %v667
  %1435 = vmatprep.subr.mxu0 %v662
  %1436 = vmatpush2.msra.mxu0 %v661
  %1437 = vmatprep.subr.mxu0 %v656
  %1438 = vmatpush2.msra.mxu0 %v655
  %1439 = vmatprep.subr.mxu0 %v650
  %1440 = vmatpush2.msra.mxu0 %v649
  %1441 = vmatprep.mubr.f32.mxu0 %v1372
  %1442 = vmatmul.mubr.f32.gmra.mxu0 %v1333
  %v1443 = vpop.f32.mrf.mxu0
  %v1444 = vadd.f32 %v750, %v1443
  %v1445 = vpop.f32.mrf.mxu0
  %v1446 = vadd.f32 %v754, %v1445
  %1447 = vdwg.mxu0
  %1448 = vmatprep.subr.mxu0 %v646
  %1449 = vmatpush1.msra.mxu0 %v645
  %1450 = vmatprep.subr.mxu0 %v640
  %1451 = vmatpush1.msra.mxu0 %v639
  %1452 = vmatprep.subr.mxu0 %v634
  %1453 = vmatpush1.msra.mxu0 %v633
  %1454 = vmatprep.subr.mxu0 %v628
  %1455 = vmatpush1.msra.mxu0 %v627
  %1456 = vmatprep.subr.mxu0 %v622
  %1457 = vmatpush1.msra.mxu0 %v621
  %1458 = vmatprep.subr.mxu0 %v616
  %1459 = vmatpush1.msra.mxu0 %v615
  %1460 = vmatprep.subr.mxu0 %v610
  %1461 = vmatpush1.msra.mxu0 %v609
  %1462 = vmatprep.subr.mxu0 %v604
  %1463 = vmatpush1.msra.mxu0 %v603
  %1464 = vmatprep.subr.mxu0 %v598
  %1465 = vmatpush1.msra.mxu0 %v597
  %1466 = vmatprep.subr.mxu0 %v592
  %1467 = vmatpush1.msra.mxu0 %v591
  %1468 = vmatprep.subr.mxu0 %v586
  %1469 = vmatpush1.msra.mxu0 %v585
  %1470 = vmatprep.subr.mxu0 %v580
  %1471 = vmatpush1.msra.mxu0 %v579
  %1472 = vmatprep.subr.mxu0 %v574
  %1473 = vmatpush1.msra.mxu0 %v573
  %1474 = vmatprep.subr.mxu0 %v568
  %1475 = vmatpush1.msra.mxu0 %v567
  %1476 = vmatprep.subr.mxu0 %v562
  %1477 = vmatpush1.msra.mxu0 %v561
  %1478 = vmatprep.subr.mxu0 %v556
  %1479 = vmatpush1.msra.mxu0 %v555
  %1480 = vmatprep.subr.mxu0 %v742
  %1481 = vmatpush2.msra.mxu0 %v741
  %1482 = vmatprep.subr.mxu0 %v736
  %1483 = vmatpush2.msra.mxu0 %v735
  %1484 = vmatprep.subr.mxu0 %v730
  %1485 = vmatpush2.msra.mxu0 %v729
  %1486 = vmatprep.subr.mxu0 %v724
  %1487 = vmatpush2.msra.mxu0 %v723
  %1488 = vmatprep.subr.mxu0 %v718
  %1489 = vmatpush2.msra.mxu0 %v717
  %1490 = vmatprep.subr.mxu0 %v712
  %1491 = vmatpush2.msra.mxu0 %v711
  %1492 = vmatprep.subr.mxu0 %v706
  %1493 = vmatpush2.msra.mxu0 %v705
  %1494 = vmatprep.subr.mxu0 %v700
  %1495 = vmatpush2.msra.mxu0 %v699
  %1496 = vmatprep.subr.mxu0 %v694
  %1497 = vmatpush2.msra.mxu0 %v693
  %1498 = vmatprep.subr.mxu0 %v688
  %1499 = vmatpush2.msra.mxu0 %v687
  %1500 = vmatprep.subr.mxu0 %v682
  %1501 = vmatpush2.msra.mxu0 %v681
  %1502 = vmatprep.subr.mxu0 %v676
  %1503 = vmatpush2.msra.mxu0 %v675
  %1504 = vmatprep.subr.mxu0 %v670
  %1505 = vmatpush2.msra.mxu0 %v669
  %1506 = vmatprep.subr.mxu0 %v664
  %1507 = vmatpush2.msra.mxu0 %v663
  %1508 = vmatprep.subr.mxu0 %v658
  %1509 = vmatpush2.msra.mxu0 %v657
  %1510 = vmatprep.subr.mxu0 %v652
  %1511 = vmatpush2.msra.mxu0 %v651
  %1512 = vmatprep.mubr.f32.mxu0 %v1372
  %1513 = vmatmul.mubr.f32.gmra.mxu0 %v1333
  %v1514 = vpop.f32.mrf.mxu0
  %v1515 = vadd.f32 %v758, %v1514
  %v1516 = vpop.f32.mrf.mxu0
  %v1517 = vadd.f32 %v762, %v1516
  %1518 = vdwg.mxu0
  %1519 = vmatprep.subr.mxu0 %v648
  %1520 = vmatpush1.msra.mxu0 %v647
  %1521 = vmatprep.subr.mxu0 %v642
  %1522 = vmatpush1.msra.mxu0 %v641
  %1523 = vmatprep.subr.mxu0 %v636
  %1524 = vmatpush1.msra.mxu0 %v635
  %1525 = vmatprep.subr.mxu0 %v630
  %1526 = vmatpush1.msra.mxu0 %v629
  %1527 = vmatprep.subr.mxu0 %v624
  %1528 = vmatpush1.msra.mxu0 %v623
  %1529 = vmatprep.subr.mxu0 %v618
  %1530 = vmatpush1.msra.mxu0 %v617
  %1531 = vmatprep.subr.mxu0 %v612
  %1532 = vmatpush1.msra.mxu0 %v611
  %1533 = vmatprep.subr.mxu0 %v606
  %1534 = vmatpush1.msra.mxu0 %v605
  %1535 = vmatprep.subr.mxu0 %v600
  %1536 = vmatpush1.msra.mxu0 %v599
  %1537 = vmatprep.subr.mxu0 %v594
  %1538 = vmatpush1.msra.mxu0 %v593
  %1539 = vmatprep.subr.mxu0 %v588
  %1540 = vmatpush1.msra.mxu0 %v587
  %1541 = vmatprep.subr.mxu0 %v582
  %1542 = vmatpush1.msra.mxu0 %v581
  %1543 = vmatprep.subr.mxu0 %v576
  %1544 = vmatpush1.msra.mxu0 %v575
  %1545 = vmatprep.subr.mxu0 %v570
  %1546 = vmatpush1.msra.mxu0 %v569
  %1547 = vmatprep.subr.mxu0 %v564
  %1548 = vmatpush1.msra.mxu0 %v563
  %1549 = vmatprep.subr.mxu0 %v558
  %1550 = vmatpush1.msra.mxu0 %v557
  %1551 = vmatprep.subr.mxu0 %v744
  %1552 = vmatpush2.msra.mxu0 %v743
  %1553 = vmatprep.subr.mxu0 %v738
  %1554 = vmatpush2.msra.mxu0 %v737
  %1555 = vmatprep.subr.mxu0 %v732
  %1556 = vmatpush2.msra.mxu0 %v731
  %1557 = vmatprep.subr.mxu0 %v726
  %1558 = vmatpush2.msra.mxu0 %v725
  %1559 = vmatprep.subr.mxu0 %v720
  %1560 = vmatpush2.msra.mxu0 %v719
  %1561 = vmatprep.subr.mxu0 %v714
  %1562 = vmatpush2.msra.mxu0 %v713
  %1563 = vmatprep.subr.mxu0 %v708
  %1564 = vmatpush2.msra.mxu0 %v707
  %1565 = vmatprep.subr.mxu0 %v702
  %1566 = vmatpush2.msra.mxu0 %v701
  %1567 = vmatprep.subr.mxu0 %v696
  %1568 = vmatpush2.msra.mxu0 %v695
  %1569 = vmatprep.subr.mxu0 %v690
  %1570 = vmatpush2.msra.mxu0 %v689
  %1571 = vmatprep.subr.mxu0 %v684
  %1572 = vmatpush2.msra.mxu0 %v683
  %1573 = vmatprep.subr.mxu0 %v678
  %1574 = vmatpush2.msra.mxu0 %v677
  %1575 = vmatprep.subr.mxu0 %v672
  %1576 = vmatpush2.msra.mxu0 %v671
  %1577 = vmatprep.subr.mxu0 %v666
  %1578 = vmatpush2.msra.mxu0 %v665
  %1579 = vmatprep.subr.mxu0 %v660
  %1580 = vmatpush2.msra.mxu0 %v659
  %1581 = vmatprep.subr.mxu0 %v654
  %1582 = vmatpush2.msra.mxu0 %v653
  %1583 = vmatprep.mubr.f32.mxu0 %v1372
  %1584 = vmatmul.mubr.f32.gmra.mxu0 %v1333
  %v1585 = vpop.f32.mrf.mxu0
  %v1586 = vadd.f32 %v766, %v1585
  %v1587 = vpop.f32.mrf.mxu0
  %v1588 = vadd.f32 %v770, %v1587
  %1589 = vdwg.mxu0
  %vm1590 = vcmp.gt.s32.totalorder %v552, 2
  %v1591 = vsel %vm1590, 1, 0
  %v1592 = vcvt.s32.f32 %v1591
  %vm1593 = vcmp.gt.s32.totalorder %v552, 5
  %v1594 = vsel %vm1593, 1, 0
  %v1595 = vcvt.s32.f32 %v1594
  %s1596 = scalar_lea.vmem [#allocation2], 96
  %v1597 = vld [vmem:[%s1596] sm:$0xff]
  %v1598 = vld [vmem:[%s1596 + $0x8] sm:$0xff]
  %v1599 = vld [vmem:[%s1596 + $0x10] sm:$0xff]
  %v1600 = vadd.f32 %v1597, %v1444
  %v1601 = vxor.u32 %v1600, 2147483648
  %v1602 = vmul.f32 %v1601, 1.442695
  %v1603 = vpow.pop %v1602
  %v1604 = vadd.f32 %v1603, 1.0
  %v1605 = vrcp.pop %v1604
  %v1606 = vmul.f32 1.0, %v1605
  %v1607 = vadd.f32 %v1598, %v1446
  %v1608 = vxor.u32 %v1607, 2147483648
  %v1609 = vmul.f32 %v1608, 1.442695
  %v1610 = vpow.pop %v1609
  %v1611 = vadd.f32 %v1610, 1.0
  %v1612 = vrcp.pop %v1611
  %v1613 = vmul.f32 1.0, %v1612
  %v1614 = vmul.f32 %v1606, %v1515
  %v1615 = vadd.f32 %v1599, %v1614
  %v1616 = vtanh.pop %v1615
  %v1617 = vsub.f32 1.0, %v1613
  %v1618 = vmul.f32 %v1617, %v1616
  %v1619 = vmul.f32 %v1613, %v1333
  %v1620 = vadd.f32 %v1618, %v1619
  %1622 = vset.pattern.permute.xlu0 0
  %1623 = vperm.xlu0 %1622, %v1592
  %v1624 = vpop.permute.xlu0 %1623
  %v1626 = vmul.f32 %v1624, %v1620
  %v1627 = vsub.f32 1.0, %v1592
  %1629 = vset.pattern.permute.xlu0 0
  %1630 = vperm.xlu0 %1629, %v1627
  %v1631 = vpop.permute.xlu0 %1630
  %v1633 = vmul.f32 %v1631, %v1333
  %v1634 = vadd.f32 %v1626, %v1633
  %s1635 = scalar_lea.vmem [#allocation2], 240
  %v1636 = vld [vmem:[%s1635 + $0x18] sm:$0xff]
  %v1637 = vld [vmem:[%s1635 + $0x20] sm:$0xff]
  %v1638 = vld [vmem:[%s1635 + $0x28] sm:$0xff]
  %v1639 = vadd.f32 %v1636, %v1517
  %v1640 = vxor.u32 %v1639, 2147483648
  %v1641 = vmul.f32 %v1640, 1.442695
  %v1642 = vpow.pop %v1641
  %v1643 = vadd.f32 %v1642, 1.0
  %v1644 = vrcp.pop %v1643
  %v1645 = vmul.f32 1.0, %v1644
  %v1646 = vadd.f32 %v1637, %v1586
  %v1647 = vxor.u32 %v1646, 2147483648
  %v1648 = vmul.f32 %v1647, 1.442695
  %v1649 = vpow.pop %v1648
  %v1650 = vadd.f32 %v1649, 1.0
  %v1651 = vrcp.pop %v1650
  %v1652 = vmul.f32 1.0, %v1651
  %v1653 = vmul.f32 %v1645, %v1588
  %v1654 = vadd.f32 %v1638, %v1653
  %v1655 = vtanh.pop %v1654
  %v1656 = vsub.f32 1.0, %v1652
  %v1657 = vmul.f32 %v1656, %v1655
  %v1658 = vmul.f32 %v1652, %v1372
  %v1659 = vadd.f32 %v1657, %v1658
  %1661 = vset.pattern.permute.xlu0 0
  %1662 = vperm.xlu0 %1661, %v1595
  %v1663 = vpop.permute.xlu0 %1662
  %v1665 = vmul.f32 %v1663, %v1659
  %v1666 = vsub.f32 1.0, %v1595
  %1668 = vset.pattern.permute.xlu0 0
  %1669 = vperm.xlu0 %1668, %v1666
  %v1670 = vpop.permute.xlu0 %1669
  %v1672 = vmul.f32 %v1670, %v1372
  %v1673 = vadd.f32 %v1665, %v1672
  %s1674 = scalar_lea.vmem %s8, 32
  %1675 = vst [vmem:[%s1674] sm:$0xff] %v1626
  %s1676 = scalar_lea.vmem %s8, 80
  %1677 = vst [vmem:[%s1676 + $0x8] sm:$0xff] %v1665
  %1678 = vmatprep.subr.mxu0 %v644
  %1679 = vmatpush1.msra.mxu0 %v643
  %1680 = vmatprep.subr.mxu0 %v638
  %1681 = vmatpush1.msra.mxu0 %v637
  %1682 = vmatprep.subr.mxu0 %v632
  %1683 = vmatpush1.msra.mxu0 %v631
  %1684 = vmatprep.subr.mxu0 %v626
  %1685 = vmatpush1.msra.mxu0 %v625
  %1686 = vmatprep.subr.mxu0 %v620
  %1687 = vmatpush1.msra.mxu0 %v619
  %1688 = vmatprep.subr.mxu0 %v614
  %1689 = vmatpush1.msra.mxu0 %v613
  %1690 = vmatprep.subr.mxu0 %v608
  %1691 = vmatpush1.msra.mxu0 %v607
  %1692 = vmatprep.subr.mxu0 %v602
  %1693 = vmatpush1.msra.mxu0 %v601
  %1694 = vmatprep.subr.mxu0 %v596
  %1695 = vmatpush1.msra.mxu0 %v595
  %1696 = vmatprep.subr.mxu0 %v590
  %1697 = vmatpush1.msra.mxu0 %v589
  %1698 = vmatprep.subr.mxu0 %v584
  %1699 = vmatpush1.msra.mxu0 %v583
  %1700 = vmatprep.subr.mxu0 %v578
  %1701 = vmatpush1.msra.mxu0 %v577
  %1702 = vmatprep.subr.mxu0 %v572
  %1703 = vmatpush1.msra.mxu0 %v571
  %1704 = vmatprep.subr.mxu0 %v566
  %1705 = vmatpush1.msra.mxu0 %v565
  %1706 = vmatprep.subr.mxu0 %v560
  %1707 = vmatpush1.msra.mxu0 %v559
  %1708 = vmatprep.subr.mxu0 %v554
  %1709 = vmatpush1.msra.mxu0 %v553
  %1710 = vmatprep.subr.mxu0 %v740
  %1711 = vmatpush2.msra.mxu0 %v739
  %1712 = vmatprep.subr.mxu0 %v734
  %1713 = vmatpush2.msra.mxu0 %v733
  %1714 = vmatprep.subr.mxu0 %v728
  %1715 = vmatpush2.msra.mxu0 %v727
  %1716 = vmatprep.subr.mxu0 %v722
  %1717 = vmatpush2.msra.mxu0 %v721
  %1718 = vmatprep.subr.mxu0 %v716
  %1719 = vmatpush2.msra.mxu0 %v715
  %1720 = vmatprep.subr.mxu0 %v710
  %1721 = vmatpush2.msra.mxu0 %v709
  %1722 = vmatprep.subr.mxu0 %v704
  %1723 = vmatpush2.msra.mxu0 %v703
  %1724 = vmatprep.subr.mxu0 %v698
  %1725 = vmatpush2.msra.mxu0 %v697
  %1726 = vmatprep.subr.mxu0 %v692
  %1727 = vmatpush2.msra.mxu0 %v691
  %1728 = vmatprep.subr.mxu0 %v686
  %1729 = vmatpush2.msra.mxu0 %v685
  %1730 = vmatprep.subr.mxu0 %v680
  %1731 = vmatpush2.msra.mxu0 %v679
  %1732 = vmatprep.subr.mxu0 %v674
  %1733 = vmatpush2.msra.mxu0 %v673
  %1734 = vmatprep.subr.mxu0 %v668
  %1735 = vmatpush2.msra.mxu0 %v667
  %1736 = vmatprep.subr.mxu0 %v662
  %1737 = vmatpush2.msra.mxu0 %v661
  %1738 = vmatprep.subr.mxu0 %v656
  %1739 = vmatpush2.msra.mxu0 %v655
  %1740 = vmatprep.subr.mxu0 %v650
  %1741 = vmatpush2.msra.mxu0 %v649
  %1742 = vmatprep.mubr.f32.mxu0 %v1673
  %1743 = vmatmul.mubr.f32.gmra.mxu0 %v1634
  %v1744 = vpop.f32.mrf.mxu0
  %v1745 = vadd.f32 %v750, %v1744
  %v1746 = vpop.f32.mrf.mxu0
  %v1747 = vadd.f32 %v754, %v1746
  %1748 = vdwg.mxu0
  %1749 = vmatprep.subr.mxu0 %v646
  %1750 = vmatpush1.msra.mxu0 %v645
  %1751 = vmatprep.subr.mxu0 %v640
  %1752 = vmatpush1.msra.mxu0 %v639
  %1753 = vmatprep.subr.mxu0 %v634
  %1754 = vmatpush1.msra.mxu0 %v633
  %1755 = vmatprep.subr.mxu0 %v628
  %1756 = vmatpush1.msra.mxu0 %v627
  %1757 = vmatprep.subr.mxu0 %v622
  %1758 = vmatpush1.msra.mxu0 %v621
  %1759 = vmatprep.subr.mxu0 %v616
  %1760 = vmatpush1.msra.mxu0 %v615
  %1761 = vmatprep.subr.mxu0 %v610
  %1762 = vmatpush1.msra.mxu0 %v609
  %1763 = vmatprep.subr.mxu0 %v604
  %1764 = vmatpush1.msra.mxu0 %v603
  %1765 = vmatprep.subr.mxu0 %v598
  %1766 = vmatpush1.msra.mxu0 %v597
  %1767 = vmatprep.subr.mxu0 %v592
  %1768 = vmatpush1.msra.mxu0 %v591
  %1769 = vmatprep.subr.mxu0 %v586
  %1770 = vmatpush1.msra.mxu0 %v585
  %1771 = vmatprep.subr.mxu0 %v580
  %1772 = vmatpush1.msra.mxu0 %v579
  %1773 = vmatprep.subr.mxu0 %v574
  %1774 = vmatpush1.msra.mxu0 %v573
  %1775 = vmatprep.subr.mxu0 %v568
  %1776 = vmatpush1.msra.mxu0 %v567
  %1777 = vmatprep.subr.mxu0 %v562
  %1778 = vmatpush1.msra.mxu0 %v561
  %1779 = vmatprep.subr.mxu0 %v556
  %1780 = vmatpush1.msra.mxu0 %v555
  %1781 = vmatprep.subr.mxu0 %v742
  %1782 = vmatpush2.msra.mxu0 %v741
  %1783 = vmatprep.subr.mxu0 %v736
  %1784 = vmatpush2.msra.mxu0 %v735
  %1785 = vmatprep.subr.mxu0 %v730
  %1786 = vmatpush2.msra.mxu0 %v729
  %1787 = vmatprep.subr.mxu0 %v724
  %1788 = vmatpush2.msra.mxu0 %v723
  %1789 = vmatprep.subr.mxu0 %v718
  %1790 = vmatpush2.msra.mxu0 %v717
  %1791 = vmatprep.subr.mxu0 %v712
  %1792 = vmatpush2.msra.mxu0 %v711
  %1793 = vmatprep.subr.mxu0 %v706
  %1794 = vmatpush2.msra.mxu0 %v705
  %1795 = vmatprep.subr.mxu0 %v700
  %1796 = vmatpush2.msra.mxu0 %v699
  %1797 = vmatprep.subr.mxu0 %v694
  %1798 = vmatpush2.msra.mxu0 %v693
  %1799 = vmatprep.subr.mxu0 %v688
  %1800 = vmatpush2.msra.mxu0 %v687
  %1801 = vmatprep.subr.mxu0 %v682
  %1802 = vmatpush2.msra.mxu0 %v681
  %1803 = vmatprep.subr.mxu0 %v676
  %1804 = vmatpush2.msra.mxu0 %v675
  %1805 = vmatprep.subr.mxu0 %v670
  %1806 = vmatpush2.msra.mxu0 %v669
  %1807 = vmatprep.subr.mxu0 %v664
  %1808 = vmatpush2.msra.mxu0 %v663
  %1809 = vmatprep.subr.mxu0 %v658
  %1810 = vmatpush2.msra.mxu0 %v657
  %1811 = vmatprep.subr.mxu0 %v652
  %1812 = vmatpush2.msra.mxu0 %v651
  %1813 = vmatprep.mubr.f32.mxu0 %v1673
  %1814 = vmatmul.mubr.f32.gmra.mxu0 %v1634
  %v1815 = vpop.f32.mrf.mxu0
  %v1816 = vadd.f32 %v758, %v1815
  %v1817 = vpop.f32.mrf.mxu0
  %v1818 = vadd.f32 %v762, %v1817
  %1819 = vdwg.mxu0
  %1820 = vmatprep.subr.mxu0 %v648
  %1821 = vmatpush1.msra.mxu0 %v647
  %1822 = vmatprep.subr.mxu0 %v642
  %1823 = vmatpush1.msra.mxu0 %v641
  %1824 = vmatprep.subr.mxu0 %v636
  %1825 = vmatpush1.msra.mxu0 %v635
  %1826 = vmatprep.subr.mxu0 %v630
  %1827 = vmatpush1.msra.mxu0 %v629
  %1828 = vmatprep.subr.mxu0 %v624
  %1829 = vmatpush1.msra.mxu0 %v623
  %1830 = vmatprep.subr.mxu0 %v618
  %1831 = vmatpush1.msra.mxu0 %v617
  %1832 = vmatprep.subr.mxu0 %v612
  %1833 = vmatpush1.msra.mxu0 %v611
  %1834 = vmatprep.subr.mxu0 %v606
  %1835 = vmatpush1.msra.mxu0 %v605
  %1836 = vmatprep.subr.mxu0 %v600
  %1837 = vmatpush1.msra.mxu0 %v599
  %1838 = vmatprep.subr.mxu0 %v594
  %1839 = vmatpush1.msra.mxu0 %v593
  %1840 = vmatprep.subr.mxu0 %v588
  %1841 = vmatpush1.msra.mxu0 %v587
  %1842 = vmatprep.subr.mxu0 %v582
  %1843 = vmatpush1.msra.mxu0 %v581
  %1844 = vmatprep.subr.mxu0 %v576
  %1845 = vmatpush1.msra.mxu0 %v575
  %1846 = vmatprep.subr.mxu0 %v570
  %1847 = vmatpush1.msra.mxu0 %v569
  %1848 = vmatprep.subr.mxu0 %v564
  %1849 = vmatpush1.msra.mxu0 %v563
  %1850 = vmatprep.subr.mxu0 %v558
  %1851 = vmatpush1.msra.mxu0 %v557
  %1852 = vmatprep.subr.mxu0 %v744
  %1853 = vmatpush2.msra.mxu0 %v743
  %1854 = vmatprep.subr.mxu0 %v738
  %1855 = vmatpush2.msra.mxu0 %v737
  %1856 = vmatprep.subr.mxu0 %v732
  %1857 = vmatpush2.msra.mxu0 %v731
  %1858 = vmatprep.subr.mxu0 %v726
  %1859 = vmatpush2.msra.mxu0 %v725
  %1860 = vmatprep.subr.mxu0 %v720
  %1861 = vmatpush2.msra.mxu0 %v719
  %1862 = vmatprep.subr.mxu0 %v714
  %1863 = vmatpush2.msra.mxu0 %v713
  %1864 = vmatprep.subr.mxu0 %v708
  %1865 = vmatpush2.msra.mxu0 %v707
  %1866 = vmatprep.subr.mxu0 %v702
  %1867 = vmatpush2.msra.mxu0 %v701
  %1868 = vmatprep.subr.mxu0 %v696
  %1869 = vmatpush2.msra.mxu0 %v695
  %1870 = vmatprep.subr.mxu0 %v690
  %1871 = vmatpush2.msra.mxu0 %v689
  %1872 = vmatprep.subr.mxu0 %v684
  %1873 = vmatpush2.msra.mxu0 %v683
  %1874 = vmatprep.subr.mxu0 %v678
  %1875 = vmatpush2.msra.mxu0 %v677
  %1876 = vmatprep.subr.mxu0 %v672
  %1877 = vmatpush2.msra.mxu0 %v671
  %1878 = vmatprep.subr.mxu0 %v666
  %1879 = vmatpush2.msra.mxu0 %v665
  %1880 = vmatprep.subr.mxu0 %v660
  %1881 = vmatpush2.msra.mxu0 %v659
  %1882 = vmatprep.subr.mxu0 %v654
  %1883 = vmatpush2.msra.mxu0 %v653
  %1884 = vmatprep.mubr.f32.mxu0 %v1673
  %1885 = vmatmul.mubr.f32.gmra.mxu0 %v1634
  %v1886 = vpop.f32.mrf.mxu0
  %v1887 = vadd.f32 %v766, %v1886
  %v1888 = vpop.f32.mrf.mxu0
  %v1889 = vadd.f32 %v770, %v1888
  %1890 = vdwg.mxu0
  %vm1891 = vcmp.gt.s32.totalorder %v552, 3
  %v1892 = vsel %vm1891, 1, 0
  %v1893 = vcvt.s32.f32 %v1892
  %vm1894 = vcmp.gt.s32.totalorder %v552, 4
  %v1895 = vsel %vm1894, 1, 0
  %v1896 = vcvt.s32.f32 %v1895
  %s1897 = scalar_lea.vmem [#allocation2], 144
  %v1898 = vld [vmem:[%s1897] sm:$0xff]
  %v1899 = vld [vmem:[%s1897 + $0x8] sm:$0xff]
  %v1900 = vld [vmem:[%s1897 + $0x10] sm:$0xff]
  %v1901 = vadd.f32 %v1898, %v1745
  %v1902 = vxor.u32 %v1901, 2147483648
  %v1903 = vmul.f32 %v1902, 1.442695
  %v1904 = vpow.pop %v1903
  %v1905 = vadd.f32 %v1904, 1.0
  %v1906 = vrcp.pop %v1905
  %v1907 = vmul.f32 1.0, %v1906
  %v1908 = vadd.f32 %v1899, %v1747
  %v1909 = vxor.u32 %v1908, 2147483648
  %v1910 = vmul.f32 %v1909, 1.442695
  %v1911 = vpow.pop %v1910
  %v1912 = vadd.f32 %v1911, 1.0
  %v1913 = vrcp.pop %v1912
  %v1914 = vmul.f32 1.0, %v1913
  %v1915 = vmul.f32 %v1907, %v1816
  %v1916 = vadd.f32 %v1900, %v1915
  %v1917 = vtanh.pop %v1916
  %v1918 = vsub.f32 1.0, %v1914
  %v1919 = vmul.f32 %v1918, %v1917
  %v1920 = vmul.f32 %v1914, %v1634
  %v1921 = vadd.f32 %v1919, %v1920
  %1923 = vset.pattern.permute.xlu0 0
  %1924 = vperm.xlu0 %1923, %v1893
  %v1925 = vpop.permute.xlu0 %1924
  %v1927 = vmul.f32 %v1925, %v1921
  %v1928 = vsub.f32 1.0, %v1893
  %1930 = vset.pattern.permute.xlu0 0
  %1931 = vperm.xlu0 %1930, %v1928
  %v1932 = vpop.permute.xlu0 %1931
  %v1934 = vmul.f32 %v1932, %v1634
  %v1935 = vadd.f32 %v1927, %v1934
  %s1936 = scalar_lea.vmem [#allocation2], 192
  %v1937 = vld [vmem:[%s1936 + $0x18] sm:$0xff]
  %v1938 = vld [vmem:[%s1936 + $0x20] sm:$0xff]
  %v1939 = vld [vmem:[%s1936 + $0x28] sm:$0xff]
  %v1940 = vadd.f32 %v1937, %v1818
  %v1941 = vxor.u32 %v1940, 2147483648
  %v1942 = vmul.f32 %v1941, 1.442695
  %v1943 = vpow.pop %v1942
  %v1944 = vadd.f32 %v1943, 1.0
  %v1945 = vrcp.pop %v1944
  %v1946 = vmul.f32 1.0, %v1945
  %v1947 = vadd.f32 %v1938, %v1887
  %v1948 = vxor.u32 %v1947, 2147483648
  %v1949 = vmul.f32 %v1948, 1.442695
  %v1950 = vpow.pop %v1949
  %v1951 = vadd.f32 %v1950, 1.0
  %v1952 = vrcp.pop %v1951
  %v1953 = vmul.f32 1.0, %v1952
  %v1954 = vmul.f32 %v1946, %v1889
  %v1955 = vadd.f32 %v1939, %v1954
  %v1956 = vtanh.pop %v1955
  %v1957 = vsub.f32 1.0, %v1953
  %v1958 = vmul.f32 %v1957, %v1956
  %v1959 = vmul.f32 %v1953, %v1673
  %v1960 = vadd.f32 %v1958, %v1959
  %1962 = vset.pattern.permute.xlu0 0
  %1963 = vperm.xlu0 %1962, %v1896
  %v1964 = vpop.permute.xlu0 %1963
  %v1966 = vmul.f32 %v1964, %v1960
  %v1967 = vsub.f32 1.0, %v1896
  %1969 = vset.pattern.permute.xlu0 0
  %1970 = vperm.xlu0 %1969, %v1967
  %v1971 = vpop.permute.xlu0 %1970
  %v1973 = vmul.f32 %v1971, %v1673
  %v1974 = vadd.f32 %v1966, %v1973
  %s1975 = scalar_lea.vmem %s8, 48
  %1976 = vst [vmem:[%s1975] sm:$0xff] %v1927
  %s1977 = scalar_lea.vmem %s8, 64
  %1978 = vst [vmem:[%s1977 + $0x8] sm:$0xff] %v1966
  %1979 = vmatprep.subr.mxu0 %v644
  %1980 = vmatpush1.msra.mxu0 %v643
  %1981 = vmatprep.subr.mxu0 %v638
  %1982 = vmatpush1.msra.mxu0 %v637
  %1983 = vmatprep.subr.mxu0 %v632
  %1984 = vmatpush1.msra.mxu0 %v631
  %1985 = vmatprep.subr.mxu0 %v626
  %1986 = vmatpush1.msra.mxu0 %v625
  %1987 = vmatprep.subr.mxu0 %v620
  %1988 = vmatpush1.msra.mxu0 %v619
  %1989 = vmatprep.subr.mxu0 %v614
  %1990 = vmatpush1.msra.mxu0 %v613
  %1991 = vmatprep.subr.mxu0 %v608
  %1992 = vmatpush1.msra.mxu0 %v607
  %1993 = vmatprep.subr.mxu0 %v602
  %1994 = vmatpush1.msra.mxu0 %v601
  %1995 = vmatprep.subr.mxu0 %v596
  %1996 = vmatpush1.msra.mxu0 %v595
  %1997 = vmatprep.subr.mxu0 %v590
  %1998 = vmatpush1.msra.mxu0 %v589
  %1999 = vmatprep.subr.mxu0 %v584
  %2000 = vmatpush1.msra.mxu0 %v583
  %2001 = vmatprep.subr.mxu0 %v578
  %2002 = vmatpush1.msra.mxu0 %v577
  %2003 = vmatprep.subr.mxu0 %v572
  %2004 = vmatpush1.msra.mxu0 %v571
  %2005 = vmatprep.subr.mxu0 %v566
  %2006 = vmatpush1.msra.mxu0 %v565
  %2007 = vmatprep.subr.mxu0 %v560
  %2008 = vmatpush1.msra.mxu0 %v559
  %2009 = vmatprep.subr.mxu0 %v554
  %2010 = vmatpush1.msra.mxu0 %v553
  %2011 = vmatprep.subr.mxu0 %v740
  %2012 = vmatpush2.msra.mxu0 %v739
  %2013 = vmatprep.subr.mxu0 %v734
  %2014 = vmatpush2.msra.mxu0 %v733
  %2015 = vmatprep.subr.mxu0 %v728
  %2016 = vmatpush2.msra.mxu0 %v727
  %2017 = vmatprep.subr.mxu0 %v722
  %2018 = vmatpush2.msra.mxu0 %v721
  %2019 = vmatprep.subr.mxu0 %v716
  %2020 = vmatpush2.msra.mxu0 %v715
  %2021 = vmatprep.subr.mxu0 %v710
  %2022 = vmatpush2.msra.mxu0 %v709
  %2023 = vmatprep.subr.mxu0 %v704
  %2024 = vmatpush2.msra.mxu0 %v703
  %2025 = vmatprep.subr.mxu0 %v698
  %2026 = vmatpush2.msra.mxu0 %v697
  %2027 = vmatprep.subr.mxu0 %v692
  %2028 = vmatpush2.msra.mxu0 %v691
  %2029 = vmatprep.subr.mxu0 %v686
  %2030 = vmatpush2.msra.mxu0 %v685
  %2031 = vmatprep.subr.mxu0 %v680
  %2032 = vmatpush2.msra.mxu0 %v679
  %2033 = vmatprep.subr.mxu0 %v674
  %2034 = vmatpush2.msra.mxu0 %v673
  %2035 = vmatprep.subr.mxu0 %v668
  %2036 = vmatpush2.msra.mxu0 %v667
  %2037 = vmatprep.subr.mxu0 %v662
  %2038 = vmatpush2.msra.mxu0 %v661
  %2039 = vmatprep.subr.mxu0 %v656
  %2040 = vmatpush2.msra.mxu0 %v655
  %2041 = vmatprep.subr.mxu0 %v650
  %2042 = vmatpush2.msra.mxu0 %v649
  %2043 = vmatprep.mubr.f32.mxu0 %v1974
  %2044 = vmatmul.mubr.f32.gmra.mxu0 %v1935
  %v2045 = vpop.f32.mrf.mxu0
  %v2046 = vadd.f32 %v750, %v2045
  %v2047 = vpop.f32.mrf.mxu0
  %v2048 = vadd.f32 %v754, %v2047
  %2049 = vdwg.mxu0
  %2050 = vmatprep.subr.mxu0 %v646
  %2051 = vmatpush1.msra.mxu0 %v645
  %2052 = vmatprep.subr.mxu0 %v640
  %2053 = vmatpush1.msra.mxu0 %v639
  %2054 = vmatprep.subr.mxu0 %v634
  %2055 = vmatpush1.msra.mxu0 %v633
  %2056 = vmatprep.subr.mxu0 %v628
  %2057 = vmatpush1.msra.mxu0 %v627
  %2058 = vmatprep.subr.mxu0 %v622
  %2059 = vmatpush1.msra.mxu0 %v621
  %2060 = vmatprep.subr.mxu0 %v616
  %2061 = vmatpush1.msra.mxu0 %v615
  %2062 = vmatprep.subr.mxu0 %v610
  %2063 = vmatpush1.msra.mxu0 %v609
  %2064 = vmatprep.subr.mxu0 %v604
  %2065 = vmatpush1.msra.mxu0 %v603
  %2066 = vmatprep.subr.mxu0 %v598
  %2067 = vmatpush1.msra.mxu0 %v597
  %2068 = vmatprep.subr.mxu0 %v592
  %2069 = vmatpush1.msra.mxu0 %v591
  %2070 = vmatprep.subr.mxu0 %v586
  %2071 = vmatpush1.msra.mxu0 %v585
  %2072 = vmatprep.subr.mxu0 %v580
  %2073 = vmatpush1.msra.mxu0 %v579
  %2074 = vmatprep.subr.mxu0 %v574
  %2075 = vmatpush1.msra.mxu0 %v573
  %2076 = vmatprep.subr.mxu0 %v568
  %2077 = vmatpush1.msra.mxu0 %v567
  %2078 = vmatprep.subr.mxu0 %v562
  %2079 = vmatpush1.msra.mxu0 %v561
  %2080 = vmatprep.subr.mxu0 %v556
  %2081 = vmatpush1.msra.mxu0 %v555
  %2082 = vmatprep.subr.mxu0 %v742
  %2083 = vmatpush2.msra.mxu0 %v741
  %2084 = vmatprep.subr.mxu0 %v736
  %2085 = vmatpush2.msra.mxu0 %v735
  %2086 = vmatprep.subr.mxu0 %v730
  %2087 = vmatpush2.msra.mxu0 %v729
  %2088 = vmatprep.subr.mxu0 %v724
  %2089 = vmatpush2.msra.mxu0 %v723
  %2090 = vmatprep.subr.mxu0 %v718
  %2091 = vmatpush2.msra.mxu0 %v717
  %2092 = vmatprep.subr.mxu0 %v712
  %2093 = vmatpush2.msra.mxu0 %v711
  %2094 = vmatprep.subr.mxu0 %v706
  %2095 = vmatpush2.msra.mxu0 %v705
  %2096 = vmatprep.subr.mxu0 %v700
  %2097 = vmatpush2.msra.mxu0 %v699
  %2098 = vmatprep.subr.mxu0 %v694
  %2099 = vmatpush2.msra.mxu0 %v693
  %2100 = vmatprep.subr.mxu0 %v688
  %2101 = vmatpush2.msra.mxu0 %v687
  %2102 = vmatprep.subr.mxu0 %v682
  %2103 = vmatpush2.msra.mxu0 %v681
  %2104 = vmatprep.subr.mxu0 %v676
  %2105 = vmatpush2.msra.mxu0 %v675
  %2106 = vmatprep.subr.mxu0 %v670
  %2107 = vmatpush2.msra.mxu0 %v669
  %2108 = vmatprep.subr.mxu0 %v664
  %2109 = vmatpush2.msra.mxu0 %v663
  %2110 = vmatprep.subr.mxu0 %v658
  %2111 = vmatpush2.msra.mxu0 %v657
  %2112 = vmatprep.subr.mxu0 %v652
  %2113 = vmatpush2.msra.mxu0 %v651
  %2114 = vmatprep.mubr.f32.mxu0 %v1974
  %2115 = vmatmul.mubr.f32.gmra.mxu0 %v1935
  %v2116 = vpop.f32.mrf.mxu0
  %v2117 = vadd.f32 %v758, %v2116
  %v2118 = vpop.f32.mrf.mxu0
  %v2119 = vadd.f32 %v762, %v2118
  %2120 = vdwg.mxu0
  %2121 = vmatprep.subr.mxu0 %v648
  %2122 = vmatpush1.msra.mxu0 %v647
  %2123 = vmatprep.subr.mxu0 %v642
  %2124 = vmatpush1.msra.mxu0 %v641
  %2125 = vmatprep.subr.mxu0 %v636
  %2126 = vmatpush1.msra.mxu0 %v635
  %2127 = vmatprep.subr.mxu0 %v630
  %2128 = vmatpush1.msra.mxu0 %v629
  %2129 = vmatprep.subr.mxu0 %v624
  %2130 = vmatpush1.msra.mxu0 %v623
  %2131 = vmatprep.subr.mxu0 %v618
  %2132 = vmatpush1.msra.mxu0 %v617
  %2133 = vmatprep.subr.mxu0 %v612
  %2134 = vmatpush1.msra.mxu0 %v611
  %2135 = vmatprep.subr.mxu0 %v606
  %2136 = vmatpush1.msra.mxu0 %v605
  %2137 = vmatprep.subr.mxu0 %v600
  %2138 = vmatpush1.msra.mxu0 %v599
  %2139 = vmatprep.subr.mxu0 %v594
  %2140 = vmatpush1.msra.mxu0 %v593
  %2141 = vmatprep.subr.mxu0 %v588
  %2142 = vmatpush1.msra.mxu0 %v587
  %2143 = vmatprep.subr.mxu0 %v582
  %2144 = vmatpush1.msra.mxu0 %v581
  %2145 = vmatprep.subr.mxu0 %v576
  %2146 = vmatpush1.msra.mxu0 %v575
  %2147 = vmatprep.subr.mxu0 %v570
  %2148 = vmatpush1.msra.mxu0 %v569
  %2149 = vmatprep.subr.mxu0 %v564
  %2150 = vmatpush1.msra.mxu0 %v563
  %2151 = vmatprep.subr.mxu0 %v558
  %2152 = vmatpush1.msra.mxu0 %v557
  %2153 = vmatprep.subr.mxu0 %v744
  %2154 = vmatpush2.msra.mxu0 %v743
  %2155 = vmatprep.subr.mxu0 %v738
  %2156 = vmatpush2.msra.mxu0 %v737
  %2157 = vmatprep.subr.mxu0 %v732
  %2158 = vmatpush2.msra.mxu0 %v731
  %2159 = vmatprep.subr.mxu0 %v726
  %2160 = vmatpush2.msra.mxu0 %v725
  %2161 = vmatprep.subr.mxu0 %v720
  %2162 = vmatpush2.msra.mxu0 %v719
  %2163 = vmatprep.subr.mxu0 %v714
  %2164 = vmatpush2.msra.mxu0 %v713
  %2165 = vmatprep.subr.mxu0 %v708
  %2166 = vmatpush2.msra.mxu0 %v707
  %2167 = vmatprep.subr.mxu0 %v702
  %2168 = vmatpush2.msra.mxu0 %v701
  %2169 = vmatprep.subr.mxu0 %v696
  %2170 = vmatpush2.msra.mxu0 %v695
  %2171 = vmatprep.subr.mxu0 %v690
  %2172 = vmatpush2.msra.mxu0 %v689
  %2173 = vmatprep.subr.mxu0 %v684
  %2174 = vmatpush2.msra.mxu0 %v683
  %2175 = vmatprep.subr.mxu0 %v678
  %2176 = vmatpush2.msra.mxu0 %v677
  %2177 = vmatprep.subr.mxu0 %v672
  %2178 = vmatpush2.msra.mxu0 %v671
  %2179 = vmatprep.subr.mxu0 %v666
  %2180 = vmatpush2.msra.mxu0 %v665
  %2181 = vmatprep.subr.mxu0 %v660
  %2182 = vmatpush2.msra.mxu0 %v659
  %2183 = vmatprep.subr.mxu0 %v654
  %2184 = vmatpush2.msra.mxu0 %v653
  %2185 = vmatprep.mubr.f32.mxu0 %v1974
  %2186 = vmatmul.mubr.f32.gmra.mxu0 %v1935
  %v2187 = vpop.f32.mrf.mxu0
  %v2188 = vadd.f32 %v766, %v2187
  %v2189 = vpop.f32.mrf.mxu0
  %v2190 = vadd.f32 %v770, %v2189
  %2191 = vdwg.mxu0
  %v2192 = vld [vmem:[%s1936] sm:$0xff]
  %v2193 = vld [vmem:[%s1936 + $0x8] sm:$0xff]
  %v2194 = vld [vmem:[%s1936 + $0x10] sm:$0xff]
  %v2195 = vadd.f32 %v2192, %v2046
  %v2196 = vxor.u32 %v2195, 2147483648
  %v2197 = vmul.f32 %v2196, 1.442695
  %v2198 = vpow.pop %v2197
  %v2199 = vadd.f32 %v2198, 1.0
  %v2200 = vrcp.pop %v2199
  %v2201 = vmul.f32 1.0, %v2200
  %v2202 = vadd.f32 %v2193, %v2048
  %v2203 = vxor.u32 %v2202, 2147483648
  %v2204 = vmul.f32 %v2203, 1.442695
  %v2205 = vpow.pop %v2204
  %v2206 = vadd.f32 %v2205, 1.0
  %v2207 = vrcp.pop %v2206
  %v2208 = vmul.f32 1.0, %v2207
  %v2209 = vmul.f32 %v2201, %v2117
  %v2210 = vadd.f32 %v2194, %v2209
  %v2211 = vtanh.pop %v2210
  %v2212 = vsub.f32 1.0, %v2208
  %v2213 = vmul.f32 %v2212, %v2211
  %v2214 = vmul.f32 %v2208, %v1935
  %v2215 = vadd.f32 %v2213, %v2214
  %v2216 = vmul.f32 %v1964, %v2215
  %v2217 = vmul.f32 %v1971, %v1935
  %v2218 = vadd.f32 %v2216, %v2217
  %v2219 = vld [vmem:[%s1897 + $0x18] sm:$0xff]
  %v2220 = vld [vmem:[%s1897 + $0x20] sm:$0xff]
  %v2221 = vld [vmem:[%s1897 + $0x28] sm:$0xff]
  %v2222 = vadd.f32 %v2219, %v2119
  %v2223 = vxor.u32 %v2222, 2147483648
  %v2224 = vmul.f32 %v2223, 1.442695
  %v2225 = vpow.pop %v2224
  %v2226 = vadd.f32 %v2225, 1.0
  %v2227 = vrcp.pop %v2226
  %v2228 = vmul.f32 1.0, %v2227
  %v2229 = vadd.f32 %v2220, %v2188
  %v2230 = vxor.u32 %v2229, 2147483648
  %v2231 = vmul.f32 %v2230, 1.442695
  %v2232 = vpow.pop %v2231
  %v2233 = vadd.f32 %v2232, 1.0
  %v2234 = vrcp.pop %v2233
  %v2235 = vmul.f32 1.0, %v2234
  %v2236 = vmul.f32 %v2228, %v2190
  %v2237 = vadd.f32 %v2221, %v2236
  %v2238 = vtanh.pop %v2237
  %v2239 = vsub.f32 1.0, %v2235
  %v2240 = vmul.f32 %v2239, %v2238
  %v2241 = vmul.f32 %v2235, %v1974
  %v2242 = vadd.f32 %v2240, %v2241
  %v2243 = vmul.f32 %v1925, %v2242
  %v2244 = vmul.f32 %v1932, %v1974
  %v2245 = vadd.f32 %v2243, %v2244
  %2246 = vst [vmem:[%s1977] sm:$0xff] %v2216
  %2247 = vst [vmem:[%s1975 + $0x8] sm:$0xff] %v2243
  %2248 = vmatprep.subr.mxu0 %v644
  %2249 = vmatpush1.msra.mxu0 %v643
  %2250 = vmatprep.subr.mxu0 %v638
  %2251 = vmatpush1.msra.mxu0 %v637
  %2252 = vmatprep.subr.mxu0 %v632
  %2253 = vmatpush1.msra.mxu0 %v631
  %2254 = vmatprep.subr.mxu0 %v626
  %2255 = vmatpush1.msra.mxu0 %v625
  %2256 = vmatprep.subr.mxu0 %v620
  %2257 = vmatpush1.msra.mxu0 %v619
  %2258 = vmatprep.subr.mxu0 %v614
  %2259 = vmatpush1.msra.mxu0 %v613
  %2260 = vmatprep.subr.mxu0 %v608
  %2261 = vmatpush1.msra.mxu0 %v607
  %2262 = vmatprep.subr.mxu0 %v602
  %2263 = vmatpush1.msra.mxu0 %v601
  %2264 = vmatprep.subr.mxu0 %v596
  %2265 = vmatpush1.msra.mxu0 %v595
  %2266 = vmatprep.subr.mxu0 %v590
  %2267 = vmatpush1.msra.mxu0 %v589
  %2268 = vmatprep.subr.mxu0 %v584
  %2269 = vmatpush1.msra.mxu0 %v583
  %2270 = vmatprep.subr.mxu0 %v578
  %2271 = vmatpush1.msra.mxu0 %v577
  %2272 = vmatprep.subr.mxu0 %v572
  %2273 = vmatpush1.msra.mxu0 %v571
  %2274 = vmatprep.subr.mxu0 %v566
  %2275 = vmatpush1.msra.mxu0 %v565
  %2276 = vmatprep.subr.mxu0 %v560
  %2277 = vmatpush1.msra.mxu0 %v559
  %2278 = vmatprep.subr.mxu0 %v554
  %2279 = vmatpush1.msra.mxu0 %v553
  %2280 = vmatprep.subr.mxu0 %v740
  %2281 = vmatpush2.msra.mxu0 %v739
  %2282 = vmatprep.subr.mxu0 %v734
  %2283 = vmatpush2.msra.mxu0 %v733
  %2284 = vmatprep.subr.mxu0 %v728
  %2285 = vmatpush2.msra.mxu0 %v727
  %2286 = vmatprep.subr.mxu0 %v722
  %2287 = vmatpush2.msra.mxu0 %v721
  %2288 = vmatprep.subr.mxu0 %v716
  %2289 = vmatpush2.msra.mxu0 %v715
  %2290 = vmatprep.subr.mxu0 %v710
  %2291 = vmatpush2.msra.mxu0 %v709
  %2292 = vmatprep.subr.mxu0 %v704
  %2293 = vmatpush2.msra.mxu0 %v703
  %2294 = vmatprep.subr.mxu0 %v698
  %2295 = vmatpush2.msra.mxu0 %v697
  %2296 = vmatprep.subr.mxu0 %v692
  %2297 = vmatpush2.msra.mxu0 %v691
  %2298 = vmatprep.subr.mxu0 %v686
  %2299 = vmatpush2.msra.mxu0 %v685
  %2300 = vmatprep.subr.mxu0 %v680
  %2301 = vmatpush2.msra.mxu0 %v679
  %2302 = vmatprep.subr.mxu0 %v674
  %2303 = vmatpush2.msra.mxu0 %v673
  %2304 = vmatprep.subr.mxu0 %v668
  %2305 = vmatpush2.msra.mxu0 %v667
  %2306 = vmatprep.subr.mxu0 %v662
  %2307 = vmatpush2.msra.mxu0 %v661
  %2308 = vmatprep.subr.mxu0 %v656
  %2309 = vmatpush2.msra.mxu0 %v655
  %2310 = vmatprep.subr.mxu0 %v650
  %2311 = vmatpush2.msra.mxu0 %v649
  %2312 = vmatprep.mubr.f32.mxu0 %v2245
  %2313 = vmatmul.mubr.f32.gmra.mxu0 %v2218
  %v2314 = vpop.f32.mrf.mxu0
  %v2315 = vadd.f32 %v750, %v2314
  %v2316 = vpop.f32.mrf.mxu0
  %v2317 = vadd.f32 %v754, %v2316
  %2318 = vdwg.mxu0
  %2319 = vmatprep.subr.mxu0 %v646
  %2320 = vmatpush1.msra.mxu0 %v645
  %2321 = vmatprep.subr.mxu0 %v640
  %2322 = vmatpush1.msra.mxu0 %v639
  %2323 = vmatprep.subr.mxu0 %v634
  %2324 = vmatpush1.msra.mxu0 %v633
  %2325 = vmatprep.subr.mxu0 %v628
  %2326 = vmatpush1.msra.mxu0 %v627
  %2327 = vmatprep.subr.mxu0 %v622
  %2328 = vmatpush1.msra.mxu0 %v621
  %2329 = vmatprep.subr.mxu0 %v616
  %2330 = vmatpush1.msra.mxu0 %v615
  %2331 = vmatprep.subr.mxu0 %v610
  %2332 = vmatpush1.msra.mxu0 %v609
  %2333 = vmatprep.subr.mxu0 %v604
  %2334 = vmatpush1.msra.mxu0 %v603
  %2335 = vmatprep.subr.mxu0 %v598
  %2336 = vmatpush1.msra.mxu0 %v597
  %2337 = vmatprep.subr.mxu0 %v592
  %2338 = vmatpush1.msra.mxu0 %v591
  %2339 = vmatprep.subr.mxu0 %v586
  %2340 = vmatpush1.msra.mxu0 %v585
  %2341 = vmatprep.subr.mxu0 %v580
  %2342 = vmatpush1.msra.mxu0 %v579
  %2343 = vmatprep.subr.mxu0 %v574
  %2344 = vmatpush1.msra.mxu0 %v573
  %2345 = vmatprep.subr.mxu0 %v568
  %2346 = vmatpush1.msra.mxu0 %v567
  %2347 = vmatprep.subr.mxu0 %v562
  %2348 = vmatpush1.msra.mxu0 %v561
  %2349 = vmatprep.subr.mxu0 %v556
  %2350 = vmatpush1.msra.mxu0 %v555
  %2351 = vmatprep.subr.mxu0 %v742
  %2352 = vmatpush2.msra.mxu0 %v741
  %2353 = vmatprep.subr.mxu0 %v736
  %2354 = vmatpush2.msra.mxu0 %v735
  %2355 = vmatprep.subr.mxu0 %v730
  %2356 = vmatpush2.msra.mxu0 %v729
  %2357 = vmatprep.subr.mxu0 %v724
  %2358 = vmatpush2.msra.mxu0 %v723
  %2359 = vmatprep.subr.mxu0 %v718
  %2360 = vmatpush2.msra.mxu0 %v717
  %2361 = vmatprep.subr.mxu0 %v712
  %2362 = vmatpush2.msra.mxu0 %v711
  %2363 = vmatprep.subr.mxu0 %v706
  %2364 = vmatpush2.msra.mxu0 %v705
  %2365 = vmatprep.subr.mxu0 %v700
  %2366 = vmatpush2.msra.mxu0 %v699
  %2367 = vmatprep.subr.mxu0 %v694
  %2368 = vmatpush2.msra.mxu0 %v693
  %2369 = vmatprep.subr.mxu0 %v688
  %2370 = vmatpush2.msra.mxu0 %v687
  %2371 = vmatprep.subr.mxu0 %v682
  %2372 = vmatpush2.msra.mxu0 %v681
  %2373 = vmatprep.subr.mxu0 %v676
  %2374 = vmatpush2.msra.mxu0 %v675
  %2375 = vmatprep.subr.mxu0 %v670
  %2376 = vmatpush2.msra.mxu0 %v669
  %2377 = vmatprep.subr.mxu0 %v664
  %2378 = vmatpush2.msra.mxu0 %v663
  %2379 = vmatprep.subr.mxu0 %v658
  %2380 = vmatpush2.msra.mxu0 %v657
  %2381 = vmatprep.subr.mxu0 %v652
  %2382 = vmatpush2.msra.mxu0 %v651
  %2383 = vmatprep.mubr.f32.mxu0 %v2245
  %2384 = vmatmul.mubr.f32.gmra.mxu0 %v2218
  %v2385 = vpop.f32.mrf.mxu0
  %v2386 = vadd.f32 %v758, %v2385
  %v2387 = vpop.f32.mrf.mxu0
  %v2388 = vadd.f32 %v762, %v2387
  %2389 = vdwg.mxu0
  %2390 = vmatprep.subr.mxu0 %v648
  %2391 = vmatpush1.msra.mxu0 %v647
  %2392 = vmatprep.subr.mxu0 %v642
  %2393 = vmatpush1.msra.mxu0 %v641
  %2394 = vmatprep.subr.mxu0 %v636
  %2395 = vmatpush1.msra.mxu0 %v635
  %2396 = vmatprep.subr.mxu0 %v630
  %2397 = vmatpush1.msra.mxu0 %v629
  %2398 = vmatprep.subr.mxu0 %v624
  %2399 = vmatpush1.msra.mxu0 %v623
  %2400 = vmatprep.subr.mxu0 %v618
  %2401 = vmatpush1.msra.mxu0 %v617
  %2402 = vmatprep.subr.mxu0 %v612
  %2403 = vmatpush1.msra.mxu0 %v611
  %2404 = vmatprep.subr.mxu0 %v606
  %2405 = vmatpush1.msra.mxu0 %v605
  %2406 = vmatprep.subr.mxu0 %v600
  %2407 = vmatpush1.msra.mxu0 %v599
  %2408 = vmatprep.subr.mxu0 %v594
  %2409 = vmatpush1.msra.mxu0 %v593
  %2410 = vmatprep.subr.mxu0 %v588
  %2411 = vmatpush1.msra.mxu0 %v587
  %2412 = vmatprep.subr.mxu0 %v582
  %2413 = vmatpush1.msra.mxu0 %v581
  %2414 = vmatprep.subr.mxu0 %v576
  %2415 = vmatpush1.msra.mxu0 %v575
  %2416 = vmatprep.subr.mxu0 %v570
  %2417 = vmatpush1.msra.mxu0 %v569
  %2418 = vmatprep.subr.mxu0 %v564
  %2419 = vmatpush1.msra.mxu0 %v563
  %2420 = vmatprep.subr.mxu0 %v558
  %2421 = vmatpush1.msra.mxu0 %v557
  %2422 = vmatprep.subr.mxu0 %v744
  %2423 = vmatpush2.msra.mxu0 %v743
  %2424 = vmatprep.subr.mxu0 %v738
  %2425 = vmatpush2.msra.mxu0 %v737
  %2426 = vmatprep.subr.mxu0 %v732
  %2427 = vmatpush2.msra.mxu0 %v731
  %2428 = vmatprep.subr.mxu0 %v726
  %2429 = vmatpush2.msra.mxu0 %v725
  %2430 = vmatprep.subr.mxu0 %v720
  %2431 = vmatpush2.msra.mxu0 %v719
  %2432 = vmatprep.subr.mxu0 %v714
  %2433 = vmatpush2.msra.mxu0 %v713
  %2434 = vmatprep.subr.mxu0 %v708
  %2435 = vmatpush2.msra.mxu0 %v707
  %2436 = vmatprep.subr.mxu0 %v702
  %2437 = vmatpush2.msra.mxu0 %v701
  %2438 = vmatprep.subr.mxu0 %v696
  %2439 = vmatpush2.msra.mxu0 %v695
  %2440 = vmatprep.subr.mxu0 %v690
  %2441 = vmatpush2.msra.mxu0 %v689
  %2442 = vmatprep.subr.mxu0 %v684
  %2443 = vmatpush2.msra.mxu0 %v683
  %2444 = vmatprep.subr.mxu0 %v678
  %2445 = vmatpush2.msra.mxu0 %v677
  %2446 = vmatprep.subr.mxu0 %v672
  %2447 = vmatpush2.msra.mxu0 %v671
  %2448 = vmatprep.subr.mxu0 %v666
  %2449 = vmatpush2.msra.mxu0 %v665
  %2450 = vmatprep.subr.mxu0 %v660
  %2451 = vmatpush2.msra.mxu0 %v659
  %2452 = vmatprep.subr.mxu0 %v654
  %2453 = vmatpush2.msra.mxu0 %v653
  %2454 = vmatprep.mubr.f32.mxu0 %v2245
  %2455 = vmatmul.mubr.f32.gmra.mxu0 %v2218
  %v2456 = vpop.f32.mrf.mxu0
  %v2457 = vadd.f32 %v766, %v2456
  %v2458 = vpop.f32.mrf.mxu0
  %v2459 = vadd.f32 %v770, %v2458
  %2460 = vdwg.mxu0
  %v2461 = vld [vmem:[%s1635] sm:$0xff]
  %v2462 = vld [vmem:[%s1635 + $0x8] sm:$0xff]
  %v2463 = vld [vmem:[%s1635 + $0x10] sm:$0xff]
  %v2464 = vadd.f32 %v2461, %v2315
  %v2465 = vxor.u32 %v2464, 2147483648
  %v2466 = vmul.f32 %v2465, 1.442695
  %v2467 = vpow.pop %v2466
  %v2468 = vadd.f32 %v2467, 1.0
  %v2469 = vrcp.pop %v2468
  %v2470 = vmul.f32 1.0, %v2469
  %v2471 = vadd.f32 %v2462, %v2317
  %v2472 = vxor.u32 %v2471, 2147483648
  %v2473 = vmul.f32 %v2472, 1.442695
  %v2474 = vpow.pop %v2473
  %v2475 = vadd.f32 %v2474, 1.0
  %v2476 = vrcp.pop %v2475
  %v2477 = vmul.f32 1.0, %v2476
  %v2478 = vmul.f32 %v2470, %v2386
  %v2479 = vadd.f32 %v2463, %v2478
  %v2480 = vtanh.pop %v2479
  %v2481 = vsub.f32 1.0, %v2477
  %v2482 = vmul.f32 %v2481, %v2480
  %v2483 = vmul.f32 %v2477, %v2218
  %v2484 = vadd.f32 %v2482, %v2483
  %v2485 = vmul.f32 %v1663, %v2484
  %v2486 = vmul.f32 %v1670, %v2218
  %v2487 = vadd.f32 %v2485, %v2486
  %v2488 = vld [vmem:[%s1596 + $0x18] sm:$0xff]
  %v2489 = vld [vmem:[%s1596 + $0x20] sm:$0xff]
  %v2490 = vld [vmem:[%s1596 + $0x28] sm:$0xff]
  %v2491 = vadd.f32 %v2488, %v2388
  %v2492 = vxor.u32 %v2491, 2147483648
  %v2493 = vmul.f32 %v2492, 1.442695
  %v2494 = vpow.pop %v2493
  %v2495 = vadd.f32 %v2494, 1.0
  %v2496 = vrcp.pop %v2495
  %v2497 = vmul.f32 1.0, %v2496
  %v2498 = vadd.f32 %v2489, %v2457
  %v2499 = vxor.u32 %v2498, 2147483648
  %v2500 = vmul.f32 %v2499, 1.442695
  %v2501 = vpow.pop %v2500
  %v2502 = vadd.f32 %v2501, 1.0
  %v2503 = vrcp.pop %v2502
  %v2504 = vmul.f32 1.0, %v2503
  %v2505 = vmul.f32 %v2497, %v2459
  %v2506 = vadd.f32 %v2490, %v2505
  %v2507 = vtanh.pop %v2506
  %v2508 = vsub.f32 1.0, %v2504
  %v2509 = vmul.f32 %v2508, %v2507
  %v2510 = vmul.f32 %v2504, %v2245
  %v2511 = vadd.f32 %v2509, %v2510
  %v2512 = vmul.f32 %v1624, %v2511
  %v2513 = vmul.f32 %v1631, %v2245
  %v2514 = vadd.f32 %v2512, %v2513
  %2515 = vst [vmem:[%s1676] sm:$0xff] %v2485
  %2516 = vst [vmem:[%s1674 + $0x8] sm:$0xff] %v2512
  %2517 = vmatprep.subr.mxu0 %v644
  %2518 = vmatpush1.msra.mxu0 %v643
  %2519 = vmatprep.subr.mxu0 %v638
  %2520 = vmatpush1.msra.mxu0 %v637
  %2521 = vmatprep.subr.mxu0 %v632
  %2522 = vmatpush1.msra.mxu0 %v631
  %2523 = vmatprep.subr.mxu0 %v626
  %2524 = vmatpush1.msra.mxu0 %v625
  %2525 = vmatprep.subr.mxu0 %v620
  %2526 = vmatpush1.msra.mxu0 %v619
  %2527 = vmatprep.subr.mxu0 %v614
  %2528 = vmatpush1.msra.mxu0 %v613
  %2529 = vmatprep.subr.mxu0 %v608
  %2530 = vmatpush1.msra.mxu0 %v607
  %2531 = vmatprep.subr.mxu0 %v602
  %2532 = vmatpush1.msra.mxu0 %v601
  %2533 = vmatprep.subr.mxu0 %v596
  %2534 = vmatpush1.msra.mxu0 %v595
  %2535 = vmatprep.subr.mxu0 %v590
  %2536 = vmatpush1.msra.mxu0 %v589
  %2537 = vmatprep.subr.mxu0 %v584
  %2538 = vmatpush1.msra.mxu0 %v583
  %2539 = vmatprep.subr.mxu0 %v578
  %2540 = vmatpush1.msra.mxu0 %v577
  %2541 = vmatprep.subr.mxu0 %v572
  %2542 = vmatpush1.msra.mxu0 %v571
  %2543 = vmatprep.subr.mxu0 %v566
  %2544 = vmatpush1.msra.mxu0 %v565
  %2545 = vmatprep.subr.mxu0 %v560
  %2546 = vmatpush1.msra.mxu0 %v559
  %2547 = vmatprep.subr.mxu0 %v554
  %2548 = vmatpush1.msra.mxu0 %v553
  %2549 = vmatprep.subr.mxu0 %v740
  %2550 = vmatpush2.msra.mxu0 %v739
  %2551 = vmatprep.subr.mxu0 %v734
  %2552 = vmatpush2.msra.mxu0 %v733
  %2553 = vmatprep.subr.mxu0 %v728
  %2554 = vmatpush2.msra.mxu0 %v727
  %2555 = vmatprep.subr.mxu0 %v722
  %2556 = vmatpush2.msra.mxu0 %v721
  %2557 = vmatprep.subr.mxu0 %v716
  %2558 = vmatpush2.msra.mxu0 %v715
  %2559 = vmatprep.subr.mxu0 %v710
  %2560 = vmatpush2.msra.mxu0 %v709
  %2561 = vmatprep.subr.mxu0 %v704
  %2562 = vmatpush2.msra.mxu0 %v703
  %2563 = vmatprep.subr.mxu0 %v698
  %2564 = vmatpush2.msra.mxu0 %v697
  %2565 = vmatprep.subr.mxu0 %v692
  %2566 = vmatpush2.msra.mxu0 %v691
  %2567 = vmatprep.subr.mxu0 %v686
  %2568 = vmatpush2.msra.mxu0 %v685
  %2569 = vmatprep.subr.mxu0 %v680
  %2570 = vmatpush2.msra.mxu0 %v679
  %2571 = vmatprep.subr.mxu0 %v674
  %2572 = vmatpush2.msra.mxu0 %v673
  %2573 = vmatprep.subr.mxu0 %v668
  %2574 = vmatpush2.msra.mxu0 %v667
  %2575 = vmatprep.subr.mxu0 %v662
  %2576 = vmatpush2.msra.mxu0 %v661
  %2577 = vmatprep.subr.mxu0 %v656
  %2578 = vmatpush2.msra.mxu0 %v655
  %2579 = vmatprep.subr.mxu0 %v650
  %2580 = vmatpush2.msra.mxu0 %v649
  %2581 = vmatprep.mubr.f32.mxu0 %v2514
  %2582 = vmatmul.mubr.f32.gmra.mxu0 %v2487
  %v2583 = vpop.f32.mrf.mxu0
  %v2584 = vadd.f32 %v750, %v2583
  %v2585 = vpop.f32.mrf.mxu0
  %v2586 = vadd.f32 %v754, %v2585
  %2587 = vdwg.mxu0
  %2588 = vmatprep.subr.mxu0 %v646
  %2589 = vmatpush1.msra.mxu0 %v645
  %2590 = vmatprep.subr.mxu0 %v640
  %2591 = vmatpush1.msra.mxu0 %v639
  %2592 = vmatprep.subr.mxu0 %v634
  %2593 = vmatpush1.msra.mxu0 %v633
  %2594 = vmatprep.subr.mxu0 %v628
  %2595 = vmatpush1.msra.mxu0 %v627
  %2596 = vmatprep.subr.mxu0 %v622
  %2597 = vmatpush1.msra.mxu0 %v621
  %2598 = vmatprep.subr.mxu0 %v616
  %2599 = vmatpush1.msra.mxu0 %v615
  %2600 = vmatprep.subr.mxu0 %v610
  %2601 = vmatpush1.msra.mxu0 %v609
  %2602 = vmatprep.subr.mxu0 %v604
  %2603 = vmatpush1.msra.mxu0 %v603
  %2604 = vmatprep.subr.mxu0 %v598
  %2605 = vmatpush1.msra.mxu0 %v597
  %2606 = vmatprep.subr.mxu0 %v592
  %2607 = vmatpush1.msra.mxu0 %v591
  %2608 = vmatprep.subr.mxu0 %v586
  %2609 = vmatpush1.msra.mxu0 %v585
  %2610 = vmatprep.subr.mxu0 %v580
  %2611 = vmatpush1.msra.mxu0 %v579
  %2612 = vmatprep.subr.mxu0 %v574
  %2613 = vmatpush1.msra.mxu0 %v573
  %2614 = vmatprep.subr.mxu0 %v568
  %2615 = vmatpush1.msra.mxu0 %v567
  %2616 = vmatprep.subr.mxu0 %v562
  %2617 = vmatpush1.msra.mxu0 %v561
  %2618 = vmatprep.subr.mxu0 %v556
  %2619 = vmatpush1.msra.mxu0 %v555
  %2620 = vmatprep.subr.mxu0 %v742
  %2621 = vmatpush2.msra.mxu0 %v741
  %2622 = vmatprep.subr.mxu0 %v736
  %2623 = vmatpush2.msra.mxu0 %v735
  %2624 = vmatprep.subr.mxu0 %v730
  %2625 = vmatpush2.msra.mxu0 %v729
  %2626 = vmatprep.subr.mxu0 %v724
  %2627 = vmatpush2.msra.mxu0 %v723
  %2628 = vmatprep.subr.mxu0 %v718
  %2629 = vmatpush2.msra.mxu0 %v717
  %2630 = vmatprep.subr.mxu0 %v712
  %2631 = vmatpush2.msra.mxu0 %v711
  %2632 = vmatprep.subr.mxu0 %v706
  %2633 = vmatpush2.msra.mxu0 %v705
  %2634 = vmatprep.subr.mxu0 %v700
  %2635 = vmatpush2.msra.mxu0 %v699
  %2636 = vmatprep.subr.mxu0 %v694
  %2637 = vmatpush2.msra.mxu0 %v693
  %2638 = vmatprep.subr.mxu0 %v688
  %2639 = vmatpush2.msra.mxu0 %v687
  %2640 = vmatprep.subr.mxu0 %v682
  %2641 = vmatpush2.msra.mxu0 %v681
  %2642 = vmatprep.subr.mxu0 %v676
  %2643 = vmatpush2.msra.mxu0 %v675
  %2644 = vmatprep.subr.mxu0 %v670
  %2645 = vmatpush2.msra.mxu0 %v669
  %2646 = vmatprep.subr.mxu0 %v664
  %2647 = vmatpush2.msra.mxu0 %v663
  %2648 = vmatprep.subr.mxu0 %v658
  %2649 = vmatpush2.msra.mxu0 %v657
  %2650 = vmatprep.subr.mxu0 %v652
  %2651 = vmatpush2.msra.mxu0 %v651
  %2652 = vmatprep.mubr.f32.mxu0 %v2514
  %2653 = vmatmul.mubr.f32.gmra.mxu0 %v2487
  %v2654 = vpop.f32.mrf.mxu0
  %v2655 = vadd.f32 %v758, %v2654
  %v2656 = vpop.f32.mrf.mxu0
  %v2657 = vadd.f32 %v762, %v2656
  %2658 = vdwg.mxu0
  %2659 = vmatprep.subr.mxu0 %v648
  %2660 = vmatpush1.msra.mxu0 %v647
  %2661 = vmatprep.subr.mxu0 %v642
  %2662 = vmatpush1.msra.mxu0 %v641
  %2663 = vmatprep.subr.mxu0 %v636
  %2664 = vmatpush1.msra.mxu0 %v635
  %2665 = vmatprep.subr.mxu0 %v630
  %2666 = vmatpush1.msra.mxu0 %v629
  %2667 = vmatprep.subr.mxu0 %v624
  %2668 = vmatpush1.msra.mxu0 %v623
  %2669 = vmatprep.subr.mxu0 %v618
  %2670 = vmatpush1.msra.mxu0 %v617
  %2671 = vmatprep.subr.mxu0 %v612
  %2672 = vmatpush1.msra.mxu0 %v611
  %2673 = vmatprep.subr.mxu0 %v606
  %2674 = vmatpush1.msra.mxu0 %v605
  %2675 = vmatprep.subr.mxu0 %v600
  %2676 = vmatpush1.msra.mxu0 %v599
  %2677 = vmatprep.subr.mxu0 %v594
  %2678 = vmatpush1.msra.mxu0 %v593
  %2679 = vmatprep.subr.mxu0 %v588
  %2680 = vmatpush1.msra.mxu0 %v587
  %2681 = vmatprep.subr.mxu0 %v582
  %2682 = vmatpush1.msra.mxu0 %v581
  %2683 = vmatprep.subr.mxu0 %v576
  %2684 = vmatpush1.msra.mxu0 %v575
  %2685 = vmatprep.subr.mxu0 %v570
  %2686 = vmatpush1.msra.mxu0 %v569
  %2687 = vmatprep.subr.mxu0 %v564
  %2688 = vmatpush1.msra.mxu0 %v563
  %2689 = vmatprep.subr.mxu0 %v558
  %2690 = vmatpush1.msra.mxu0 %v557
  %2691 = vmatprep.subr.mxu0 %v744
  %2692 = vmatpush2.msra.mxu0 %v743
  %2693 = vmatprep.subr.mxu0 %v738
  %2694 = vmatpush2.msra.mxu0 %v737
  %2695 = vmatprep.subr.mxu0 %v732
  %2696 = vmatpush2.msra.mxu0 %v731
  %2697 = vmatprep.subr.mxu0 %v726
  %2698 = vmatpush2.msra.mxu0 %v725
  %2699 = vmatprep.subr.mxu0 %v720
  %2700 = vmatpush2.msra.mxu0 %v719
  %2701 = vmatprep.subr.mxu0 %v714
  %2702 = vmatpush2.msra.mxu0 %v713
  %2703 = vmatprep.subr.mxu0 %v708
  %2704 = vmatpush2.msra.mxu0 %v707
  %2705 = vmatprep.subr.mxu0 %v702
  %2706 = vmatpush2.msra.mxu0 %v701
  %2707 = vmatprep.subr.mxu0 %v696
  %2708 = vmatpush2.msra.mxu0 %v695
  %2709 = vmatprep.subr.mxu0 %v690
  %2710 = vmatpush2.msra.mxu0 %v689
  %2711 = vmatprep.subr.mxu0 %v684
  %2712 = vmatpush2.msra.mxu0 %v683
  %2713 = vmatprep.subr.mxu0 %v678
  %2714 = vmatpush2.msra.mxu0 %v677
  %2715 = vmatprep.subr.mxu0 %v672
  %2716 = vmatpush2.msra.mxu0 %v671
  %2717 = vmatprep.subr.mxu0 %v666
  %2718 = vmatpush2.msra.mxu0 %v665
  %2719 = vmatprep.subr.mxu0 %v660
  %2720 = vmatpush2.msra.mxu0 %v659
  %2721 = vmatprep.subr.mxu0 %v654
  %2722 = vmatpush2.msra.mxu0 %v653
  %2723 = vmatprep.mubr.f32.mxu0 %v2514
  %2724 = vmatmul.mubr.f32.gmra.mxu0 %v2487
  %v2725 = vpop.f32.mrf.mxu0
  %v2726 = vadd.f32 %v766, %v2725
  %v2727 = vpop.f32.mrf.mxu0
  %v2728 = vadd.f32 %v770, %v2727
  %2729 = vdwg.mxu0
  %v2730 = vld [vmem:[%s1334] sm:$0xff]
  %v2731 = vld [vmem:[%s1334 + $0x8] sm:$0xff]
  %v2732 = vld [vmem:[%s1334 + $0x10] sm:$0xff]
  %v2733 = vadd.f32 %v2730, %v2584
  %v2734 = vxor.u32 %v2733, 2147483648
  %v2735 = vmul.f32 %v2734, 1.442695
  %v2736 = vpow.pop %v2735
  %v2737 = vadd.f32 %v2736, 1.0
  %v2738 = vrcp.pop %v2737
  %v2739 = vmul.f32 1.0, %v2738
  %v2740 = vadd.f32 %v2731, %v2586
  %v2741 = vxor.u32 %v2740, 2147483648
  %v2742 = vmul.f32 %v2741, 1.442695
  %v2743 = vpow.pop %v2742
  %v2744 = vadd.f32 %v2743, 1.0
  %v2745 = vrcp.pop %v2744
  %v2746 = vmul.f32 1.0, %v2745
  %v2747 = vmul.f32 %v2739, %v2655
  %v2748 = vadd.f32 %v2732, %v2747
  %v2749 = vtanh.pop %v2748
  %v2750 = vsub.f32 1.0, %v2746
  %v2751 = vmul.f32 %v2750, %v2749
  %v2752 = vmul.f32 %v2746, %v2487
  %v2753 = vadd.f32 %v2751, %v2752
  %v2754 = vmul.f32 %v1362, %v2753
  %v2755 = vmul.f32 %v1369, %v2487
  %v2756 = vadd.f32 %v2754, %v2755
  %v2757 = vld [vmem:[%s1295 + $0x18] sm:$0xff]
  %v2758 = vld [vmem:[%s1295 + $0x20] sm:$0xff]
  %v2759 = vld [vmem:[%s1295 + $0x28] sm:$0xff]
  %v2760 = vadd.f32 %v2757, %v2657
  %v2761 = vxor.u32 %v2760, 2147483648
  %v2762 = vmul.f32 %v2761, 1.442695
  %v2763 = vpow.pop %v2762
  %v2764 = vadd.f32 %v2763, 1.0
  %v2765 = vrcp.pop %v2764
  %v2766 = vmul.f32 1.0, %v2765
  %v2767 = vadd.f32 %v2758, %v2726
  %v2768 = vxor.u32 %v2767, 2147483648
  %v2769 = vmul.f32 %v2768, 1.442695
  %v2770 = vpow.pop %v2769
  %v2771 = vadd.f32 %v2770, 1.0
  %v2772 = vrcp.pop %v2771
  %v2773 = vmul.f32 1.0, %v2772
  %v2774 = vmul.f32 %v2766, %v2728
  %v2775 = vadd.f32 %v2759, %v2774
  %v2776 = vtanh.pop %v2775
  %v2777 = vsub.f32 1.0, %v2773
  %v2778 = vmul.f32 %v2777, %v2776
  %v2779 = vmul.f32 %v2773, %v2514
  %v2780 = vadd.f32 %v2778, %v2779
  %v2781 = vmul.f32 %v1323, %v2780
  %v2782 = vmul.f32 %v1330, %v2514
  %v2783 = vadd.f32 %v2781, %v2782
  %2784 = vst [vmem:[%s1375] sm:$0xff] %v2754
  %2785 = vst [vmem:[%s1373 + $0x8] sm:$0xff] %v2781
  %2786 = vmatprep.subr.mxu0 %v644
  %2787 = vmatpush1.msra.mxu0 %v643
  %2788 = vmatprep.subr.mxu0 %v638
  %2789 = vmatpush1.msra.mxu0 %v637
  %2790 = vmatprep.subr.mxu0 %v632
  %2791 = vmatpush1.msra.mxu0 %v631
  %2792 = vmatprep.subr.mxu0 %v626
  %2793 = vmatpush1.msra.mxu0 %v625
  %2794 = vmatprep.subr.mxu0 %v620
  %2795 = vmatpush1.msra.mxu0 %v619
  %2796 = vmatprep.subr.mxu0 %v614
  %2797 = vmatpush1.msra.mxu0 %v613
  %2798 = vmatprep.subr.mxu0 %v608
  %2799 = vmatpush1.msra.mxu0 %v607
  %2800 = vmatprep.subr.mxu0 %v602
  %2801 = vmatpush1.msra.mxu0 %v601
  %2802 = vmatprep.subr.mxu0 %v596
  %2803 = vmatpush1.msra.mxu0 %v595
  %2804 = vmatprep.subr.mxu0 %v590
  %2805 = vmatpush1.msra.mxu0 %v589
  %2806 = vmatprep.subr.mxu0 %v584
  %2807 = vmatpush1.msra.mxu0 %v583
  %2808 = vmatprep.subr.mxu0 %v578
  %2809 = vmatpush1.msra.mxu0 %v577
  %2810 = vmatprep.subr.mxu0 %v572
  %2811 = vmatpush1.msra.mxu0 %v571
  %2812 = vmatprep.subr.mxu0 %v566
  %2813 = vmatpush1.msra.mxu0 %v565
  %2814 = vmatprep.subr.mxu0 %v560
  %2815 = vmatpush1.msra.mxu0 %v559
  %2816 = vmatprep.subr.mxu0 %v554
  %2817 = vmatpush1.msra.mxu0 %v553
  %2818 = vmatprep.subr.mxu0 %v740
  %2819 = vmatpush2.msra.mxu0 %v739
  %2820 = vmatprep.subr.mxu0 %v734
  %2821 = vmatpush2.msra.mxu0 %v733
  %2822 = vmatprep.subr.mxu0 %v728
  %2823 = vmatpush2.msra.mxu0 %v727
  %2824 = vmatprep.subr.mxu0 %v722
  %2825 = vmatpush2.msra.mxu0 %v721
  %2826 = vmatprep.subr.mxu0 %v716
  %2827 = vmatpush2.msra.mxu0 %v715
  %2828 = vmatprep.subr.mxu0 %v710
  %2829 = vmatpush2.msra.mxu0 %v709
  %2830 = vmatprep.subr.mxu0 %v704
  %2831 = vmatpush2.msra.mxu0 %v703
  %2832 = vmatprep.subr.mxu0 %v698
  %2833 = vmatpush2.msra.mxu0 %v697
  %2834 = vmatprep.subr.mxu0 %v692
  %2835 = vmatpush2.msra.mxu0 %v691
  %2836 = vmatprep.subr.mxu0 %v686
  %2837 = vmatpush2.msra.mxu0 %v685
  %2838 = vmatprep.subr.mxu0 %v680
  %2839 = vmatpush2.msra.mxu0 %v679
  %2840 = vmatprep.subr.mxu0 %v674
  %2841 = vmatpush2.msra.mxu0 %v673
  %2842 = vmatprep.subr.mxu0 %v668
  %2843 = vmatpush2.msra.mxu0 %v667
  %2844 = vmatprep.subr.mxu0 %v662
  %2845 = vmatpush2.msra.mxu0 %v661
  %2846 = vmatprep.subr.mxu0 %v656
  %2847 = vmatpush2.msra.mxu0 %v655
  %2848 = vmatprep.subr.mxu0 %v650
  %2849 = vmatpush2.msra.mxu0 %v649
  %2850 = vmatprep.mubr.f32.mxu0 %v2783
  %2851 = vmatmul.mubr.f32.gmra.mxu0 %v2756
  %v2852 = vpop.f32.mrf.mxu0
  %v2853 = vadd.f32 %v750, %v2852
  %v2854 = vpop.f32.mrf.mxu0
  %v2855 = vadd.f32 %v754, %v2854
  %2856 = vdwg.mxu0
  %2857 = vmatprep.subr.mxu0 %v646
  %2858 = vmatpush1.msra.mxu0 %v645
  %2859 = vmatprep.subr.mxu0 %v640
  %2860 = vmatpush1.msra.mxu0 %v639
  %2861 = vmatprep.subr.mxu0 %v634
  %2862 = vmatpush1.msra.mxu0 %v633
  %2863 = vmatprep.subr.mxu0 %v628
  %2864 = vmatpush1.msra.mxu0 %v627
  %2865 = vmatprep.subr.mxu0 %v622
  %2866 = vmatpush1.msra.mxu0 %v621
  %2867 = vmatprep.subr.mxu0 %v616
  %2868 = vmatpush1.msra.mxu0 %v615
  %2869 = vmatprep.subr.mxu0 %v610
  %2870 = vmatpush1.msra.mxu0 %v609
  %2871 = vmatprep.subr.mxu0 %v604
  %2872 = vmatpush1.msra.mxu0 %v603
  %2873 = vmatprep.subr.mxu0 %v598
  %2874 = vmatpush1.msra.mxu0 %v597
  %2875 = vmatprep.subr.mxu0 %v592
  %2876 = vmatpush1.msra.mxu0 %v591
  %2877 = vmatprep.subr.mxu0 %v586
  %2878 = vmatpush1.msra.mxu0 %v585
  %2879 = vmatprep.subr.mxu0 %v580
  %2880 = vmatpush1.msra.mxu0 %v579
  %2881 = vmatprep.subr.mxu0 %v574
  %2882 = vmatpush1.msra.mxu0 %v573
  %2883 = vmatprep.subr.mxu0 %v568
  %2884 = vmatpush1.msra.mxu0 %v567
  %2885 = vmatprep.subr.mxu0 %v562
  %2886 = vmatpush1.msra.mxu0 %v561
  %2887 = vmatprep.subr.mxu0 %v556
  %2888 = vmatpush1.msra.mxu0 %v555
  %2889 = vmatprep.subr.mxu0 %v742
  %2890 = vmatpush2.msra.mxu0 %v741
  %2891 = vmatprep.subr.mxu0 %v736
  %2892 = vmatpush2.msra.mxu0 %v735
  %2893 = vmatprep.subr.mxu0 %v730
  %2894 = vmatpush2.msra.mxu0 %v729
  %2895 = vmatprep.subr.mxu0 %v724
  %2896 = vmatpush2.msra.mxu0 %v723
  %2897 = vmatprep.subr.mxu0 %v718
  %2898 = vmatpush2.msra.mxu0 %v717
  %2899 = vmatprep.subr.mxu0 %v712
  %2900 = vmatpush2.msra.mxu0 %v711
  %2901 = vmatprep.subr.mxu0 %v706
  %2902 = vmatpush2.msra.mxu0 %v705
  %2903 = vmatprep.subr.mxu0 %v700
  %2904 = vmatpush2.msra.mxu0 %v699
  %2905 = vmatprep.subr.mxu0 %v694
  %2906 = vmatpush2.msra.mxu0 %v693
  %2907 = vmatprep.subr.mxu0 %v688
  %2908 = vmatpush2.msra.mxu0 %v687
  %2909 = vmatprep.subr.mxu0 %v682
  %2910 = vmatpush2.msra.mxu0 %v681
  %2911 = vmatprep.subr.mxu0 %v676
  %2912 = vmatpush2.msra.mxu0 %v675
  %2913 = vmatprep.subr.mxu0 %v670
  %2914 = vmatpush2.msra.mxu0 %v669
  %2915 = vmatprep.subr.mxu0 %v664
  %2916 = vmatpush2.msra.mxu0 %v663
  %2917 = vmatprep.subr.mxu0 %v658
  %2918 = vmatpush2.msra.mxu0 %v657
  %2919 = vmatprep.subr.mxu0 %v652
  %2920 = vmatpush2.msra.mxu0 %v651
  %2921 = vmatprep.mubr.f32.mxu0 %v2783
  %2922 = vmatmul.mubr.f32.gmra.mxu0 %v2756
  %v2923 = vpop.f32.mrf.mxu0
  %v2924 = vadd.f32 %v758, %v2923
  %v2925 = vpop.f32.mrf.mxu0
  %v2926 = vadd.f32 %v762, %v2925
  %2927 = vdwg.mxu0
  %2928 = vmatprep.subr.mxu0 %v648
  %2929 = vmatpush1.msra.mxu0 %v647
  %2930 = vmatprep.subr.mxu0 %v642
  %2931 = vmatpush1.msra.mxu0 %v641
  %2932 = vmatprep.subr.mxu0 %v636
  %2933 = vmatpush1.msra.mxu0 %v635
  %2934 = vmatprep.subr.mxu0 %v630
  %2935 = vmatpush1.msra.mxu0 %v629
  %2936 = vmatprep.subr.mxu0 %v624
  %2937 = vmatpush1.msra.mxu0 %v623
  %2938 = vmatprep.subr.mxu0 %v618
  %2939 = vmatpush1.msra.mxu0 %v617
  %2940 = vmatprep.subr.mxu0 %v612
  %2941 = vmatpush1.msra.mxu0 %v611
  %2942 = vmatprep.subr.mxu0 %v606
  %2943 = vmatpush1.msra.mxu0 %v605
  %2944 = vmatprep.subr.mxu0 %v600
  %2945 = vmatpush1.msra.mxu0 %v599
  %2946 = vmatprep.subr.mxu0 %v594
  %2947 = vmatpush1.msra.mxu0 %v593
  %2948 = vmatprep.subr.mxu0 %v588
  %2949 = vmatpush1.msra.mxu0 %v587
  %2950 = vmatprep.subr.mxu0 %v582
  %2951 = vmatpush1.msra.mxu0 %v581
  %2952 = vmatprep.subr.mxu0 %v576
  %2953 = vmatpush1.msra.mxu0 %v575
  %2954 = vmatprep.subr.mxu0 %v570
  %2955 = vmatpush1.msra.mxu0 %v569
  %2956 = vmatprep.subr.mxu0 %v564
  %2957 = vmatpush1.msra.mxu0 %v563
  %2958 = vmatprep.subr.mxu0 %v558
  %2959 = vmatpush1.msra.mxu0 %v557
  %2960 = vmatprep.subr.mxu0 %v744
  %2961 = vmatpush2.msra.mxu0 %v743
  %2962 = vmatprep.subr.mxu0 %v738
  %2963 = vmatpush2.msra.mxu0 %v737
  %2964 = vmatprep.subr.mxu0 %v732
  %2965 = vmatpush2.msra.mxu0 %v731
  %2966 = vmatprep.subr.mxu0 %v726
  %2967 = vmatpush2.msra.mxu0 %v725
  %2968 = vmatprep.subr.mxu0 %v720
  %2969 = vmatpush2.msra.mxu0 %v719
  %2970 = vmatprep.subr.mxu0 %v714
  %2971 = vmatpush2.msra.mxu0 %v713
  %2972 = vmatprep.subr.mxu0 %v708
  %2973 = vmatpush2.msra.mxu0 %v707
  %2974 = vmatprep.subr.mxu0 %v702
  %2975 = vmatpush2.msra.mxu0 %v701
  %2976 = vmatprep.subr.mxu0 %v696
  %2977 = vmatpush2.msra.mxu0 %v695
  %2978 = vmatprep.subr.mxu0 %v690
  %2979 = vmatpush2.msra.mxu0 %v689
  %2980 = vmatprep.subr.mxu0 %v684
  %2981 = vmatpush2.msra.mxu0 %v683
  %2982 = vmatprep.subr.mxu0 %v678
  %2983 = vmatpush2.msra.mxu0 %v677
  %2984 = vmatprep.subr.mxu0 %v672
  %2985 = vmatpush2.msra.mxu0 %v671
  %2986 = vmatprep.subr.mxu0 %v666
  %2987 = vmatpush2.msra.mxu0 %v665
  %2988 = vmatprep.subr.mxu0 %v660
  %2989 = vmatpush2.msra.mxu0 %v659
  %2990 = vmatprep.subr.mxu0 %v654
  %2991 = vmatpush2.msra.mxu0 %v653
  %2992 = vmatprep.mubr.f32.mxu0 %v2783
  %2993 = vmatmul.mubr.f32.gmra.mxu0 %v2756
  %v2994 = vpop.f32.mrf.mxu0
  %v2995 = vadd.f32 %v766, %v2994
  %v2996 = vpop.f32.mrf.mxu0
  %v2997 = vadd.f32 %v770, %v2996
  %2998 = vdwg.mxu0
  %v2999 = vld [vmem:[%s1034] sm:$0xff]
  %v3000 = vld [vmem:[%s1034 + $0x8] sm:$0xff]
  %v3001 = vld [vmem:[%s1034 + $0x10] sm:$0xff]
  %v3002 = vadd.f32 %v2999, %v2853
  %v3003 = vxor.u32 %v3002, 2147483648
  %v3004 = vmul.f32 %v3003, 1.442695
  %v3005 = vpow.pop %v3004
  %v3006 = vadd.f32 %v3005, 1.0
  %v3007 = vrcp.pop %v3006
  %v3008 = vmul.f32 1.0, %v3007
  %v3009 = vadd.f32 %v3000, %v2855
  %v3010 = vxor.u32 %v3009, 2147483648
  %v3011 = vmul.f32 %v3010, 1.442695
  %v3012 = vpow.pop %v3011
  %v3013 = vadd.f32 %v3012, 1.0
  %v3014 = vrcp.pop %v3013
  %v3015 = vmul.f32 1.0, %v3014
  %v3016 = vmul.f32 %v3008, %v2924
  %v3017 = vadd.f32 %v3001, %v3016
  %v3018 = vtanh.pop %v3017
  %v3019 = vsub.f32 1.0, %v3015
  %v3020 = vmul.f32 %v3019, %v3018
  %v3021 = vmul.f32 %v3015, %v2756
  %v3022 = vadd.f32 %v3020, %v3021
  %v3023 = vmul.f32 %v1062, %v3022
  %v3024 = vld [vmem:[#allocation2 + $0x18] sm:$0xff]
  %v3025 = vld [vmem:[#allocation2 + $0x20] sm:$0xff]
  %v3026 = vld [vmem:[#allocation2 + $0x28] sm:$0xff]
  %v3027 = vadd.f32 %v3024, %v2926
  %v3028 = vxor.u32 %v3027, 2147483648
  %v3029 = vmul.f32 %v3028, 1.442695
  %v3030 = vpow.pop %v3029
  %v3031 = vadd.f32 %v3030, 1.0
  %v3032 = vrcp.pop %v3031
  %v3033 = vmul.f32 1.0, %v3032
  %v3034 = vadd.f32 %v3025, %v2995
  %v3035 = vxor.u32 %v3034, 2147483648
  %v3036 = vmul.f32 %v3035, 1.442695
  %v3037 = vpow.pop %v3036
  %v3038 = vadd.f32 %v3037, 1.0
  %v3039 = vrcp.pop %v3038
  %v3040 = vmul.f32 1.0, %v3039
  %v3041 = vmul.f32 %v3033, %v2997
  %v3042 = vadd.f32 %v3026, %v3041
  %v3043 = vtanh.pop %v3042
  %v3044 = vsub.f32 1.0, %v3040
  %v3045 = vmul.f32 %v3044, %v3043
  %v3046 = vmul.f32 %v3040, %v2783
  %v3047 = vadd.f32 %v3045, %v3046
  %v3048 = vmul.f32 %v1023, %v3047
  %3049 = vst [vmem:[%s1074] sm:$0xff] %v3023
  %3050 = vst [vmem:[%s8 + $0x8] sm:$0xff] %v3048
  %v3051 = vld [vmem:[%s8] sm:$0xff]
  %v3052 = vld [vmem:[%s8 + $0x8] sm:$0xff]
  %v3053 = vld [vmem:[%s8 + $0x10] sm:$0xff]
  %v3054 = vld [vmem:[%s8 + $0x18] sm:$0xff]
  %v3055 = vld [vmem:[%s8 + $0x20] sm:$0xff]
  %v3056 = vld [vmem:[%s8 + $0x28] sm:$0xff]
  %v3057 = vld [vmem:[%s8 + $0x30] sm:$0xff]
  %v3058 = vld [vmem:[%s8 + $0x38] sm:$0xff]
  %v3059 = vld [vmem:[%s8 + $0x40] sm:$0xff]
  %v3060 = vld [vmem:[%s8 + $0x48] sm:$0xff]
  %v3061 = vld [vmem:[%s8 + $0x50] sm:$0xff]
  %v3062 = vld [vmem:[%s8 + $0x58] sm:$0xff]
  %v3063 = vld [vmem:[%s8 + $0x60] sm:$0xff]
  %v3064 = vld [vmem:[%s8 + $0x68] sm:$0xff]
  %v3065 = vld [vmem:[%s8 + $0x70] sm:$0xff]
  %v3066 = vld [vmem:[%s8 + $0x78] sm:$0xff]
  %v3067 = vadd.f32 %v3051, %v3053
  %v3068 = vadd.f32 %v3067, %v3055
  %v3069 = vadd.f32 %v3068, %v3057
  %v3070 = vadd.f32 %v3069, %v3059
  %v3071 = vadd.f32 %v3070, %v3061
  %v3072 = vadd.f32 %v3071, %v3063
  %v3073 = vadd.f32 %v3072, %v3065
  %v3074 = vadd.f32 %v3052, %v3054
  %v3075 = vadd.f32 %v3074, %v3056
  %v3076 = vadd.f32 %v3075, %v3058
  %v3077 = vadd.f32 %v3076, %v3060
  %v3078 = vadd.f32 %v3077, %v3062
  %v3079 = vadd.f32 %v3078, %v3064
  %v3080 = vadd.f32 %v3079, %v3066
  %v3081 = vrot.slane %v3073, 4
  %v3082 = vadd.f32 %v3073, %v3081
  %v3083 = vrot.slane %v3082, 2
  %v3084 = vadd.f32 %v3082, %v3083
  %v3085 = vrot.slane %v3084, 1
  %v3086 = vadd.f32 %v3084, %v3085
  %v3087 = vrot.slane %v3080, 4
  %v3088 = vadd.f32 %v3080, %v3087
  %v3089 = vrot.slane %v3088, 2
  %v3090 = vadd.f32 %v3088, %v3089
  %v3091 = vrot.slane %v3090, 1
  %v3092 = vadd.f32 %v3090, %v3091
  %v3093 = vmul.f32 %v3051, %v3051
  %v3094 = vmul.f32 %v3052, %v3052
  %v3095 = vmul.f32 %v3053, %v3053
  %v3096 = vmul.f32 %v3054, %v3054
  %v3097 = vmul.f32 %v3055, %v3055
  %v3098 = vmul.f32 %v3056, %v3056
  %v3099 = vmul.f32 %v3057, %v3057
  %v3100 = vmul.f32 %v3058, %v3058
  %v3101 = vmul.f32 %v3059, %v3059
  %v3102 = vmul.f32 %v3060, %v3060
  %v3103 = vmul.f32 %v3061, %v3061
  %v3104 = vmul.f32 %v3062, %v3062
  %v3105 = vmul.f32 %v3063, %v3063
  %v3106 = vmul.f32 %v3064, %v3064
  %v3107 = vmul.f32 %v3065, %v3065
  %v3108 = vmul.f32 %v3066, %v3066
  %v3109 = vadd.f32 %v3093, %v3095
  %v3110 = vadd.f32 %v3109, %v3097
  %v3111 = vadd.f32 %v3110, %v3099
  %v3112 = vadd.f32 %v3111, %v3101
  %v3113 = vadd.f32 %v3112, %v3103
  %v3114 = vadd.f32 %v3113, %v3105
  %v3115 = vadd.f32 %v3114, %v3107
  %v3116 = vadd.f32 %v3094, %v3096
  %v3117 = vadd.f32 %v3116, %v3098
  %v3118 = vadd.f32 %v3117, %v3100
  %v3119 = vadd.f32 %v3118, %v3102
  %v3120 = vadd.f32 %v3119, %v3104
  %v3121 = vadd.f32 %v3120, %v3106
  %v3122 = vadd.f32 %v3121, %v3108
  %v3123 = vrot.slane %v3115, 4
  %v3124 = vadd.f32 %v3115, %v3123
  %v3125 = vrot.slane %v3124, 2
  %v3126 = vadd.f32 %v3124, %v3125
  %v3127 = vrot.slane %v3126, 1
  %v3128 = vadd.f32 %v3126, %v3127
  %v3129 = vrot.slane %v3122, 4
  %v3130 = vadd.f32 %v3122, %v3129
  %v3131 = vrot.slane %v3130, 2
  %v3132 = vadd.f32 %v3130, %v3131
  %v3133 = vrot.slane %v3132, 1
  %v3134 = vadd.f32 %v3132, %v3133
  %v3135 = vmul.f32 %v3086, 0.0625
  %v3136 = vmul.f32 %v3092, 0.0625
  %v3137 = vmul.f32 %v3128, 0.0625
  %v3138 = vmul.f32 %v3134, 0.0625
  %v3139 = vmul.f32 %v3135, %v3135
  %v3140 = vmul.f32 %v3136, %v3136
  %v3141 = vsub.f32 %v3137, %v3139
  %v3142 = vsub.f32 %v3138, %v3140
  %v3143 = vmax.f32 %v3141, 0.0
  %v3144 = vmax.f32 %v3142, 0.0
  %v3145 = vadd.f32 %v3143, 1e-05
  %v3146 = vadd.f32 %v3144, 1e-05
  %v3147 = vrsqrt.pop %v3145
  %v3148 = vrsqrt.pop %v3146
  %v3149 = vld [vmem:[%s6] sm:$0x3]
  %v3151 = vlaneseq
  %v3152 = vshrl.u32 %v3151, 7
  %v3153 = vsub.s32 0, %v3152
  %v3154 = vrot.slane %v3149, %v3153
  %v3155 = vlaneseq
  %v3156 = vshrl.u32 %v3155, 7
  %v3157 = vsub.s32 1, %v3156
  %v3158 = vrot.slane %v3149, %v3157
  %v3161 = vmul.f32 %v3147, %v3154
  %v3162 = vmul.f32 %v3148, %v3158
  %v3163 = vld [vmem:[%s7] sm:$0x3]
  %v3164 = vmul.f32 %v3135, %v3161
  %v3165 = vmul.f32 %v3136, %v3162
  %v3168 = vcombine.low %v3164, %v3165
  %v3170 = vunpack.c.l.s4 1966171168
  %v3171 = vunpack.c.0.s8 %v3170
  %v3172 = vlaneseq
  %v3173 = vshrl.u32 %v3172, 7
  %v3174 = vsub.s32 %v3171, %v3173
  %v3175 = vrot.slane %v3168, %v3174
  %v3177 = vunpack.c.l.s4 1966171168
  %v3178 = vunpack.c.0.s8 %v3177
  %v3179 = vlaneseq
  %v3180 = vshrl.u32 %v3179, 7
  %v3181 = vsub.s32 %v3178, %v3180
  %v3182 = vrot.slane %v3175, %v3181
  %v3184 = vsub.f32 %v3163, %v3182
  %v3185 = vlaneseq
  %v3186 = vshrl.u32 %v3185, 7
  %v3187 = vsub.s32 0, %v3186
  %v3188 = vrot.slane %v3161, %v3187
  %v3189 = vlaneseq
  %v3190 = vshrl.u32 %v3189, 7
  %v3191 = vsub.s32 0, %v3190
  %v3192 = vrot.slane %v3162, %v3191
  %v3193 = vmul.f32 %v3051, %v3188
  %v3194 = vmul.f32 %v3052, %v3192
  %v3195 = vmul.f32 %v3053, %v3188
  %v3196 = vmul.f32 %v3054, %v3192
  %v3197 = vmul.f32 %v3055, %v3188
  %v3198 = vmul.f32 %v3056, %v3192
  %v3199 = vmul.f32 %v3057, %v3188
  %v3200 = vmul.f32 %v3058, %v3192
  %v3201 = vmul.f32 %v3059, %v3188
  %v3202 = vmul.f32 %v3060, %v3192
  %v3203 = vmul.f32 %v3061, %v3188
  %v3204 = vmul.f32 %v3062, %v3192
  %v3205 = vmul.f32 %v3063, %v3188
  %v3206 = vmul.f32 %v3064, %v3192
  %v3207 = vmul.f32 %v3065, %v3188
  %v3208 = vmul.f32 %v3066, %v3192
  %v3210 = vlaneseq
  %v3211 = vshrl.u32 %v3210, 7
  %v3212 = vsub.s32 0, %v3211
  %v3213 = vrot.slane %v3184, %v3212
  %v3214 = vlaneseq
  %v3215 = vshrl.u32 %v3214, 7
  %v3216 = vsub.s32 1, %v3215
  %v3217 = vrot.slane %v3184, %v3216
  %v3220 = vadd.f32 %v3193, %v3213
  %v3221 = vadd.f32 %v3194, %v3217
  %v3222 = vadd.f32 %v3195, %v3213
  %v3223 = vadd.f32 %v3196, %v3217
  %v3224 = vadd.f32 %v3197, %v3213
  %v3225 = vadd.f32 %v3198, %v3217
  %v3226 = vadd.f32 %v3199, %v3213
  %v3227 = vadd.f32 %v3200, %v3217
  %v3228 = vadd.f32 %v3201, %v3213
  %v3229 = vadd.f32 %v3202, %v3217
  %v3230 = vadd.f32 %v3203, %v3213
  %v3231 = vadd.f32 %v3204, %v3217
  %v3232 = vadd.f32 %v3205, %v3213
  %v3233 = vadd.f32 %v3206, %v3217
  %v3234 = vadd.f32 %v3207, %v3213
  %v3235 = vadd.f32 %v3208, %v3217
  %3236 = vst [vmem:[%s8] sm:$0xff] %v3220
  %3237 = vst [vmem:[%s8 + $0x8] sm:$0xff] %v3221
  %3238 = vst [vmem:[%s8 + $0x10] sm:$0xff] %v3222
  %3239 = vst [vmem:[%s8 + $0x18] sm:$0xff] %v3223
  %3240 = vst [vmem:[%s8 + $0x20] sm:$0xff] %v3224
  %3241 = vst [vmem:[%s8 + $0x28] sm:$0xff] %v3225
  %3242 = vst [vmem:[%s8 + $0x30] sm:$0xff] %v3226
  %3243 = vst [vmem:[%s8 + $0x38] sm:$0xff] %v3227
  %3244 = vst [vmem:[%s8 + $0x40] sm:$0xff] %v3228
  %3245 = vst [vmem:[%s8 + $0x48] sm:$0xff] %v3229
  %3246 = vst [vmem:[%s8 + $0x50] sm:$0xff] %v3230
  %3247 = vst [vmem:[%s8 + $0x58] sm:$0xff] %v3231
  %3248 = vst [vmem:[%s8 + $0x60] sm:$0xff] %v3232
  %3249 = vst [vmem:[%s8 + $0x68] sm:$0xff] %v3233
  %3250 = vst [vmem:[%s8 + $0x70] sm:$0xff] %v3234
  %3251 = vst [vmem:[%s8 + $0x78] sm:$0xff] %v3235
  // Predicated region
  $region34: #{rnn_forward.1} parent=0 // pred_check
    _
  $region35: #{rnn_forward.1} parent=0 // pred_check_branch
    %3253 = sbr.rel (0) target = $region37
  $region36: #{rnn_forward.1} parent=0 // pred_region
    _
  $region37: #{rnn_forward.1} parent=0 // pred_fallthru
    _
  // Predicated region
  $region38: #{rnn_forward.1} parent=0 // pred_check
    _
  $region39: #{rnn_forward.1} parent=0 // pred_check_branch
    %3255 = sbr.rel (0) target = $region41
  $region40: #{rnn_forward.1} parent=0 // pred_region
    _
  $region41: #{rnn_forward.1} parent=0 // pred_fallthru
    _

</llo_original>
